<compile_context>
chip_gen: v7x
topology: tpu7x:2x2x1
jax: 0.10.0
libtpu: 0.0.40
codegen_flags: <defaults>
</compile_context>

<pallas_src>
import jax
import jax.numpy as jnp
from jax.experimental import pallas as pl
from jax.experimental.pallas import tpu as pltpu

# Small shapes consistent with the module (in_channel must equal out_channel
# for the downsample=None branch; 64 is the ResNet stage-1 width).
N, H, W, C = 2, 8, 8, 64
BLOCK_NUM = 2
N_CONV = 2 * BLOCK_NUM
KK = 9 * C          # im2col contraction depth
EPS = 1e-5


def fused_layer_kernel(x_ref, w_ref, b_ref, out_ref, xpad_ref, patch_ref):
    """Both residual blocks; one grid step == `imgs` batch images."""
    f32 = jnp.float32
    imgs = x_ref.shape[0]          # 1 (v7x, one image per TensorCore) or N
    m = imgs * H * W               # matmul M dim (128 when the batch is folded)

    # Zero only the 1-pixel halo of the padded scratch; the interior is fully
    # overwritten before every conv and interior writes never touch the halo.
    # Done every grid step (each megacore TC owns a private scratch copy).
    xpad_ref[:, 0:1, :, :] = jnp.zeros((imgs, 1, W + 2, C), f32)
    xpad_ref[:, H + 1:H + 2, :, :] = jnp.zeros((imgs, 1, W + 2, C), f32)
    xpad_ref[:, :, 0:1, :] = jnp.zeros((imgs, H + 2, 1, C), f32)
    xpad_ref[:, :, W + 1:W + 2, :] = jnp.zeros((imgs, H + 2, 1, C), f32)

    def fill_patch():
        # im2col into the persistent bf16 VMEM patch scratch (reused by all
        # four convs): nine direct slab stores, no lane-packing concatenate.
        for t in range(9):
            dy, dx = t // 3, t % 3
            slab = xpad_ref[:, dy:dy + H, dx:dx + W, :]          # (imgs,H,W,C)
            patch_ref[:, t * C:(t + 1) * C] = (
                slab.reshape(m, C).astype(jnp.bfloat16))         # free reshape

    def conv3x3(conv_idx):
        # One MXU matmul per conv: (m, 9C) x (9C, C), bf16 operands, f32 acc.
        y = jnp.dot(patch_ref[...], w_ref[conv_idx],
                    preferred_element_type=jnp.float32)          # (m, C) f32
        return y + b_ref[conv_idx]                               # folded BN bias

    # Residual-block chain; activation / residual identity stay in vregs (f32).
    act = x_ref[...].reshape(m, C)                               # (m, C)
    for blk in range(BLOCK_NUM):
        # conv1 -> folded BN1 -> ReLU
        xpad_ref[:, 1:H + 1, 1:W + 1, :] = act.reshape(imgs, H, W, C)
        fill_patch()
        y1 = jnp.maximum(conv3x3(2 * blk), 0.0)
        # conv2 -> folded BN2
        xpad_ref[:, 1:H + 1, 1:W + 1, :] = y1.reshape(imgs, H, W, C)
        fill_patch()
        # residual add + ReLU
        act = jnp.maximum(act + conv3x3(2 * blk + 1), 0.0)

    # Lane-dense output store: pack W*C = 512 lanes per row (unmasked stores),
    # done once per grid step. Row-major order equals flattened NHWC.
    act4 = act.reshape(imgs, H, W, C)
    out_ref[...] = jnp.concatenate([act4[:, :, w, :] for w in range(W)],
                                   axis=-1)                      # (imgs,H,W*C)


def _images_per_step(n):
    """v7x: 1 image/step (2 TCs, megacore-parallel). v5e/v6e: fold batch (M=128)."""
    kind = ""
    try:
        kind = jax.devices()[0].device_kind.lower()
    except Exception:
        pass
    return 1 if "v7" in kind else n


def pack_layer_params(blocks_params):
    """Fold BN scale into conv weights, reshape to im2col layout, cast to bf16."""
    ws, bs = [], []
    for (w1, s1, b1, w2, s2, b2) in blocks_params:
        for w, s, b in ((w1, s1, b1), (w2, s2, b2)):
            w_folded = w * s.reshape(1, 1, 1, C)      # scale over Cout (HWIO)
            ws.append(w_folded.reshape(KK, C).astype(jnp.bfloat16))
            bs.append(b.reshape(1, C).astype(jnp.float32))
    return jnp.stack(ws), jnp.stack(bs)               # (4, 9C, C) bf16, (4,1,C) f32


def basic_layer_forward(x_nhwc, blocks_params):
    """Sequential ResidualBlock forwards, fused into one pallas_call (NHWC)."""
    n = x_nhwc.shape[0]
    imgs = _images_per_step(n)
    steps = n // imgs
    w_all, b_all = pack_layer_params(blocks_params)
    out = pl.pallas_call(
        fused_layer_kernel,
        out_shape=jax.ShapeDtypeStruct((n, H, W * C), jnp.float32),
        grid=(steps,),
        in_specs=[
            pl.BlockSpec((imgs, H, W, C), lambda i: (i, 0, 0, 0)),   # x images
            pl.BlockSpec((N_CONV, KK, C), lambda i: (0, 0, 0)),      # bf16 weights
            pl.BlockSpec((N_CONV, 1, C), lambda i: (0, 0, 0)),       # f32 biases
        ],
        out_specs=pl.BlockSpec((imgs, H, W * C), lambda i: (i, 0, 0)),
        scratch_shapes=[
            pltpu.VMEM((imgs, H + 2, W + 2, C), jnp.float32),   # padded activation
            pltpu.VMEM((imgs * H * W, KK), jnp.bfloat16),       # im2col patch
        ],
        compiler_params=pltpu.CompilerParams(
            dimension_semantics=("parallel",)),
    )(x_nhwc.astype(jnp.float32), w_all, b_all)
    return out.reshape(n, H, W, C)


def basic_layer_forward_nchw(x_nchw, blocks_params):
    """PyTorch-parity adapter (NCHW in/out). In an NHWC end-to-end model these
    two transposes disappear; the fused kernel itself is NHWC/lane-dense."""
    x = jnp.transpose(x_nchw, (0, 2, 3, 1))
    y = basic_layer_forward(x, blocks_params)
    return jnp.transpose(y, (0, 3, 1, 2))


# ---------------- deterministic parameter construction ----------------
def _bn_fold(kg, kb, km, kv, c):
    gamma = 1.0 + 0.1 * jax.random.normal(kg, (c,), jnp.float32)
    beta = 0.1 * jax.random.normal(kb, (c,), jnp.float32)
    mean = 0.1 * jax.random.normal(km, (c,), jnp.float32)
    var = jnp.abs(jax.random.normal(kv, (c,), jnp.float32)) + 1.0
    scale = gamma / jnp.sqrt(var + EPS)
    bias = beta - mean * scale
    return scale.reshape(1, c), bias.reshape(1, c)


def init_block_params(key):
    k = jax.random.split(key, 10)
    w1 = 0.04 * jax.random.normal(k[0], (3, 3, C, C), jnp.float32)   # HWIO
    s1, b1 = _bn_fold(k[1], k[2], k[3], k[4], C)
    w2 = 0.04 * jax.random.normal(k[5], (3, 3, C, C), jnp.float32)   # HWIO
    s2, b2 = _bn_fold(k[6], k[7], k[8], k[9], C)
    return (w1, s1, b1, w2, s2, b2)


# ---------------- pure-JAX f32 reference for verification ----------------
def _ref_conv3x3(x, w):
    return jax.lax.conv_general_dilated(
        x, w, window_strides=(1, 1), padding="SAME",
        dimension_numbers=("NHWC", "HWIO", "NHWC"))


def _ref_block(x, params):
    w1, s1, b1, w2, s2, b2 = params
    y = jnp.maximum(_ref_conv3x3(x, w1) * s1.reshape(1, 1, 1, C)
                    + b1.reshape(1, 1, 1, C), 0.0)
    y = _ref_conv3x3(y, w2) * s2.reshape(1, 1, 1, C) + b2.reshape(1, 1, 1, C)
    return jnp.maximum(x + y, 0.0)


if __name__ == "__main__":
    key = jax.random.PRNGKey(0)
    kx, kp = jax.random.split(key)

    # PyTorch-style NCHW input.
    x_nchw = jax.random.normal(kx, (N, C, H, W), jnp.float32)
    blocks_params = [init_block_params(k)
                     for k in jax.random.split(kp, BLOCK_NUM)]

    out = jax.block_until_ready(basic_layer_forward_nchw(x_nchw, blocks_params))

    # Cross-check against a plain-JAX f32 reference. The kernel feeds the MXU
    # bf16 operands (per perf review), so the tolerance is relaxed vs f32.
    xr = jnp.transpose(x_nchw, (0, 2, 3, 1))
    for p in blocks_params:
        xr = _ref_block(xr, p)
    ref = jnp.transpose(xr, (0, 3, 1, 2))

    max_err = float(jnp.max(jnp.abs(out - ref)))
    mean_err = float(jnp.mean(jnp.abs(out - ref)))
    assert out.shape == (N, C, H, W)
    assert mean_err < 2.5e-2, f"mean abs err {mean_err}"
    assert jnp.allclose(out, ref, atol=1e-1, rtol=5e-2), \
        f"max abs err {max_err}, mean abs err {mean_err}"

    print("KERNEL_OK")
</pallas_src>

<mosaic_0001>
module attributes {stable_mosaic.version = 11 : i64} {
  func.func @fused_layer_kernel(%arg0: i32, %arg1: memref<2x8x8x64xf32, #tpu.memory_space<vmem>>, %arg2: memref<4x576x64xbf16, #tpu.memory_space<vmem>>, %arg3: memref<4x1x64xf32, #tpu.memory_space<vmem>>, %arg4: memref<2x8x512xf32, #tpu.memory_space<vmem>>, %arg5: memref<2x10x10x64xf32, #tpu.memory_space<vmem>>, %arg6: memref<128x576xbf16, #tpu.memory_space<vmem>>) attributes {dimension_semantics = [#tpu.dimension_semantics<parallel>], iteration_bounds = array<i64: 1>, scalar_prefetch = 0 : i64, scratch_operands = 2 : i64, tpu.core_type = #tpu.core_type<tc>, window_params = [{transform_indices = @transform_0, window_bounds = array<i64: 2, 8, 8, 64>}, {pipeline_mode = #tpu.pipeline_mode<synchronous>, transform_indices = @transform_1, window_bounds = array<i64: 4, 576, 64>}, {pipeline_mode = #tpu.pipeline_mode<synchronous>, transform_indices = @transform_2, window_bounds = array<i64: 4, 1, 64>}, {transform_indices = @transform_3, window_bounds = array<i64: 2, 8, 512>}]} {
    %cst = arith.constant 0.000000e+00 : f32
    %0 = vector.broadcast %cst : f32 to vector<2x1x10x64xf32>
    %c0 = arith.constant 0 : index
    %c0_0 = arith.constant 0 : index
    %c0_1 = arith.constant 0 : index
    %c0_2 = arith.constant 0 : index
    %1 = vector.load %arg5[%c0, %c0_0, %c0_1, %c0_2] : memref<2x10x10x64xf32, #tpu.memory_space<vmem>>, vector<2x1x10x64xf32>
    tpu.vector_store %arg5[%c0, %c0_0, %c0_1, %c0_2], %0 {strides = array<i32>} : memref<2x10x10x64xf32, #tpu.memory_space<vmem>>, vector<2x1x10x64xf32>,
    %cst_3 = arith.constant 0.000000e+00 : f32
    %2 = vector.broadcast %cst_3 : f32 to vector<2x1x10x64xf32>
    %c0_4 = arith.constant 0 : index
    %c9 = arith.constant 9 : index
    %c0_5 = arith.constant 0 : index
    %c0_6 = arith.constant 0 : index
    %3 = vector.load %arg5[%c0_4, %c9, %c0_5, %c0_6] : memref<2x10x10x64xf32, #tpu.memory_space<vmem>>, vector<2x1x10x64xf32>
    tpu.vector_store %arg5[%c0_4, %c9, %c0_5, %c0_6], %2 {strides = array<i32>} : memref<2x10x10x64xf32, #tpu.memory_space<vmem>>, vector<2x1x10x64xf32>,
    %cst_7 = arith.constant 0.000000e+00 : f32
    %4 = vector.broadcast %cst_7 : f32 to vector<2x10x1x64xf32>
    %c0_8 = arith.constant 0 : index
    %c0_9 = arith.constant 0 : index
    %c0_10 = arith.constant 0 : index
    %c0_11 = arith.constant 0 : index
    %5 = vector.load %arg5[%c0_8, %c0_9, %c0_10, %c0_11] : memref<2x10x10x64xf32, #tpu.memory_space<vmem>>, vector<2x10x1x64xf32>
    tpu.vector_store %arg5[%c0_8, %c0_9, %c0_10, %c0_11], %4 {strides = array<i32>} : memref<2x10x10x64xf32, #tpu.memory_space<vmem>>, vector<2x10x1x64xf32>,
    %cst_12 = arith.constant 0.000000e+00 : f32
    %6 = vector.broadcast %cst_12 : f32 to vector<2x10x1x64xf32>
    %c0_13 = arith.constant 0 : index
    %c0_14 = arith.constant 0 : index
    %c9_15 = arith.constant 9 : index
    %c0_16 = arith.constant 0 : index
    %7 = vector.load %arg5[%c0_13, %c0_14, %c9_15, %c0_16] : memref<2x10x10x64xf32, #tpu.memory_space<vmem>>, vector<2x10x1x64xf32>
    tpu.vector_store %arg5[%c0_13, %c0_14, %c9_15, %c0_16], %6 {strides = array<i32>} : memref<2x10x10x64xf32, #tpu.memory_space<vmem>>, vector<2x10x1x64xf32>,
    %c0_17 = arith.constant 0 : index
    %c0_18 = arith.constant 0 : index
    %c0_19 = arith.constant 0 : index
    %c0_20 = arith.constant 0 : index
    %8 = vector.load %arg1[%c0_17, %c0_18, %c0_19, %c0_20] : memref<2x8x8x64xf32, #tpu.memory_space<vmem>>, vector<2x8x8x64xf32>
    %9 = vector.shape_cast %8 : vector<2x8x8x64xf32> to vector<128x64xf32>
    %10 = vector.shape_cast %9 : vector<128x64xf32> to vector<2x8x8x64xf32>
    %c0_21 = arith.constant 0 : index
    %c1 = arith.constant 1 : index
    %c1_22 = arith.constant 1 : index
    %c0_23 = arith.constant 0 : index
    %11 = vector.load %arg5[%c0_21, %c1, %c1_22, %c0_23] : memref<2x10x10x64xf32, #tpu.memory_space<vmem>>, vector<2x8x8x64xf32>
    tpu.vector_store %arg5[%c0_21, %c1, %c1_22, %c0_23], %10 {strides = array<i32>} : memref<2x10x10x64xf32, #tpu.memory_space<vmem>>, vector<2x8x8x64xf32>,
    %c0_24 = arith.constant 0 : index
    %c0_25 = arith.constant 0 : index
    %c0_26 = arith.constant 0 : index
    %c0_27 = arith.constant 0 : index
    %12 = vector.load %arg5[%c0_24, %c0_25, %c0_26, %c0_27] : memref<2x10x10x64xf32, #tpu.memory_space<vmem>>, vector<2x8x8x64xf32>
    %13 = vector.shape_cast %12 : vector<2x8x8x64xf32> to vector<128x64xf32>
    %14 = arith.truncf %13 : vector<128x64xf32> to vector<128x64xbf16>
    %c0_28 = arith.constant 0 : index
    %c0_29 = arith.constant 0 : index
    %15 = vector.load %arg6[%c0_28, %c0_29] : memref<128x576xbf16, #tpu.memory_space<vmem>>, vector<128x64xbf16>
    tpu.vector_store %arg6[%c0_28, %c0_29], %14 {strides = array<i32>} : memref<128x576xbf16, #tpu.memory_space<vmem>>, vector<128x64xbf16>,
    %c0_30 = arith.constant 0 : index
    %c0_31 = arith.constant 0 : index
    %c1_32 = arith.constant 1 : index
    %c0_33 = arith.constant 0 : index
    %16 = vector.load %arg5[%c0_30, %c0_31, %c1_32, %c0_33] : memref<2x10x10x64xf32, #tpu.memory_space<vmem>>, vector<2x8x8x64xf32>
    %17 = vector.shape_cast %16 : vector<2x8x8x64xf32> to vector<128x64xf32>
    %18 = arith.truncf %17 : vector<128x64xf32> to vector<128x64xbf16>
    %c0_34 = arith.constant 0 : index
    %c64 = arith.constant 64 : index
    %19 = vector.load %arg6[%c0_34, %c64] : memref<128x576xbf16, #tpu.memory_space<vmem>>, vector<128x64xbf16>
    tpu.vector_store %arg6[%c0_34, %c64], %18 {strides = array<i32>} : memref<128x576xbf16, #tpu.memory_space<vmem>>, vector<128x64xbf16>,
    %c0_35 = arith.constant 0 : index
    %c0_36 = arith.constant 0 : index
    %c2 = arith.constant 2 : index
    %c0_37 = arith.constant 0 : index
    %20 = vector.load %arg5[%c0_35, %c0_36, %c2, %c0_37] : memref<2x10x10x64xf32, #tpu.memory_space<vmem>>, vector<2x8x8x64xf32>
    %21 = vector.shape_cast %20 : vector<2x8x8x64xf32> to vector<128x64xf32>
    %22 = arith.truncf %21 : vector<128x64xf32> to vector<128x64xbf16>
    %c0_38 = arith.constant 0 : index
    %c128 = arith.constant 128 : index
    %23 = vector.load %arg6[%c0_38, %c128] : memref<128x576xbf16, #tpu.memory_space<vmem>>, vector<128x64xbf16>
    tpu.vector_store %arg6[%c0_38, %c128], %22 {strides = array<i32>} : memref<128x576xbf16, #tpu.memory_space<vmem>>, vector<128x64xbf16>,
    %c0_39 = arith.constant 0 : index
    %c1_40 = arith.constant 1 : index
    %c0_41 = arith.constant 0 : index
    %c0_42 = arith.constant 0 : index
    %24 = vector.load %arg5[%c0_39, %c1_40, %c0_41, %c0_42] : memref<2x10x10x64xf32, #tpu.memory_space<vmem>>, vector<2x8x8x64xf32>
    %25 = vector.shape_cast %24 : vector<2x8x8x64xf32> to vector<128x64xf32>
    %26 = arith.truncf %25 : vector<128x64xf32> to vector<128x64xbf16>
    %c0_43 = arith.constant 0 : index
    %c192 = arith.constant 192 : index
    %27 = vector.load %arg6[%c0_43, %c192] : memref<128x576xbf16, #tpu.memory_space<vmem>>, vector<128x64xbf16>
    tpu.vector_store %arg6[%c0_43, %c192], %26 {strides = array<i32>} : memref<128x576xbf16, #tpu.memory_space<vmem>>, vector<128x64xbf16>,
    %c0_44 = arith.constant 0 : index
    %c1_45 = arith.constant 1 : index
    %c1_46 = arith.constant 1 : index
    %c0_47 = arith.constant 0 : index
    %28 = vector.load %arg5[%c0_44, %c1_45, %c1_46, %c0_47] : memref<2x10x10x64xf32, #tpu.memory_space<vmem>>, vector<2x8x8x64xf32>
    %29 = vector.shape_cast %28 : vector<2x8x8x64xf32> to vector<128x64xf32>
    %30 = arith.truncf %29 : vector<128x64xf32> to vector<128x64xbf16>
    %c0_48 = arith.constant 0 : index
    %c256 = arith.constant 256 : index
    %31 = vector.load %arg6[%c0_48, %c256] : memref<128x576xbf16, #tpu.memory_space<vmem>>, vector<128x64xbf16>
    tpu.vector_store %arg6[%c0_48, %c256], %30 {strides = array<i32>} : memref<128x576xbf16, #tpu.memory_space<vmem>>, vector<128x64xbf16>,
    %c0_49 = arith.constant 0 : index
    %c1_50 = arith.constant 1 : index
    %c2_51 = arith.constant 2 : index
    %c0_52 = arith.constant 0 : index
    %32 = vector.load %arg5[%c0_49, %c1_50, %c2_51, %c0_52] : memref<2x10x10x64xf32, #tpu.memory_space<vmem>>, vector<2x8x8x64xf32>
    %33 = vector.shape_cast %32 : vector<2x8x8x64xf32> to vector<128x64xf32>
    %34 = arith.truncf %33 : vector<128x64xf32> to vector<128x64xbf16>
    %c0_53 = arith.constant 0 : index
    %c320 = arith.constant 320 : index
    %35 = vector.load %arg6[%c0_53, %c320] : memref<128x576xbf16, #tpu.memory_space<vmem>>, vector<128x64xbf16>
    tpu.vector_store %arg6[%c0_53, %c320], %34 {strides = array<i32>} : memref<128x576xbf16, #tpu.memory_space<vmem>>, vector<128x64xbf16>,
    %c0_54 = arith.constant 0 : index
    %c2_55 = arith.constant 2 : index
    %c0_56 = arith.constant 0 : index
    %c0_57 = arith.constant 0 : index
    %36 = vector.load %arg5[%c0_54, %c2_55, %c0_56, %c0_57] : memref<2x10x10x64xf32, #tpu.memory_space<vmem>>, vector<2x8x8x64xf32>
    %37 = vector.shape_cast %36 : vector<2x8x8x64xf32> to vector<128x64xf32>
    %38 = arith.truncf %37 : vector<128x64xf32> to vector<128x64xbf16>
    %c0_58 = arith.constant 0 : index
    %c384 = arith.constant 384 : index
    %39 = vector.load %arg6[%c0_58, %c384] : memref<128x576xbf16, #tpu.memory_space<vmem>>, vector<128x64xbf16>
    tpu.vector_store %arg6[%c0_58, %c384], %38 {strides = array<i32>} : memref<128x576xbf16, #tpu.memory_space<vmem>>, vector<128x64xbf16>,
    %c0_59 = arith.constant 0 : index
    %c2_60 = arith.constant 2 : index
    %c1_61 = arith.constant 1 : index
    %c0_62 = arith.constant 0 : index
    %40 = vector.load %arg5[%c0_59, %c2_60, %c1_61, %c0_62] : memref<2x10x10x64xf32, #tpu.memory_space<vmem>>, vector<2x8x8x64xf32>
    %41 = vector.shape_cast %40 : vector<2x8x8x64xf32> to vector<128x64xf32>
    %42 = arith.truncf %41 : vector<128x64xf32> to vector<128x64xbf16>
    %c0_63 = arith.constant 0 : index
    %c448 = arith.constant 448 : index
    %43 = vector.load %arg6[%c0_63, %c448] : memref<128x576xbf16, #tpu.memory_space<vmem>>, vector<128x64xbf16>
    tpu.vector_store %arg6[%c0_63, %c448], %42 {strides = array<i32>} : memref<128x576xbf16, #tpu.memory_space<vmem>>, vector<128x64xbf16>,
    %c0_64 = arith.constant 0 : index
    %c2_65 = arith.constant 2 : index
    %c2_66 = arith.constant 2 : index
    %c0_67 = arith.constant 0 : index
    %44 = vector.load %arg5[%c0_64, %c2_65, %c2_66, %c0_67] : memref<2x10x10x64xf32, #tpu.memory_space<vmem>>, vector<2x8x8x64xf32>
    %45 = vector.shape_cast %44 : vector<2x8x8x64xf32> to vector<128x64xf32>
    %46 = arith.truncf %45 : vector<128x64xf32> to vector<128x64xbf16>
    %c0_68 = arith.constant 0 : index
    %c512 = arith.constant 512 : index
    %47 = vector.load %arg6[%c0_68, %c512] : memref<128x576xbf16, #tpu.memory_space<vmem>>, vector<128x64xbf16>
    tpu.vector_store %arg6[%c0_68, %c512], %46 {strides = array<i32>} : memref<128x576xbf16, #tpu.memory_space<vmem>>, vector<128x64xbf16>,
    %c0_69 = arith.constant 0 : index
    %c0_70 = arith.constant 0 : index
    %48 = vector.load %arg6[%c0_69, %c0_70] : memref<128x576xbf16, #tpu.memory_space<vmem>>, vector<128x576xbf16>
    %c0_71 = arith.constant 0 : index
    %c0_72 = arith.constant 0 : index
    %c0_73 = arith.constant 0 : index
    %49 = vector.load %arg2[%c0_71, %c0_72, %c0_73] : memref<4x576x64xbf16, #tpu.memory_space<vmem>>, vector<1x576x64xbf16>
    %50 = vector.shape_cast %49 : vector<1x576x64xbf16> to vector<576x64xbf16>
    %cst_74 = arith.constant dense<0.000000e+00> : vector<128x64xf32>
    %51 = tpu.matmul %48, %50, %cst_74 {dimension_numbers = #tpu.dot_dimension_numbers<[1], [0], [0], [1], [0, 0, 1, 1], [], []>} : vector<128x576xbf16>, vector<576x64xbf16>, vector<128x64xf32> -> vector<128x64xf32>
    %c0_75 = arith.constant 0 : index
    %c0_76 = arith.constant 0 : index
    %c0_77 = arith.constant 0 : index
    %52 = vector.load %arg3[%c0_75, %c0_76, %c0_77] : memref<4x1x64xf32, #tpu.memory_space<vmem>>, vector<1x1x64xf32>
    %53 = vector.shape_cast %52 : vector<1x1x64xf32> to vector<1x64xf32>
    %54 = vector.broadcast %53 : vector<1x64xf32> to vector<128x64xf32>
    %55 = arith.addf %51, %54 : vector<128x64xf32>
    %cst_78 = arith.constant 0.000000e+00 : f32
    %56 = vector.broadcast %cst_78 : f32 to vector<128x64xf32>
    %57 = arith.maximumf %55, %56 : vector<128x64xf32>
    %58 = vector.shape_cast %57 : vector<128x64xf32> to vector<2x8x8x64xf32>
    %c0_79 = arith.constant 0 : index
    %c1_80 = arith.constant 1 : index
    %c1_81 = arith.constant 1 : index
    %c0_82 = arith.constant 0 : index
    %59 = vector.load %arg5[%c0_79, %c1_80, %c1_81, %c0_82] : memref<2x10x10x64xf32, #tpu.memory_space<vmem>>, vector<2x8x8x64xf32>
    tpu.vector_store %arg5[%c0_79, %c1_80, %c1_81, %c0_82], %58 {strides = array<i32>} : memref<2x10x10x64xf32, #tpu.memory_space<vmem>>, vector<2x8x8x64xf32>,
    %c0_83 = arith.constant 0 : index
    %c0_84 = arith.constant 0 : index
    %c0_85 = arith.constant 0 : index
    %c0_86 = arith.constant 0 : index
    %60 = vector.load %arg5[%c0_83, %c0_84, %c0_85, %c0_86] : memref<2x10x10x64xf32, #tpu.memory_space<vmem>>, vector<2x8x8x64xf32>
    %61 = vector.shape_cast %60 : vector<2x8x8x64xf32> to vector<128x64xf32>
    %62 = arith.truncf %61 : vector<128x64xf32> to vector<128x64xbf16>
    %c0_87 = arith.constant 0 : index
    %c0_88 = arith.constant 0 : index
    %63 = vector.load %arg6[%c0_87, %c0_88] : memref<128x576xbf16, #tpu.memory_space<vmem>>, vector<128x64xbf16>
    tpu.vector_store %arg6[%c0_87, %c0_88], %62 {strides = array<i32>} : memref<128x576xbf16, #tpu.memory_space<vmem>>, vector<128x64xbf16>,
    %c0_89 = arith.constant 0 : index
    %c0_90 = arith.constant 0 : index
    %c1_91 = arith.constant 1 : index
    %c0_92 = arith.constant 0 : index
    %64 = vector.load %arg5[%c0_89, %c0_90, %c1_91, %c0_92] : memref<2x10x10x64xf32, #tpu.memory_space<vmem>>, vector<2x8x8x64xf32>
    %65 = vector.shape_cast %64 : vector<2x8x8x64xf32> to vector<128x64xf32>
    %66 = arith.truncf %65 : vector<128x64xf32> to vector<128x64xbf16>
    %c0_93 = arith.constant 0 : index
    %c64_94 = arith.constant 64 : index
    %67 = vector.load %arg6[%c0_93, %c64_94] : memref<128x576xbf16, #tpu.memory_space<vmem>>, vector<128x64xbf16>
    tpu.vector_store %arg6[%c0_93, %c64_94], %66 {strides = array<i32>} : memref<128x576xbf16, #tpu.memory_space<vmem>>, vector<128x64xbf16>,
    %c0_95 = arith.constant 0 : index
    %c0_96 = arith.constant 0 : index
    %c2_97 = arith.constant 2 : index
    %c0_98 = arith.constant 0 : index
    %68 = vector.load %arg5[%c0_95, %c0_96, %c2_97, %c0_98] : memref<2x10x10x64xf32, #tpu.memory_space<vmem>>, vector<2x8x8x64xf32>
    %69 = vector.shape_cast %68 : vector<2x8x8x64xf32> to vector<128x64xf32>
    %70 = arith.truncf %69 : vector<128x64xf32> to vector<128x64xbf16>
    %c0_99 = arith.constant 0 : index
    %c128_100 = arith.constant 128 : index
    %71 = vector.load %arg6[%c0_99, %c128_100] : memref<128x576xbf16, #tpu.memory_space<vmem>>, vector<128x64xbf16>
    tpu.vector_store %arg6[%c0_99, %c128_100], %70 {strides = array<i32>} : memref<128x576xbf16, #tpu.memory_space<vmem>>, vector<128x64xbf16>,
    %c0_101 = arith.constant 0 : index
    %c1_102 = arith.constant 1 : index
    %c0_103 = arith.constant 0 : index
    %c0_104 = arith.constant 0 : index
    %72 = vector.load %arg5[%c0_101, %c1_102, %c0_103, %c0_104] : memref<2x10x10x64xf32, #tpu.memory_space<vmem>>, vector<2x8x8x64xf32>
    %73 = vector.shape_cast %72 : vector<2x8x8x64xf32> to vector<128x64xf32>
    %74 = arith.truncf %73 : vector<128x64xf32> to vector<128x64xbf16>
    %c0_105 = arith.constant 0 : index
    %c192_106 = arith.constant 192 : index
    %75 = vector.load %arg6[%c0_105, %c192_106] : memref<128x576xbf16, #tpu.memory_space<vmem>>, vector<128x64xbf16>
    tpu.vector_store %arg6[%c0_105, %c192_106], %74 {strides = array<i32>} : memref<128x576xbf16, #tpu.memory_space<vmem>>, vector<128x64xbf16>,
    %c0_107 = arith.constant 0 : index
    %c1_108 = arith.constant 1 : index
    %c1_109 = arith.constant 1 : index
    %c0_110 = arith.constant 0 : index
    %76 = vector.load %arg5[%c0_107, %c1_108, %c1_109, %c0_110] : memref<2x10x10x64xf32, #tpu.memory_space<vmem>>, vector<2x8x8x64xf32>
    %77 = vector.shape_cast %76 : vector<2x8x8x64xf32> to vector<128x64xf32>
    %78 = arith.truncf %77 : vector<128x64xf32> to vector<128x64xbf16>
    %c0_111 = arith.constant 0 : index
    %c256_112 = arith.constant 256 : index
    %79 = vector.load %arg6[%c0_111, %c256_112] : memref<128x576xbf16, #tpu.memory_space<vmem>>, vector<128x64xbf16>
    tpu.vector_store %arg6[%c0_111, %c256_112], %78 {strides = array<i32>} : memref<128x576xbf16, #tpu.memory_space<vmem>>, vector<128x64xbf16>,
    %c0_113 = arith.constant 0 : index
    %c1_114 = arith.constant 1 : index
    %c2_115 = arith.constant 2 : index
    %c0_116 = arith.constant 0 : index
    %80 = vector.load %arg5[%c0_113, %c1_114, %c2_115, %c0_116] : memref<2x10x10x64xf32, #tpu.memory_space<vmem>>, vector<2x8x8x64xf32>
    %81 = vector.shape_cast %80 : vector<2x8x8x64xf32> to vector<128x64xf32>
    %82 = arith.truncf %81 : vector<128x64xf32> to vector<128x64xbf16>
    %c0_117 = arith.constant 0 : index
    %c320_118 = arith.constant 320 : index
    %83 = vector.load %arg6[%c0_117, %c320_118] : memref<128x576xbf16, #tpu.memory_space<vmem>>, vector<128x64xbf16>
    tpu.vector_store %arg6[%c0_117, %c320_118], %82 {strides = array<i32>} : memref<128x576xbf16, #tpu.memory_space<vmem>>, vector<128x64xbf16>,
    %c0_119 = arith.constant 0 : index
    %c2_120 = arith.constant 2 : index
    %c0_121 = arith.constant 0 : index
    %c0_122 = arith.constant 0 : index
    %84 = vector.load %arg5[%c0_119, %c2_120, %c0_121, %c0_122] : memref<2x10x10x64xf32, #tpu.memory_space<vmem>>, vector<2x8x8x64xf32>
    %85 = vector.shape_cast %84 : vector<2x8x8x64xf32> to vector<128x64xf32>
    %86 = arith.truncf %85 : vector<128x64xf32> to vector<128x64xbf16>
    %c0_123 = arith.constant 0 : index
    %c384_124 = arith.constant 384 : index
    %87 = vector.load %arg6[%c0_123, %c384_124] : memref<128x576xbf16, #tpu.memory_space<vmem>>, vector<128x64xbf16>
    tpu.vector_store %arg6[%c0_123, %c384_124], %86 {strides = array<i32>} : memref<128x576xbf16, #tpu.memory_space<vmem>>, vector<128x64xbf16>,
    %c0_125 = arith.constant 0 : index
    %c2_126 = arith.constant 2 : index
    %c1_127 = arith.constant 1 : index
    %c0_128 = arith.constant 0 : index
    %88 = vector.load %arg5[%c0_125, %c2_126, %c1_127, %c0_128] : memref<2x10x10x64xf32, #tpu.memory_space<vmem>>, vector<2x8x8x64xf32>
    %89 = vector.shape_cast %88 : vector<2x8x8x64xf32> to vector<128x64xf32>
    %90 = arith.truncf %89 : vector<128x64xf32> to vector<128x64xbf16>
    %c0_129 = arith.constant 0 : index
    %c448_130 = arith.constant 448 : index
    %91 = vector.load %arg6[%c0_129, %c448_130] : memref<128x576xbf16, #tpu.memory_space<vmem>>, vector<128x64xbf16>
    tpu.vector_store %arg6[%c0_129, %c448_130], %90 {strides = array<i32>} : memref<128x576xbf16, #tpu.memory_space<vmem>>, vector<128x64xbf16>,
    %c0_131 = arith.constant 0 : index
    %c2_132 = arith.constant 2 : index
    %c2_133 = arith.constant 2 : index
    %c0_134 = arith.constant 0 : index
    %92 = vector.load %arg5[%c0_131, %c2_132, %c2_133, %c0_134] : memref<2x10x10x64xf32, #tpu.memory_space<vmem>>, vector<2x8x8x64xf32>
    %93 = vector.shape_cast %92 : vector<2x8x8x64xf32> to vector<128x64xf32>
    %94 = arith.truncf %93 : vector<128x64xf32> to vector<128x64xbf16>
    %c0_135 = arith.constant 0 : index
    %c512_136 = arith.constant 512 : index
    %95 = vector.load %arg6[%c0_135, %c512_136] : memref<128x576xbf16, #tpu.memory_space<vmem>>, vector<128x64xbf16>
    tpu.vector_store %arg6[%c0_135, %c512_136], %94 {strides = array<i32>} : memref<128x576xbf16, #tpu.memory_space<vmem>>, vector<128x64xbf16>,
    %c0_137 = arith.constant 0 : index
    %c0_138 = arith.constant 0 : index
    %96 = vector.load %arg6[%c0_137, %c0_138] : memref<128x576xbf16, #tpu.memory_space<vmem>>, vector<128x576xbf16>
    %c1_139 = arith.constant 1 : index
    %c0_140 = arith.constant 0 : index
    %c0_141 = arith.constant 0 : index
    %97 = vector.load %arg2[%c1_139, %c0_140, %c0_141] : memref<4x576x64xbf16, #tpu.memory_space<vmem>>, vector<1x576x64xbf16>
    %98 = vector.shape_cast %97 : vector<1x576x64xbf16> to vector<576x64xbf16>
    %cst_142 = arith.constant dense<0.000000e+00> : vector<128x64xf32>
    %99 = tpu.matmul %96, %98, %cst_142 {dimension_numbers = #tpu.dot_dimension_numbers<[1], [0], [0], [1], [0, 0, 1, 1], [], []>} : vector<128x576xbf16>, vector<576x64xbf16>, vector<128x64xf32> -> vector<128x64xf32>
    %c1_143 = arith.constant 1 : index
    %c0_144 = arith.constant 0 : index
    %c0_145 = arith.constant 0 : index
    %100 = vector.load %arg3[%c1_143, %c0_144, %c0_145] : memref<4x1x64xf32, #tpu.memory_space<vmem>>, vector<1x1x64xf32>
    %101 = vector.shape_cast %100 : vector<1x1x64xf32> to vector<1x64xf32>
    %102 = vector.broadcast %101 : vector<1x64xf32> to vector<128x64xf32>
    %103 = arith.addf %99, %102 : vector<128x64xf32>
    %104 = arith.addf %9, %103 : vector<128x64xf32>
    %cst_146 = arith.constant 0.000000e+00 : f32
    %105 = vector.broadcast %cst_146 : f32 to vector<128x64xf32>
    %106 = arith.maximumf %104, %105 : vector<128x64xf32>
    %107 = vector.shape_cast %106 : vector<128x64xf32> to vector<2x8x8x64xf32>
    %c0_147 = arith.constant 0 : index
    %c1_148 = arith.constant 1 : index
    %c1_149 = arith.constant 1 : index
    %c0_150 = arith.constant 0 : index
    %108 = vector.load %arg5[%c0_147, %c1_148, %c1_149, %c0_150] : memref<2x10x10x64xf32, #tpu.memory_space<vmem>>, vector<2x8x8x64xf32>
    tpu.vector_store %arg5[%c0_147, %c1_148, %c1_149, %c0_150], %107 {strides = array<i32>} : memref<2x10x10x64xf32, #tpu.memory_space<vmem>>, vector<2x8x8x64xf32>,
    %c0_151 = arith.constant 0 : index
    %c0_152 = arith.constant 0 : index
    %c0_153 = arith.constant 0 : index
    %c0_154 = arith.constant 0 : index
    %109 = vector.load %arg5[%c0_151, %c0_152, %c0_153, %c0_154] : memref<2x10x10x64xf32, #tpu.memory_space<vmem>>, vector<2x8x8x64xf32>
    %110 = vector.shape_cast %109 : vector<2x8x8x64xf32> to vector<128x64xf32>
    %111 = arith.truncf %110 : vector<128x64xf32> to vector<128x64xbf16>
    %c0_155 = arith.constant 0 : index
    %c0_156 = arith.constant 0 : index
    %112 = vector.load %arg6[%c0_155, %c0_156] : memref<128x576xbf16, #tpu.memory_space<vmem>>, vector<128x64xbf16>
    tpu.vector_store %arg6[%c0_155, %c0_156], %111 {strides = array<i32>} : memref<128x576xbf16, #tpu.memory_space<vmem>>, vector<128x64xbf16>,
    %c0_157 = arith.constant 0 : index
    %c0_158 = arith.constant 0 : index
    %c1_159 = arith.constant 1 : index
    %c0_160 = arith.constant 0 : index
    %113 = vector.load %arg5[%c0_157, %c0_158, %c1_159, %c0_160] : memref<2x10x10x64xf32, #tpu.memory_space<vmem>>, vector<2x8x8x64xf32>
    %114 = vector.shape_cast %113 : vector<2x8x8x64xf32> to vector<128x64xf32>
    %115 = arith.truncf %114 : vector<128x64xf32> to vector<128x64xbf16>
    %c0_161 = arith.constant 0 : index
    %c64_162 = arith.constant 64 : index
    %116 = vector.load %arg6[%c0_161, %c64_162] : memref<128x576xbf16, #tpu.memory_space<vmem>>, vector<128x64xbf16>
    tpu.vector_store %arg6[%c0_161, %c64_162], %115 {strides = array<i32>} : memref<128x576xbf16, #tpu.memory_space<vmem>>, vector<128x64xbf16>,
    %c0_163 = arith.constant 0 : index
    %c0_164 = arith.constant 0 : index
    %c2_165 = arith.constant 2 : index
    %c0_166 = arith.constant 0 : index
    %117 = vector.load %arg5[%c0_163, %c0_164, %c2_165, %c0_166] : memref<2x10x10x64xf32, #tpu.memory_space<vmem>>, vector<2x8x8x64xf32>
    %118 = vector.shape_cast %117 : vector<2x8x8x64xf32> to vector<128x64xf32>
    %119 = arith.truncf %118 : vector<128x64xf32> to vector<128x64xbf16>
    %c0_167 = arith.constant 0 : index
    %c128_168 = arith.constant 128 : index
    %120 = vector.load %arg6[%c0_167, %c128_168] : memref<128x576xbf16, #tpu.memory_space<vmem>>, vector<128x64xbf16>
    tpu.vector_store %arg6[%c0_167, %c128_168], %119 {strides = array<i32>} : memref<128x576xbf16, #tpu.memory_space<vmem>>, vector<128x64xbf16>,
    %c0_169 = arith.constant 0 : index
    %c1_170 = arith.constant 1 : index
    %c0_171 = arith.constant 0 : index
    %c0_172 = arith.constant 0 : index
    %121 = vector.load %arg5[%c0_169, %c1_170, %c0_171, %c0_172] : memref<2x10x10x64xf32, #tpu.memory_space<vmem>>, vector<2x8x8x64xf32>
    %122 = vector.shape_cast %121 : vector<2x8x8x64xf32> to vector<128x64xf32>
    %123 = arith.truncf %122 : vector<128x64xf32> to vector<128x64xbf16>
    %c0_173 = arith.constant 0 : index
    %c192_174 = arith.constant 192 : index
    %124 = vector.load %arg6[%c0_173, %c192_174] : memref<128x576xbf16, #tpu.memory_space<vmem>>, vector<128x64xbf16>
    tpu.vector_store %arg6[%c0_173, %c192_174], %123 {strides = array<i32>} : memref<128x576xbf16, #tpu.memory_space<vmem>>, vector<128x64xbf16>,
    %c0_175 = arith.constant 0 : index
    %c1_176 = arith.constant 1 : index
    %c1_177 = arith.constant 1 : index
    %c0_178 = arith.constant 0 : index
    %125 = vector.load %arg5[%c0_175, %c1_176, %c1_177, %c0_178] : memref<2x10x10x64xf32, #tpu.memory_space<vmem>>, vector<2x8x8x64xf32>
    %126 = vector.shape_cast %125 : vector<2x8x8x64xf32> to vector<128x64xf32>
    %127 = arith.truncf %126 : vector<128x64xf32> to vector<128x64xbf16>
    %c0_179 = arith.constant 0 : index
    %c256_180 = arith.constant 256 : index
    %128 = vector.load %arg6[%c0_179, %c256_180] : memref<128x576xbf16, #tpu.memory_space<vmem>>, vector<128x64xbf16>
    tpu.vector_store %arg6[%c0_179, %c256_180], %127 {strides = array<i32>} : memref<128x576xbf16, #tpu.memory_space<vmem>>, vector<128x64xbf16>,
    %c0_181 = arith.constant 0 : index
    %c1_182 = arith.constant 1 : index
    %c2_183 = arith.constant 2 : index
    %c0_184 = arith.constant 0 : index
    %129 = vector.load %arg5[%c0_181, %c1_182, %c2_183, %c0_184] : memref<2x10x10x64xf32, #tpu.memory_space<vmem>>, vector<2x8x8x64xf32>
    %130 = vector.shape_cast %129 : vector<2x8x8x64xf32> to vector<128x64xf32>
    %131 = arith.truncf %130 : vector<128x64xf32> to vector<128x64xbf16>
    %c0_185 = arith.constant 0 : index
    %c320_186 = arith.constant 320 : index
    %132 = vector.load %arg6[%c0_185, %c320_186] : memref<128x576xbf16, #tpu.memory_space<vmem>>, vector<128x64xbf16>
    tpu.vector_store %arg6[%c0_185, %c320_186], %131 {strides = array<i32>} : memref<128x576xbf16, #tpu.memory_space<vmem>>, vector<128x64xbf16>,
    %c0_187 = arith.constant 0 : index
    %c2_188 = arith.constant 2 : index
    %c0_189 = arith.constant 0 : index
    %c0_190 = arith.constant 0 : index
    %133 = vector.load %arg5[%c0_187, %c2_188, %c0_189, %c0_190] : memref<2x10x10x64xf32, #tpu.memory_space<vmem>>, vector<2x8x8x64xf32>
    %134 = vector.shape_cast %133 : vector<2x8x8x64xf32> to vector<128x64xf32>
    %135 = arith.truncf %134 : vector<128x64xf32> to vector<128x64xbf16>
    %c0_191 = arith.constant 0 : index
    %c384_192 = arith.constant 384 : index
    %136 = vector.load %arg6[%c0_191, %c384_192] : memref<128x576xbf16, #tpu.memory_space<vmem>>, vector<128x64xbf16>
    tpu.vector_store %arg6[%c0_191, %c384_192], %135 {strides = array<i32>} : memref<128x576xbf16, #tpu.memory_space<vmem>>, vector<128x64xbf16>,
    %c0_193 = arith.constant 0 : index
    %c2_194 = arith.constant 2 : index
    %c1_195 = arith.constant 1 : index
    %c0_196 = arith.constant 0 : index
    %137 = vector.load %arg5[%c0_193, %c2_194, %c1_195, %c0_196] : memref<2x10x10x64xf32, #tpu.memory_space<vmem>>, vector<2x8x8x64xf32>
    %138 = vector.shape_cast %137 : vector<2x8x8x64xf32> to vector<128x64xf32>
    %139 = arith.truncf %138 : vector<128x64xf32> to vector<128x64xbf16>
    %c0_197 = arith.constant 0 : index
    %c448_198 = arith.constant 448 : index
    %140 = vector.load %arg6[%c0_197, %c448_198] : memref<128x576xbf16, #tpu.memory_space<vmem>>, vector<128x64xbf16>
    tpu.vector_store %arg6[%c0_197, %c448_198], %139 {strides = array<i32>} : memref<128x576xbf16, #tpu.memory_space<vmem>>, vector<128x64xbf16>,
    %c0_199 = arith.constant 0 : index
    %c2_200 = arith.constant 2 : index
    %c2_201 = arith.constant 2 : index
    %c0_202 = arith.constant 0 : index
    %141 = vector.load %arg5[%c0_199, %c2_200, %c2_201, %c0_202] : memref<2x10x10x64xf32, #tpu.memory_space<vmem>>, vector<2x8x8x64xf32>
    %142 = vector.shape_cast %141 : vector<2x8x8x64xf32> to vector<128x64xf32>
    %143 = arith.truncf %142 : vector<128x64xf32> to vector<128x64xbf16>
    %c0_203 = arith.constant 0 : index
    %c512_204 = arith.constant 512 : index
    %144 = vector.load %arg6[%c0_203, %c512_204] : memref<128x576xbf16, #tpu.memory_space<vmem>>, vector<128x64xbf16>
    tpu.vector_store %arg6[%c0_203, %c512_204], %143 {strides = array<i32>} : memref<128x576xbf16, #tpu.memory_space<vmem>>, vector<128x64xbf16>,
    %c0_205 = arith.constant 0 : index
    %c0_206 = arith.constant 0 : index
    %145 = vector.load %arg6[%c0_205, %c0_206] : memref<128x576xbf16, #tpu.memory_space<vmem>>, vector<128x576xbf16>
    %c2_207 = arith.constant 2 : index
    %c0_208 = arith.constant 0 : index
    %c0_209 = arith.constant 0 : index
    %146 = vector.load %arg2[%c2_207, %c0_208, %c0_209] : memref<4x576x64xbf16, #tpu.memory_space<vmem>>, vector<1x576x64xbf16>
    %147 = vector.shape_cast %146 : vector<1x576x64xbf16> to vector<576x64xbf16>
    %cst_210 = arith.constant dense<0.000000e+00> : vector<128x64xf32>
    %148 = tpu.matmul %145, %147, %cst_210 {dimension_numbers = #tpu.dot_dimension_numbers<[1], [0], [0], [1], [0, 0, 1, 1], [], []>} : vector<128x576xbf16>, vector<576x64xbf16>, vector<128x64xf32> -> vector<128x64xf32>
    %c2_211 = arith.constant 2 : index
    %c0_212 = arith.constant 0 : index
    %c0_213 = arith.constant 0 : index
    %149 = vector.load %arg3[%c2_211, %c0_212, %c0_213] : memref<4x1x64xf32, #tpu.memory_space<vmem>>, vector<1x1x64xf32>
    %150 = vector.shape_cast %149 : vector<1x1x64xf32> to vector<1x64xf32>
    %151 = vector.broadcast %150 : vector<1x64xf32> to vector<128x64xf32>
    %152 = arith.addf %148, %151 : vector<128x64xf32>
    %cst_214 = arith.constant 0.000000e+00 : f32
    %153 = vector.broadcast %cst_214 : f32 to vector<128x64xf32>
    %154 = arith.maximumf %152, %153 : vector<128x64xf32>
    %155 = vector.shape_cast %154 : vector<128x64xf32> to vector<2x8x8x64xf32>
    %c0_215 = arith.constant 0 : index
    %c1_216 = arith.constant 1 : index
    %c1_217 = arith.constant 1 : index
    %c0_218 = arith.constant 0 : index
    %156 = vector.load %arg5[%c0_215, %c1_216, %c1_217, %c0_218] : memref<2x10x10x64xf32, #tpu.memory_space<vmem>>, vector<2x8x8x64xf32>
    tpu.vector_store %arg5[%c0_215, %c1_216, %c1_217, %c0_218], %155 {strides = array<i32>} : memref<2x10x10x64xf32, #tpu.memory_space<vmem>>, vector<2x8x8x64xf32>,
    %c0_219 = arith.constant 0 : index
    %c0_220 = arith.constant 0 : index
    %c0_221 = arith.constant 0 : index
    %c0_222 = arith.constant 0 : index
    %157 = vector.load %arg5[%c0_219, %c0_220, %c0_221, %c0_222] : memref<2x10x10x64xf32, #tpu.memory_space<vmem>>, vector<2x8x8x64xf32>
    %158 = vector.shape_cast %157 : vector<2x8x8x64xf32> to vector<128x64xf32>
    %159 = arith.truncf %158 : vector<128x64xf32> to vector<128x64xbf16>
    %c0_223 = arith.constant 0 : index
    %c0_224 = arith.constant 0 : index
    %160 = vector.load %arg6[%c0_223, %c0_224] : memref<128x576xbf16, #tpu.memory_space<vmem>>, vector<128x64xbf16>
    tpu.vector_store %arg6[%c0_223, %c0_224], %159 {strides = array<i32>} : memref<128x576xbf16, #tpu.memory_space<vmem>>, vector<128x64xbf16>,
    %c0_225 = arith.constant 0 : index
    %c0_226 = arith.constant 0 : index
    %c1_227 = arith.constant 1 : index
    %c0_228 = arith.constant 0 : index
    %161 = vector.load %arg5[%c0_225, %c0_226, %c1_227, %c0_228] : memref<2x10x10x64xf32, #tpu.memory_space<vmem>>, vector<2x8x8x64xf32>
    %162 = vector.shape_cast %161 : vector<2x8x8x64xf32> to vector<128x64xf32>
    %163 = arith.truncf %162 : vector<128x64xf32> to vector<128x64xbf16>
    %c0_229 = arith.constant 0 : index
    %c64_230 = arith.constant 64 : index
    %164 = vector.load %arg6[%c0_229, %c64_230] : memref<128x576xbf16, #tpu.memory_space<vmem>>, vector<128x64xbf16>
    tpu.vector_store %arg6[%c0_229, %c64_230], %163 {strides = array<i32>} : memref<128x576xbf16, #tpu.memory_space<vmem>>, vector<128x64xbf16>,
    %c0_231 = arith.constant 0 : index
    %c0_232 = arith.constant 0 : index
    %c2_233 = arith.constant 2 : index
    %c0_234 = arith.constant 0 : index
    %165 = vector.load %arg5[%c0_231, %c0_232, %c2_233, %c0_234] : memref<2x10x10x64xf32, #tpu.memory_space<vmem>>, vector<2x8x8x64xf32>
    %166 = vector.shape_cast %165 : vector<2x8x8x64xf32> to vector<128x64xf32>
    %167 = arith.truncf %166 : vector<128x64xf32> to vector<128x64xbf16>
    %c0_235 = arith.constant 0 : index
    %c128_236 = arith.constant 128 : index
    %168 = vector.load %arg6[%c0_235, %c128_236] : memref<128x576xbf16, #tpu.memory_space<vmem>>, vector<128x64xbf16>
    tpu.vector_store %arg6[%c0_235, %c128_236], %167 {strides = array<i32>} : memref<128x576xbf16, #tpu.memory_space<vmem>>, vector<128x64xbf16>,
    %c0_237 = arith.constant 0 : index
    %c1_238 = arith.constant 1 : index
    %c0_239 = arith.constant 0 : index
    %c0_240 = arith.constant 0 : index
    %169 = vector.load %arg5[%c0_237, %c1_238, %c0_239, %c0_240] : memref<2x10x10x64xf32, #tpu.memory_space<vmem>>, vector<2x8x8x64xf32>
    %170 = vector.shape_cast %169 : vector<2x8x8x64xf32> to vector<128x64xf32>
    %171 = arith.truncf %170 : vector<128x64xf32> to vector<128x64xbf16>
    %c0_241 = arith.constant 0 : index
    %c192_242 = arith.constant 192 : index
    %172 = vector.load %arg6[%c0_241, %c192_242] : memref<128x576xbf16, #tpu.memory_space<vmem>>, vector<128x64xbf16>
    tpu.vector_store %arg6[%c0_241, %c192_242], %171 {strides = array<i32>} : memref<128x576xbf16, #tpu.memory_space<vmem>>, vector<128x64xbf16>,
    %c0_243 = arith.constant 0 : index
    %c1_244 = arith.constant 1 : index
    %c1_245 = arith.constant 1 : index
    %c0_246 = arith.constant 0 : index
    %173 = vector.load %arg5[%c0_243, %c1_244, %c1_245, %c0_246] : memref<2x10x10x64xf32, #tpu.memory_space<vmem>>, vector<2x8x8x64xf32>
    %174 = vector.shape_cast %173 : vector<2x8x8x64xf32> to vector<128x64xf32>
    %175 = arith.truncf %174 : vector<128x64xf32> to vector<128x64xbf16>
    %c0_247 = arith.constant 0 : index
    %c256_248 = arith.constant 256 : index
    %176 = vector.load %arg6[%c0_247, %c256_248] : memref<128x576xbf16, #tpu.memory_space<vmem>>, vector<128x64xbf16>
    tpu.vector_store %arg6[%c0_247, %c256_248], %175 {strides = array<i32>} : memref<128x576xbf16, #tpu.memory_space<vmem>>, vector<128x64xbf16>,
    %c0_249 = arith.constant 0 : index
    %c1_250 = arith.constant 1 : index
    %c2_251 = arith.constant 2 : index
    %c0_252 = arith.constant 0 : index
    %177 = vector.load %arg5[%c0_249, %c1_250, %c2_251, %c0_252] : memref<2x10x10x64xf32, #tpu.memory_space<vmem>>, vector<2x8x8x64xf32>
    %178 = vector.shape_cast %177 : vector<2x8x8x64xf32> to vector<128x64xf32>
    %179 = arith.truncf %178 : vector<128x64xf32> to vector<128x64xbf16>
    %c0_253 = arith.constant 0 : index
    %c320_254 = arith.constant 320 : index
    %180 = vector.load %arg6[%c0_253, %c320_254] : memref<128x576xbf16, #tpu.memory_space<vmem>>, vector<128x64xbf16>
    tpu.vector_store %arg6[%c0_253, %c320_254], %179 {strides = array<i32>} : memref<128x576xbf16, #tpu.memory_space<vmem>>, vector<128x64xbf16>,
    %c0_255 = arith.constant 0 : index
    %c2_256 = arith.constant 2 : index
    %c0_257 = arith.constant 0 : index
    %c0_258 = arith.constant 0 : index
    %181 = vector.load %arg5[%c0_255, %c2_256, %c0_257, %c0_258] : memref<2x10x10x64xf32, #tpu.memory_space<vmem>>, vector<2x8x8x64xf32>
    %182 = vector.shape_cast %181 : vector<2x8x8x64xf32> to vector<128x64xf32>
    %183 = arith.truncf %182 : vector<128x64xf32> to vector<128x64xbf16>
    %c0_259 = arith.constant 0 : index
    %c384_260 = arith.constant 384 : index
    %184 = vector.load %arg6[%c0_259, %c384_260] : memref<128x576xbf16, #tpu.memory_space<vmem>>, vector<128x64xbf16>
    tpu.vector_store %arg6[%c0_259, %c384_260], %183 {strides = array<i32>} : memref<128x576xbf16, #tpu.memory_space<vmem>>, vector<128x64xbf16>,
    %c0_261 = arith.constant 0 : index
    %c2_262 = arith.constant 2 : index
    %c1_263 = arith.constant 1 : index
    %c0_264 = arith.constant 0 : index
    %185 = vector.load %arg5[%c0_261, %c2_262, %c1_263, %c0_264] : memref<2x10x10x64xf32, #tpu.memory_space<vmem>>, vector<2x8x8x64xf32>
    %186 = vector.shape_cast %185 : vector<2x8x8x64xf32> to vector<128x64xf32>
    %187 = arith.truncf %186 : vector<128x64xf32> to vector<128x64xbf16>
    %c0_265 = arith.constant 0 : index
    %c448_266 = arith.constant 448 : index
    %188 = vector.load %arg6[%c0_265, %c448_266] : memref<128x576xbf16, #tpu.memory_space<vmem>>, vector<128x64xbf16>
    tpu.vector_store %arg6[%c0_265, %c448_266], %187 {strides = array<i32>} : memref<128x576xbf16, #tpu.memory_space<vmem>>, vector<128x64xbf16>,
    %c0_267 = arith.constant 0 : index
    %c2_268 = arith.constant 2 : index
    %c2_269 = arith.constant 2 : index
    %c0_270 = arith.constant 0 : index
    %189 = vector.load %arg5[%c0_267, %c2_268, %c2_269, %c0_270] : memref<2x10x10x64xf32, #tpu.memory_space<vmem>>, vector<2x8x8x64xf32>
    %190 = vector.shape_cast %189 : vector<2x8x8x64xf32> to vector<128x64xf32>
    %191 = arith.truncf %190 : vector<128x64xf32> to vector<128x64xbf16>
    %c0_271 = arith.constant 0 : index
    %c512_272 = arith.constant 512 : index
    %192 = vector.load %arg6[%c0_271, %c512_272] : memref<128x576xbf16, #tpu.memory_space<vmem>>, vector<128x64xbf16>
    tpu.vector_store %arg6[%c0_271, %c512_272], %191 {strides = array<i32>} : memref<128x576xbf16, #tpu.memory_space<vmem>>, vector<128x64xbf16>,
    %c0_273 = arith.constant 0 : index
    %c0_274 = arith.constant 0 : index
    %193 = vector.load %arg6[%c0_273, %c0_274] : memref<128x576xbf16, #tpu.memory_space<vmem>>, vector<128x576xbf16>
    %c3 = arith.constant 3 : index
    %c0_275 = arith.constant 0 : index
    %c0_276 = arith.constant 0 : index
    %194 = vector.load %arg2[%c3, %c0_275, %c0_276] : memref<4x576x64xbf16, #tpu.memory_space<vmem>>, vector<1x576x64xbf16>
    %195 = vector.shape_cast %194 : vector<1x576x64xbf16> to vector<576x64xbf16>
    %cst_277 = arith.constant dense<0.000000e+00> : vector<128x64xf32>
    %196 = tpu.matmul %193, %195, %cst_277 {dimension_numbers = #tpu.dot_dimension_numbers<[1], [0], [0], [1], [0, 0, 1, 1], [], []>} : vector<128x576xbf16>, vector<576x64xbf16>, vector<128x64xf32> -> vector<128x64xf32>
    %c3_278 = arith.constant 3 : index
    %c0_279 = arith.constant 0 : index
    %c0_280 = arith.constant 0 : index
    %197 = vector.load %arg3[%c3_278, %c0_279, %c0_280] : memref<4x1x64xf32, #tpu.memory_space<vmem>>, vector<1x1x64xf32>
    %198 = vector.shape_cast %197 : vector<1x1x64xf32> to vector<1x64xf32>
    %199 = vector.broadcast %198 : vector<1x64xf32> to vector<128x64xf32>
    %200 = arith.addf %196, %199 : vector<128x64xf32>
    %201 = arith.addf %106, %200 : vector<128x64xf32>
    %cst_281 = arith.constant 0.000000e+00 : f32
    %202 = vector.broadcast %cst_281 : f32 to vector<128x64xf32>
    %203 = arith.maximumf %201, %202 : vector<128x64xf32>
    %204 = vector.shape_cast %203 : vector<128x64xf32> to vector<2x8x8x64xf32>
    %205 = vector.extract_strided_slice %204 {offsets = [0, 0, 0, 0], sizes = [2, 8, 1, 64], strides = [1, 1, 1, 1]} : vector<2x8x8x64xf32> to vector<2x8x1x64xf32>
    %206 = vector.shape_cast %205 : vector<2x8x1x64xf32> to vector<2x8x64xf32>
    %207 = vector.extract_strided_slice %204 {offsets = [0, 0, 1, 0], sizes = [2, 8, 1, 64], strides = [1, 1, 1, 1]} : vector<2x8x8x64xf32> to vector<2x8x1x64xf32>
    %208 = vector.shape_cast %207 : vector<2x8x1x64xf32> to vector<2x8x64xf32>
    %209 = vector.extract_strided_slice %204 {offsets = [0, 0, 2, 0], sizes = [2, 8, 1, 64], strides = [1, 1, 1, 1]} : vector<2x8x8x64xf32> to vector<2x8x1x64xf32>
    %210 = vector.shape_cast %209 : vector<2x8x1x64xf32> to vector<2x8x64xf32>
    %211 = vector.extract_strided_slice %204 {offsets = [0, 0, 3, 0], sizes = [2, 8, 1, 64], strides = [1, 1, 1, 1]} : vector<2x8x8x64xf32> to vector<2x8x1x64xf32>
    %212 = vector.shape_cast %211 : vector<2x8x1x64xf32> to vector<2x8x64xf32>
    %213 = vector.extract_strided_slice %204 {offsets = [0, 0, 4, 0], sizes = [2, 8, 1, 64], strides = [1, 1, 1, 1]} : vector<2x8x8x64xf32> to vector<2x8x1x64xf32>
    %214 = vector.shape_cast %213 : vector<2x8x1x64xf32> to vector<2x8x64xf32>
    %215 = vector.extract_strided_slice %204 {offsets = [0, 0, 5, 0], sizes = [2, 8, 1, 64], strides = [1, 1, 1, 1]} : vector<2x8x8x64xf32> to vector<2x8x1x64xf32>
    %216 = vector.shape_cast %215 : vector<2x8x1x64xf32> to vector<2x8x64xf32>
    %217 = vector.extract_strided_slice %204 {offsets = [0, 0, 6, 0], sizes = [2, 8, 1, 64], strides = [1, 1, 1, 1]} : vector<2x8x8x64xf32> to vector<2x8x1x64xf32>
    %218 = vector.shape_cast %217 : vector<2x8x1x64xf32> to vector<2x8x64xf32>
    %219 = vector.extract_strided_slice %204 {offsets = [0, 0, 7, 0], sizes = [2, 8, 1, 64], strides = [1, 1, 1, 1]} : vector<2x8x8x64xf32> to vector<2x8x1x64xf32>
    %220 = vector.shape_cast %219 : vector<2x8x1x64xf32> to vector<2x8x64xf32>
    %221 = tpu.concatenate %206, %208, %210, %212, %214, %216, %218, %220 in 2 : vector<2x8x64xf32>, vector<2x8x64xf32>, vector<2x8x64xf32>, vector<2x8x64xf32>, vector<2x8x64xf32>, vector<2x8x64xf32>, vector<2x8x64xf32>, vector<2x8x64xf32> -> vector<2x8x512xf32>
    %c0_282 = arith.constant 0 : index
    %c0_283 = arith.constant 0 : index
    %c0_284 = arith.constant 0 : index
    %222 = vector.load %arg4[%c0_282, %c0_283, %c0_284] : memref<2x8x512xf32, #tpu.memory_space<vmem>>, vector<2x8x512xf32>
    tpu.vector_store %arg4[%c0_282, %c0_283, %c0_284], %221 {strides = array<i32>} : memref<2x8x512xf32, #tpu.memory_space<vmem>>, vector<2x8x512xf32>,
    return
  }
  func.func @transform_0(%arg0: i32) -> (i32, i32, i32, i32) {
    %c0_i32 = arith.constant 0 : i32
    %c0_i32_0 = arith.constant 0 : i32
    %c0_i32_1 = arith.constant 0 : i32
    %c0_i32_2 = arith.constant 0 : i32
    return %arg0, %c0_i32, %c0_i32_0, %c0_i32_1 : i32, i32, i32, i32
  }
  func.func @transform_1(%arg0: i32) -> (i32, i32, i32) {
    %c0_i32 = arith.constant 0 : i32
    %c0_i32_0 = arith.constant 0 : i32
    %c0_i32_1 = arith.constant 0 : i32
    %c0_i32_2 = arith.constant 0 : i32
    return %c0_i32, %c0_i32_0, %c0_i32_1 : i32, i32, i32
  }
  func.func @transform_2(%arg0: i32) -> (i32, i32, i32) {
    %c0_i32 = arith.constant 0 : i32
    %c0_i32_0 = arith.constant 0 : i32
    %c0_i32_1 = arith.constant 0 : i32
    %c0_i32_2 = arith.constant 0 : i32
    return %c0_i32, %c0_i32_0, %c0_i32_1 : i32, i32, i32
  }
  func.func @transform_3(%arg0: i32) -> (i32, i32, i32) {
    %c0_i32 = arith.constant 0 : i32
    %c0_i32_0 = arith.constant 0 : i32
    %c0_i32_1 = arith.constant 0 : i32
    return %arg0, %c0_i32, %c0_i32_0 : i32, i32, i32
  }
}

</mosaic_0001>

<llo_original>
// kernel: tpu_custom_call.1
$region0: #{tpu_custom_call.1}
  #allocation0 [shape = 'u32[]', space=smem, size = 0x4, offset = 0x4, fixed_abs, tag = 'smem constant byte address 0x4 - core index']
  #allocation1 [shape = 'u32[144,128]{1,0:T(1,128)}', space=vmem, size = 0x12000, scoped, tag = 'internal scratch']
  #allocation2 [shape = 'f32[2,10,10,64]{3,2,1,0:T(8,128)}', space=vmem, size = 0x28000, scoped, tag = 'scratch operand']
  #allocation3 [shape = 'bf16[128,576]{1,0:T(16,128)(2,1)}', space=vmem, size = 0x28000, scoped, tag = 'scratch operand']
  %s0 = inlined_call_operand.vmem [shape: f32[2,8,8,64], index: 0, kind: input, shape index: {}]
  %s1 = inlined_call_operand.vmem [shape: bf16[4,576,64], index: 1, kind: input, shape index: {}]
  %s2 = inlined_call_operand.vmem [shape: f32[4,1,64], index: 2, kind: input, shape index: {}]
  %s3 = inlined_call_operand.hbm [shape: f32[2,8,512], index: 3, kind: output, shape index: {}]
  %s4 = sld [smem:[#allocation0]]
  $region22: #{tpu_custom_call.1} parent=0
    _
  %s6 = ssub.s32 1, %s4
  %s7 = scalar_select 0, %s6, %s4
  $region1: #{tpu_custom_call.1} parent=0
    #allocation4 [shape = 'u8[32768]{0}', space=vmem, size = 0x8000, scoped, tag = 'output window, operand 0, single buffered']
    #allocation5 [shape = 's32[1]{0}', space=sflag, size = 0x4, scoped, tag = 'scoped memory for tpu_custom_call.1']
    %8 = vsyncpa [#allocation5], 0
    // Predicated region
    $region2: #{tpu_custom_call.1} parent=1 // pred_check
      _
    $region3: #{tpu_custom_call.1} parent=1 // pred_check_branch
      %10 = sbr.rel (0) target = $region5
    $region4: #{tpu_custom_call.1} parent=1 // pred_region
      _
    $region5: #{tpu_custom_call.1} parent=1 // pred_fallthru
      _
    // Predicated region
    $region6: #{tpu_custom_call.1} parent=1 // pred_check
      _
    $region7: #{tpu_custom_call.1} parent=1 // pred_check_branch
      %12 = sbr.rel (0) target = $region9
    $region8: #{tpu_custom_call.1} parent=1 // pred_region
      _
    $region9: #{tpu_custom_call.1} parent=1 // pred_fallthru
      _
    // Predicated region
    $region10: #{tpu_custom_call.1} parent=1 // pred_check
      _
    $region11: #{tpu_custom_call.1} parent=1 // pred_check_branch
      %14 = sbr.rel (0) target = $region13
    $region12: #{tpu_custom_call.1} parent=1 // pred_region
      _
    $region13: #{tpu_custom_call.1} parent=1 // pred_fallthru
      _
    %vm16 = vcmask 523264
    %17 = vst.msk [vmem:[#allocation2] sm:$0xff] %vm16, 0.0
    %vm18 = vcmask 517120
    %19 = vst.msk [vmem:[#allocation2 + $0x8] sm:$0x3] %vm18, 0.0
    %20 = vst.msk [vmem:[#allocation2 + $0xa0] sm:$0xff] %vm16, 0.0
    %21 = vst.msk [vmem:[#allocation2 + $0xa8] sm:$0x3] %vm18, 0.0
    %s22 = scalar_lea.vmem [#allocation2], 144
    %23 = vst.msk [vmem:[%s22] sm:$0xff] %vm16, 0.0
    %24 = vst.msk [vmem:[%s22 + $0x8] sm:$0x3] %vm18, 0.0
    %25 = vst.msk [vmem:[%s22 + $0xa0] sm:$0xff] %vm16, 0.0
    %26 = vst.msk [vmem:[%s22 + $0xa8] sm:$0x3] %vm18, 0.0
    %vm27 = vcmask 516096
    %28 = vst.msk [vmem:[#allocation2] sm:$0x1] %vm27, 0.0
    %29 = vst.msk [vmem:[#allocation2 + $0x10] sm:$0x1] %vm27, 0.0
    %30 = vst.msk [vmem:[#allocation2 + $0x20] sm:$0x1] %vm27, 0.0
    %31 = vst.msk [vmem:[#allocation2 + $0x30] sm:$0x1] %vm27, 0.0
    %32 = vst.msk [vmem:[#allocation2 + $0x40] sm:$0x1] %vm27, 0.0
    %33 = vst.msk [vmem:[#allocation2 + $0x50] sm:$0x1] %vm27, 0.0
    %34 = vst.msk [vmem:[#allocation2 + $0x60] sm:$0x1] %vm27, 0.0
    %35 = vst.msk [vmem:[#allocation2 + $0x70] sm:$0x1] %vm27, 0.0
    %36 = vst.msk [vmem:[#allocation2 + $0x80] sm:$0x1] %vm27, 0.0
    %37 = vst.msk [vmem:[#allocation2 + $0x90] sm:$0x1] %vm27, 0.0
    %38 = vst.msk [vmem:[#allocation2 + $0xa0] sm:$0x1] %vm27, 0.0
    %39 = vst.msk [vmem:[#allocation2 + $0xb0] sm:$0x1] %vm27, 0.0
    %40 = vst.msk [vmem:[#allocation2 + $0xc0] sm:$0x1] %vm27, 0.0
    %41 = vst.msk [vmem:[#allocation2 + $0xd0] sm:$0x1] %vm27, 0.0
    %42 = vst.msk [vmem:[#allocation2 + $0xe0] sm:$0x1] %vm27, 0.0
    %43 = vst.msk [vmem:[#allocation2 + $0xf0] sm:$0x1] %vm27, 0.0
    %44 = vst.msk [vmem:[#allocation2 + $0x100] sm:$0x1] %vm27, 0.0
    %45 = vst.msk [vmem:[#allocation2 + $0x110] sm:$0x1] %vm27, 0.0
    %46 = vst.msk [vmem:[#allocation2 + $0x120] sm:$0x1] %vm27, 0.0
    %47 = vst.msk [vmem:[#allocation2 + $0x130] sm:$0x1] %vm27, 0.0
    %48 = vst.msk [vmem:[#allocation2 + $0x9] sm:$0x1] %vm27, 0.0
    %49 = vst.msk [vmem:[#allocation2 + $0x19] sm:$0x1] %vm27, 0.0
    %50 = vst.msk [vmem:[#allocation2 + $0x29] sm:$0x1] %vm27, 0.0
    %51 = vst.msk [vmem:[#allocation2 + $0x39] sm:$0x1] %vm27, 0.0
    %52 = vst.msk [vmem:[#allocation2 + $0x49] sm:$0x1] %vm27, 0.0
    %53 = vst.msk [vmem:[#allocation2 + $0x59] sm:$0x1] %vm27, 0.0
    %54 = vst.msk [vmem:[#allocation2 + $0x69] sm:$0x1] %vm27, 0.0
    %55 = vst.msk [vmem:[#allocation2 + $0x79] sm:$0x1] %vm27, 0.0
    %56 = vst.msk [vmem:[#allocation2 + $0x89] sm:$0x1] %vm27, 0.0
    %57 = vst.msk [vmem:[#allocation2 + $0x99] sm:$0x1] %vm27, 0.0
    %58 = vst.msk [vmem:[#allocation2 + $0xa9] sm:$0x1] %vm27, 0.0
    %59 = vst.msk [vmem:[#allocation2 + $0xb9] sm:$0x1] %vm27, 0.0
    %60 = vst.msk [vmem:[#allocation2 + $0xc9] sm:$0x1] %vm27, 0.0
    %61 = vst.msk [vmem:[#allocation2 + $0xd9] sm:$0x1] %vm27, 0.0
    %62 = vst.msk [vmem:[#allocation2 + $0xe9] sm:$0x1] %vm27, 0.0
    %63 = vst.msk [vmem:[#allocation2 + $0xf9] sm:$0x1] %vm27, 0.0
    %64 = vst.msk [vmem:[#allocation2 + $0x109] sm:$0x1] %vm27, 0.0
    %65 = vst.msk [vmem:[#allocation2 + $0x119] sm:$0x1] %vm27, 0.0
    %66 = vst.msk [vmem:[#allocation2 + $0x129] sm:$0x1] %vm27, 0.0
    %67 = vst.msk [vmem:[#allocation2 + $0x139] sm:$0x1] %vm27, 0.0
    %v68 = vld [vmem:[%s0] sm:$0xff]
    %v69 = vld [vmem:[%s0 + $0x8] sm:$0xff]
    %v70 = vld [vmem:[%s0 + $0x10] sm:$0xff]
    %v71 = vld [vmem:[%s0 + $0x18] sm:$0xff]
    %v72 = vld [vmem:[%s0 + $0x20] sm:$0xff]
    %v73 = vld [vmem:[%s0 + $0x28] sm:$0xff]
    %v74 = vld [vmem:[%s0 + $0x30] sm:$0xff]
    %v75 = vld [vmem:[%s0 + $0x38] sm:$0xff]
    %v76 = vld [vmem:[%s0 + $0x40] sm:$0xff]
    %v77 = vld [vmem:[%s0 + $0x48] sm:$0xff]
    %v78 = vld [vmem:[%s0 + $0x50] sm:$0xff]
    %v79 = vld [vmem:[%s0 + $0x58] sm:$0xff]
    %v80 = vld [vmem:[%s0 + $0x60] sm:$0xff]
    %v81 = vld [vmem:[%s0 + $0x68] sm:$0xff]
    %v82 = vld [vmem:[%s0 + $0x70] sm:$0xff]
    %v83 = vld [vmem:[%s0 + $0x78] sm:$0xff]
    %s84 = scalar_lea.vmem [#allocation2], 16
    %85 = vst.msk [vmem:[%s84 + $0x1] sm:$0xff] %vm16, %v68
    %86 = vst.msk [vmem:[%s84 + $0x11] sm:$0xff] %vm16, %v69
    %87 = vst.msk [vmem:[%s84 + $0x21] sm:$0xff] %vm16, %v70
    %88 = vst.msk [vmem:[%s84 + $0x31] sm:$0xff] %vm16, %v71
    %89 = vst.msk [vmem:[%s84 + $0x41] sm:$0xff] %vm16, %v72
    %90 = vst.msk [vmem:[%s84 + $0x51] sm:$0xff] %vm16, %v73
    %91 = vst.msk [vmem:[%s84 + $0x61] sm:$0xff] %vm16, %v74
    %92 = vst.msk [vmem:[%s84 + $0x71] sm:$0xff] %vm16, %v75
    %93 = vst.msk [vmem:[%s84 + $0xa1] sm:$0xff] %vm16, %v76
    %94 = vst.msk [vmem:[%s84 + $0xb1] sm:$0xff] %vm16, %v77
    %95 = vst.msk [vmem:[%s84 + $0xc1] sm:$0xff] %vm16, %v78
    %96 = vst.msk [vmem:[%s84 + $0xd1] sm:$0xff] %vm16, %v79
    %97 = vst.msk [vmem:[%s84 + $0xe1] sm:$0xff] %vm16, %v80
    %98 = vst.msk [vmem:[%s84 + $0xf1] sm:$0xff] %vm16, %v81
    %99 = vst.msk [vmem:[%s84 + $0x101] sm:$0xff] %vm16, %v82
    %100 = vst.msk [vmem:[%s84 + $0x111] sm:$0xff] %vm16, %v83
    %v101 = vld [vmem:[#allocation2] sm:$0xff]
    %v102 = vld [vmem:[#allocation2 + $0x10] sm:$0xff]
    %v103 = vld [vmem:[#allocation2 + $0x20] sm:$0xff]
    %v104 = vld [vmem:[#allocation2 + $0x30] sm:$0xff]
    %v105 = vld [vmem:[#allocation2 + $0x40] sm:$0xff]
    %v106 = vld [vmem:[#allocation2 + $0x50] sm:$0xff]
    %v107 = vld [vmem:[#allocation2 + $0x60] sm:$0xff]
    %v108 = vld [vmem:[#allocation2 + $0x70] sm:$0xff]
    %v109 = vld [vmem:[#allocation2 + $0xa0] sm:$0xff]
    %v110 = vld [vmem:[#allocation2 + $0xb0] sm:$0xff]
    %v111 = vld [vmem:[#allocation2 + $0xc0] sm:$0xff]
    %v112 = vld [vmem:[#allocation2 + $0xd0] sm:$0xff]
    %v113 = vld [vmem:[#allocation2 + $0xe0] sm:$0xff]
    %v114 = vld [vmem:[#allocation2 + $0xf0] sm:$0xff]
    %v115 = vld [vmem:[#allocation2 + $0x100] sm:$0xff]
    %v116 = vld [vmem:[#allocation2 + $0x110] sm:$0xff]
    %v117 = vpack.c.bf16 %v102, %v101
    %v118 = vpack.c.bf16 %v104, %v103
    %v119 = vpack.c.bf16 %v106, %v105
    %v120 = vpack.c.bf16 %v108, %v107
    %v121 = vpack.c.bf16 %v110, %v109
    %v122 = vpack.c.bf16 %v112, %v111
    %v123 = vpack.c.bf16 %v114, %v113
    %v124 = vpack.c.bf16 %v116, %v115
    %125 = vst.msk [vmem:[#allocation3] sm:$0xff] %vm16, %v117
    %126 = vst.msk [vmem:[#allocation3 + $0x28] sm:$0xff] %vm16, %v118
    %127 = vst.msk [vmem:[#allocation3 + $0x50] sm:$0xff] %vm16, %v119
    %128 = vst.msk [vmem:[#allocation3 + $0x78] sm:$0xff] %vm16, %v120
    %129 = vst.msk [vmem:[#allocation3 + $0xa0] sm:$0xff] %vm16, %v121
    %130 = vst.msk [vmem:[#allocation3 + $0xc8] sm:$0xff] %vm16, %v122
    %131 = vst.msk [vmem:[#allocation3 + $0xf0] sm:$0xff] %vm16, %v123
    %132 = vst.msk [vmem:[#allocation3 + $0x118] sm:$0xff] %vm16, %v124
    %v133 = vld [vmem:[#allocation2 + $0x1] sm:$0xff]
    %v134 = vld [vmem:[#allocation2 + $0x11] sm:$0xff]
    %v135 = vld [vmem:[#allocation2 + $0x21] sm:$0xff]
    %v136 = vld [vmem:[#allocation2 + $0x31] sm:$0xff]
    %v137 = vld [vmem:[#allocation2 + $0x41] sm:$0xff]
    %v138 = vld [vmem:[#allocation2 + $0x51] sm:$0xff]
    %v139 = vld [vmem:[#allocation2 + $0x61] sm:$0xff]
    %v140 = vld [vmem:[#allocation2 + $0x71] sm:$0xff]
    %v141 = vld [vmem:[#allocation2 + $0xa1] sm:$0xff]
    %v142 = vld [vmem:[#allocation2 + $0xb1] sm:$0xff]
    %v143 = vld [vmem:[#allocation2 + $0xc1] sm:$0xff]
    %v144 = vld [vmem:[#allocation2 + $0xd1] sm:$0xff]
    %v145 = vld [vmem:[#allocation2 + $0xe1] sm:$0xff]
    %v146 = vld [vmem:[#allocation2 + $0xf1] sm:$0xff]
    %v147 = vld [vmem:[#allocation2 + $0x101] sm:$0xff]
    %v148 = vld [vmem:[#allocation2 + $0x111] sm:$0xff]
    %v149 = vpack.c.bf16 %v134, %v133
    %v150 = vpack.c.bf16 %v136, %v135
    %v151 = vpack.c.bf16 %v138, %v137
    %v152 = vpack.c.bf16 %v140, %v139
    %v153 = vpack.c.bf16 %v142, %v141
    %v154 = vpack.c.bf16 %v144, %v143
    %v155 = vpack.c.bf16 %v146, %v145
    %v156 = vpack.c.bf16 %v148, %v147
    %165 = vrot.lane.b32.xlu0 %v149, 64
    %v166 = vpop.permute.xlu0 %165
    %167 = vrot.lane.b32.xlu0 %v150, 64
    %v168 = vpop.permute.xlu0 %167
    %169 = vrot.lane.b32.xlu0 %v151, 64
    %v170 = vpop.permute.xlu0 %169
    %171 = vrot.lane.b32.xlu0 %v152, 64
    %v172 = vpop.permute.xlu0 %171
    %173 = vrot.lane.b32.xlu0 %v153, 64
    %v174 = vpop.permute.xlu0 %173
    %175 = vrot.lane.b32.xlu0 %v154, 64
    %v176 = vpop.permute.xlu0 %175
    %177 = vrot.lane.b32.xlu0 %v155, 64
    %v178 = vpop.permute.xlu0 %177
    %179 = vrot.lane.b32.xlu0 %v156, 64
    %v180 = vpop.permute.xlu0 %179
    %vm189 = vcmask 1048064
    %190 = vst.msk [vmem:[#allocation3] sm:$0xff] %vm189, %v166
    %191 = vst.msk [vmem:[#allocation3 + $0x28] sm:$0xff] %vm189, %v168
    %192 = vst.msk [vmem:[#allocation3 + $0x50] sm:$0xff] %vm189, %v170
    %193 = vst.msk [vmem:[#allocation3 + $0x78] sm:$0xff] %vm189, %v172
    %194 = vst.msk [vmem:[#allocation3 + $0xa0] sm:$0xff] %vm189, %v174
    %195 = vst.msk [vmem:[#allocation3 + $0xc8] sm:$0xff] %vm189, %v176
    %196 = vst.msk [vmem:[#allocation3 + $0xf0] sm:$0xff] %vm189, %v178
    %197 = vst.msk [vmem:[#allocation3 + $0x118] sm:$0xff] %vm189, %v180
    %v198 = vld [vmem:[#allocation2 + $0x2] sm:$0xff]
    %v199 = vld [vmem:[#allocation2 + $0x12] sm:$0xff]
    %v200 = vld [vmem:[#allocation2 + $0x22] sm:$0xff]
    %v201 = vld [vmem:[#allocation2 + $0x32] sm:$0xff]
    %v202 = vld [vmem:[#allocation2 + $0x42] sm:$0xff]
    %v203 = vld [vmem:[#allocation2 + $0x52] sm:$0xff]
    %v204 = vld [vmem:[#allocation2 + $0x62] sm:$0xff]
    %v205 = vld [vmem:[#allocation2 + $0x72] sm:$0xff]
    %v206 = vld [vmem:[#allocation2 + $0xa2] sm:$0xff]
    %v207 = vld [vmem:[#allocation2 + $0xb2] sm:$0xff]
    %v208 = vld [vmem:[#allocation2 + $0xc2] sm:$0xff]
    %v209 = vld [vmem:[#allocation2 + $0xd2] sm:$0xff]
    %v210 = vld [vmem:[#allocation2 + $0xe2] sm:$0xff]
    %v211 = vld [vmem:[#allocation2 + $0xf2] sm:$0xff]
    %v212 = vld [vmem:[#allocation2 + $0x102] sm:$0xff]
    %v213 = vld [vmem:[#allocation2 + $0x112] sm:$0xff]
    %v214 = vpack.c.bf16 %v199, %v198
    %v215 = vpack.c.bf16 %v201, %v200
    %v216 = vpack.c.bf16 %v203, %v202
    %v217 = vpack.c.bf16 %v205, %v204
    %v218 = vpack.c.bf16 %v207, %v206
    %v219 = vpack.c.bf16 %v209, %v208
    %v220 = vpack.c.bf16 %v211, %v210
    %v221 = vpack.c.bf16 %v213, %v212
    %222 = vst.msk [vmem:[#allocation3 + $0x8] sm:$0xff] %vm16, %v214
    %223 = vst.msk [vmem:[#allocation3 + $0x30] sm:$0xff] %vm16, %v215
    %224 = vst.msk [vmem:[#allocation3 + $0x58] sm:$0xff] %vm16, %v216
    %225 = vst.msk [vmem:[#allocation3 + $0x80] sm:$0xff] %vm16, %v217
    %226 = vst.msk [vmem:[#allocation3 + $0xa8] sm:$0xff] %vm16, %v218
    %227 = vst.msk [vmem:[#allocation3 + $0xd0] sm:$0xff] %vm16, %v219
    %228 = vst.msk [vmem:[#allocation3 + $0xf8] sm:$0xff] %vm16, %v220
    %229 = vst.msk [vmem:[#allocation3 + $0x120] sm:$0xff] %vm16, %v221
    %v230 = vld [vmem:[%s84] sm:$0xff]
    %v231 = vld [vmem:[%s84 + $0x10] sm:$0xff]
    %v232 = vld [vmem:[%s84 + $0x20] sm:$0xff]
    %v233 = vld [vmem:[%s84 + $0x30] sm:$0xff]
    %v234 = vld [vmem:[%s84 + $0x40] sm:$0xff]
    %v235 = vld [vmem:[%s84 + $0x50] sm:$0xff]
    %v236 = vld [vmem:[%s84 + $0x60] sm:$0xff]
    %v237 = vld [vmem:[%s84 + $0x70] sm:$0xff]
    %v238 = vld [vmem:[%s84 + $0xa0] sm:$0xff]
    %v239 = vld [vmem:[%s84 + $0xb0] sm:$0xff]
    %v240 = vld [vmem:[%s84 + $0xc0] sm:$0xff]
    %v241 = vld [vmem:[%s84 + $0xd0] sm:$0xff]
    %v242 = vld [vmem:[%s84 + $0xe0] sm:$0xff]
    %v243 = vld [vmem:[%s84 + $0xf0] sm:$0xff]
    %v244 = vld [vmem:[%s84 + $0x100] sm:$0xff]
    %v245 = vld [vmem:[%s84 + $0x110] sm:$0xff]
    %v246 = vpack.c.bf16 %v231, %v230
    %v247 = vpack.c.bf16 %v233, %v232
    %v248 = vpack.c.bf16 %v235, %v234
    %v249 = vpack.c.bf16 %v237, %v236
    %v250 = vpack.c.bf16 %v239, %v238
    %v251 = vpack.c.bf16 %v241, %v240
    %v252 = vpack.c.bf16 %v243, %v242
    %v253 = vpack.c.bf16 %v245, %v244
    %262 = vrot.lane.b32.xlu0 %v246, 64
    %v263 = vpop.permute.xlu0 %262
    %264 = vrot.lane.b32.xlu0 %v247, 64
    %v265 = vpop.permute.xlu0 %264
    %266 = vrot.lane.b32.xlu0 %v248, 64
    %v267 = vpop.permute.xlu0 %266
    %268 = vrot.lane.b32.xlu0 %v249, 64
    %v269 = vpop.permute.xlu0 %268
    %270 = vrot.lane.b32.xlu0 %v250, 64
    %v271 = vpop.permute.xlu0 %270
    %272 = vrot.lane.b32.xlu0 %v251, 64
    %v273 = vpop.permute.xlu0 %272
    %274 = vrot.lane.b32.xlu0 %v252, 64
    %v275 = vpop.permute.xlu0 %274
    %276 = vrot.lane.b32.xlu0 %v253, 64
    %v277 = vpop.permute.xlu0 %276
    %286 = vst.msk [vmem:[#allocation3 + $0x8] sm:$0xff] %vm189, %v263
    %287 = vst.msk [vmem:[#allocation3 + $0x30] sm:$0xff] %vm189, %v265
    %288 = vst.msk [vmem:[#allocation3 + $0x58] sm:$0xff] %vm189, %v267
    %289 = vst.msk [vmem:[#allocation3 + $0x80] sm:$0xff] %vm189, %v269
    %290 = vst.msk [vmem:[#allocation3 + $0xa8] sm:$0xff] %vm189, %v271
    %291 = vst.msk [vmem:[#allocation3 + $0xd0] sm:$0xff] %vm189, %v273
    %292 = vst.msk [vmem:[#allocation3 + $0xf8] sm:$0xff] %vm189, %v275
    %293 = vst.msk [vmem:[#allocation3 + $0x120] sm:$0xff] %vm189, %v277
    %v294 = vld [vmem:[%s84 + $0x1] sm:$0xff]
    %v295 = vld [vmem:[%s84 + $0x11] sm:$0xff]
    %v296 = vld [vmem:[%s84 + $0x21] sm:$0xff]
    %v297 = vld [vmem:[%s84 + $0x31] sm:$0xff]
    %v298 = vld [vmem:[%s84 + $0x41] sm:$0xff]
    %v299 = vld [vmem:[%s84 + $0x51] sm:$0xff]
    %v300 = vld [vmem:[%s84 + $0x61] sm:$0xff]
    %v301 = vld [vmem:[%s84 + $0x71] sm:$0xff]
    %v302 = vld [vmem:[%s84 + $0xa1] sm:$0xff]
    %v303 = vld [vmem:[%s84 + $0xb1] sm:$0xff]
    %v304 = vld [vmem:[%s84 + $0xc1] sm:$0xff]
    %v305 = vld [vmem:[%s84 + $0xd1] sm:$0xff]
    %v306 = vld [vmem:[%s84 + $0xe1] sm:$0xff]
    %v307 = vld [vmem:[%s84 + $0xf1] sm:$0xff]
    %v308 = vld [vmem:[%s84 + $0x101] sm:$0xff]
    %v309 = vld [vmem:[%s84 + $0x111] sm:$0xff]
    %v310 = vpack.c.bf16 %v295, %v294
    %v311 = vpack.c.bf16 %v297, %v296
    %v312 = vpack.c.bf16 %v299, %v298
    %v313 = vpack.c.bf16 %v301, %v300
    %v314 = vpack.c.bf16 %v303, %v302
    %v315 = vpack.c.bf16 %v305, %v304
    %v316 = vpack.c.bf16 %v307, %v306
    %v317 = vpack.c.bf16 %v309, %v308
    %318 = vst.msk [vmem:[#allocation3 + $0x10] sm:$0xff] %vm16, %v310
    %319 = vst.msk [vmem:[#allocation3 + $0x38] sm:$0xff] %vm16, %v311
    %320 = vst.msk [vmem:[#allocation3 + $0x60] sm:$0xff] %vm16, %v312
    %321 = vst.msk [vmem:[#allocation3 + $0x88] sm:$0xff] %vm16, %v313
    %322 = vst.msk [vmem:[#allocation3 + $0xb0] sm:$0xff] %vm16, %v314
    %323 = vst.msk [vmem:[#allocation3 + $0xd8] sm:$0xff] %vm16, %v315
    %324 = vst.msk [vmem:[#allocation3 + $0x100] sm:$0xff] %vm16, %v316
    %325 = vst.msk [vmem:[#allocation3 + $0x128] sm:$0xff] %vm16, %v317
    %v326 = vld [vmem:[%s84 + $0x2] sm:$0xff]
    %v327 = vld [vmem:[%s84 + $0x12] sm:$0xff]
    %v328 = vld [vmem:[%s84 + $0x22] sm:$0xff]
    %v329 = vld [vmem:[%s84 + $0x32] sm:$0xff]
    %v330 = vld [vmem:[%s84 + $0x42] sm:$0xff]
    %v331 = vld [vmem:[%s84 + $0x52] sm:$0xff]
    %v332 = vld [vmem:[%s84 + $0x62] sm:$0xff]
    %v333 = vld [vmem:[%s84 + $0x72] sm:$0xff]
    %v334 = vld [vmem:[%s84 + $0xa2] sm:$0xff]
    %v335 = vld [vmem:[%s84 + $0xb2] sm:$0xff]
    %v336 = vld [vmem:[%s84 + $0xc2] sm:$0xff]
    %v337 = vld [vmem:[%s84 + $0xd2] sm:$0xff]
    %v338 = vld [vmem:[%s84 + $0xe2] sm:$0xff]
    %v339 = vld [vmem:[%s84 + $0xf2] sm:$0xff]
    %v340 = vld [vmem:[%s84 + $0x102] sm:$0xff]
    %v341 = vld [vmem:[%s84 + $0x112] sm:$0xff]
    %v342 = vpack.c.bf16 %v327, %v326
    %v343 = vpack.c.bf16 %v329, %v328
    %v344 = vpack.c.bf16 %v331, %v330
    %v345 = vpack.c.bf16 %v333, %v332
    %v346 = vpack.c.bf16 %v335, %v334
    %v347 = vpack.c.bf16 %v337, %v336
    %v348 = vpack.c.bf16 %v339, %v338
    %v349 = vpack.c.bf16 %v341, %v340
    %358 = vrot.lane.b32.xlu0 %v342, 64
    %v359 = vpop.permute.xlu0 %358
    %360 = vrot.lane.b32.xlu0 %v343, 64
    %v361 = vpop.permute.xlu0 %360
    %362 = vrot.lane.b32.xlu0 %v344, 64
    %v363 = vpop.permute.xlu0 %362
    %364 = vrot.lane.b32.xlu0 %v345, 64
    %v365 = vpop.permute.xlu0 %364
    %366 = vrot.lane.b32.xlu0 %v346, 64
    %v367 = vpop.permute.xlu0 %366
    %368 = vrot.lane.b32.xlu0 %v347, 64
    %v369 = vpop.permute.xlu0 %368
    %370 = vrot.lane.b32.xlu0 %v348, 64
    %v371 = vpop.permute.xlu0 %370
    %372 = vrot.lane.b32.xlu0 %v349, 64
    %v373 = vpop.permute.xlu0 %372
    %382 = vst.msk [vmem:[#allocation3 + $0x10] sm:$0xff] %vm189, %v359
    %383 = vst.msk [vmem:[#allocation3 + $0x38] sm:$0xff] %vm189, %v361
    %384 = vst.msk [vmem:[#allocation3 + $0x60] sm:$0xff] %vm189, %v363
    %385 = vst.msk [vmem:[#allocation3 + $0x88] sm:$0xff] %vm189, %v365
    %386 = vst.msk [vmem:[#allocation3 + $0xb0] sm:$0xff] %vm189, %v367
    %387 = vst.msk [vmem:[#allocation3 + $0xd8] sm:$0xff] %vm189, %v369
    %388 = vst.msk [vmem:[#allocation3 + $0x100] sm:$0xff] %vm189, %v371
    %389 = vst.msk [vmem:[#allocation3 + $0x128] sm:$0xff] %vm189, %v373
    %s390 = scalar_lea.vmem [#allocation2], 32
    %v391 = vld [vmem:[%s390] sm:$0xff]
    %v392 = vld [vmem:[%s390 + $0x10] sm:$0xff]
    %v393 = vld [vmem:[%s390 + $0x20] sm:$0xff]
    %v394 = vld [vmem:[%s390 + $0x30] sm:$0xff]
    %v395 = vld [vmem:[%s390 + $0x40] sm:$0xff]
    %v396 = vld [vmem:[%s390 + $0x50] sm:$0xff]
    %v397 = vld [vmem:[%s390 + $0x60] sm:$0xff]
    %v398 = vld [vmem:[%s390 + $0x70] sm:$0xff]
    %v399 = vld [vmem:[%s390 + $0xa0] sm:$0xff]
    %v400 = vld [vmem:[%s390 + $0xb0] sm:$0xff]
    %v401 = vld [vmem:[%s390 + $0xc0] sm:$0xff]
    %v402 = vld [vmem:[%s390 + $0xd0] sm:$0xff]
    %v403 = vld [vmem:[%s390 + $0xe0] sm:$0xff]
    %v404 = vld [vmem:[%s390 + $0xf0] sm:$0xff]
    %v405 = vld [vmem:[%s390 + $0x100] sm:$0xff]
    %v406 = vld [vmem:[%s390 + $0x110] sm:$0xff]
    %v407 = vpack.c.bf16 %v392, %v391
    %v408 = vpack.c.bf16 %v394, %v393
    %v409 = vpack.c.bf16 %v396, %v395
    %v410 = vpack.c.bf16 %v398, %v397
    %v411 = vpack.c.bf16 %v400, %v399
    %v412 = vpack.c.bf16 %v402, %v401
    %v413 = vpack.c.bf16 %v404, %v403
    %v414 = vpack.c.bf16 %v406, %v405
    %415 = vst.msk [vmem:[#allocation3 + $0x18] sm:$0xff] %vm16, %v407
    %416 = vst.msk [vmem:[#allocation3 + $0x40] sm:$0xff] %vm16, %v408
    %417 = vst.msk [vmem:[#allocation3 + $0x68] sm:$0xff] %vm16, %v409
    %418 = vst.msk [vmem:[#allocation3 + $0x90] sm:$0xff] %vm16, %v410
    %419 = vst.msk [vmem:[#allocation3 + $0xb8] sm:$0xff] %vm16, %v411
    %420 = vst.msk [vmem:[#allocation3 + $0xe0] sm:$0xff] %vm16, %v412
    %421 = vst.msk [vmem:[#allocation3 + $0x108] sm:$0xff] %vm16, %v413
    %422 = vst.msk [vmem:[#allocation3 + $0x130] sm:$0xff] %vm16, %v414
    %v423 = vld [vmem:[%s390 + $0x1] sm:$0xff]
    %v424 = vld [vmem:[%s390 + $0x11] sm:$0xff]
    %v425 = vld [vmem:[%s390 + $0x21] sm:$0xff]
    %v426 = vld [vmem:[%s390 + $0x31] sm:$0xff]
    %v427 = vld [vmem:[%s390 + $0x41] sm:$0xff]
    %v428 = vld [vmem:[%s390 + $0x51] sm:$0xff]
    %v429 = vld [vmem:[%s390 + $0x61] sm:$0xff]
    %v430 = vld [vmem:[%s390 + $0x71] sm:$0xff]
    %v431 = vld [vmem:[%s390 + $0xa1] sm:$0xff]
    %v432 = vld [vmem:[%s390 + $0xb1] sm:$0xff]
    %v433 = vld [vmem:[%s390 + $0xc1] sm:$0xff]
    %v434 = vld [vmem:[%s390 + $0xd1] sm:$0xff]
    %v435 = vld [vmem:[%s390 + $0xe1] sm:$0xff]
    %v436 = vld [vmem:[%s390 + $0xf1] sm:$0xff]
    %v437 = vld [vmem:[%s390 + $0x101] sm:$0xff]
    %v438 = vld [vmem:[%s390 + $0x111] sm:$0xff]
    %v439 = vpack.c.bf16 %v424, %v423
    %v440 = vpack.c.bf16 %v426, %v425
    %v441 = vpack.c.bf16 %v428, %v427
    %v442 = vpack.c.bf16 %v430, %v429
    %v443 = vpack.c.bf16 %v432, %v431
    %v444 = vpack.c.bf16 %v434, %v433
    %v445 = vpack.c.bf16 %v436, %v435
    %v446 = vpack.c.bf16 %v438, %v437
    %455 = vrot.lane.b32.xlu0 %v439, 64
    %v456 = vpop.permute.xlu0 %455
    %457 = vrot.lane.b32.xlu0 %v440, 64
    %v458 = vpop.permute.xlu0 %457
    %459 = vrot.lane.b32.xlu0 %v441, 64
    %v460 = vpop.permute.xlu0 %459
    %461 = vrot.lane.b32.xlu0 %v442, 64
    %v462 = vpop.permute.xlu0 %461
    %463 = vrot.lane.b32.xlu0 %v443, 64
    %v464 = vpop.permute.xlu0 %463
    %465 = vrot.lane.b32.xlu0 %v444, 64
    %v466 = vpop.permute.xlu0 %465
    %467 = vrot.lane.b32.xlu0 %v445, 64
    %v468 = vpop.permute.xlu0 %467
    %469 = vrot.lane.b32.xlu0 %v446, 64
    %v470 = vpop.permute.xlu0 %469
    %479 = vst.msk [vmem:[#allocation3 + $0x18] sm:$0xff] %vm189, %v456
    %480 = vst.msk [vmem:[#allocation3 + $0x40] sm:$0xff] %vm189, %v458
    %481 = vst.msk [vmem:[#allocation3 + $0x68] sm:$0xff] %vm189, %v460
    %482 = vst.msk [vmem:[#allocation3 + $0x90] sm:$0xff] %vm189, %v462
    %483 = vst.msk [vmem:[#allocation3 + $0xb8] sm:$0xff] %vm189, %v464
    %484 = vst.msk [vmem:[#allocation3 + $0xe0] sm:$0xff] %vm189, %v466
    %485 = vst.msk [vmem:[#allocation3 + $0x108] sm:$0xff] %vm189, %v468
    %486 = vst.msk [vmem:[#allocation3 + $0x130] sm:$0xff] %vm189, %v470
    %v487 = vld [vmem:[%s390 + $0x2] sm:$0xff]
    %v488 = vld [vmem:[%s390 + $0x12] sm:$0xff]
    %v489 = vld [vmem:[%s390 + $0x22] sm:$0xff]
    %v490 = vld [vmem:[%s390 + $0x32] sm:$0xff]
    %v491 = vld [vmem:[%s390 + $0x42] sm:$0xff]
    %v492 = vld [vmem:[%s390 + $0x52] sm:$0xff]
    %v493 = vld [vmem:[%s390 + $0x62] sm:$0xff]
    %v494 = vld [vmem:[%s390 + $0x72] sm:$0xff]
    %v495 = vld [vmem:[%s390 + $0xa2] sm:$0xff]
    %v496 = vld [vmem:[%s390 + $0xb2] sm:$0xff]
    %v497 = vld [vmem:[%s390 + $0xc2] sm:$0xff]
    %v498 = vld [vmem:[%s390 + $0xd2] sm:$0xff]
    %v499 = vld [vmem:[%s390 + $0xe2] sm:$0xff]
    %v500 = vld [vmem:[%s390 + $0xf2] sm:$0xff]
    %v501 = vld [vmem:[%s390 + $0x102] sm:$0xff]
    %v502 = vld [vmem:[%s390 + $0x112] sm:$0xff]
    %v503 = vpack.c.bf16 %v488, %v487
    %v504 = vpack.c.bf16 %v490, %v489
    %v505 = vpack.c.bf16 %v492, %v491
    %v506 = vpack.c.bf16 %v494, %v493
    %v507 = vpack.c.bf16 %v496, %v495
    %v508 = vpack.c.bf16 %v498, %v497
    %v509 = vpack.c.bf16 %v500, %v499
    %v510 = vpack.c.bf16 %v502, %v501
    %511 = vst.msk [vmem:[#allocation3 + $0x20] sm:$0xff] %vm16, %v503
    %512 = vst.msk [vmem:[#allocation3 + $0x48] sm:$0xff] %vm16, %v504
    %513 = vst.msk [vmem:[#allocation3 + $0x70] sm:$0xff] %vm16, %v505
    %514 = vst.msk [vmem:[#allocation3 + $0x98] sm:$0xff] %vm16, %v506
    %515 = vst.msk [vmem:[#allocation3 + $0xc0] sm:$0xff] %vm16, %v507
    %516 = vst.msk [vmem:[#allocation3 + $0xe8] sm:$0xff] %vm16, %v508
    %517 = vst.msk [vmem:[#allocation3 + $0x110] sm:$0xff] %vm16, %v509
    %518 = vst.msk [vmem:[#allocation3 + $0x138] sm:$0xff] %vm16, %v510
    %v519 = vld [vmem:[#allocation3] sm:$0xff]
    %v520 = vld [vmem:[#allocation3 + $0x8] sm:$0xff]
    %v521 = vld [vmem:[#allocation3 + $0x10] sm:$0xff]
    %v522 = vld [vmem:[#allocation3 + $0x18] sm:$0xff]
    %v523 = vld [vmem:[#allocation3 + $0x20] sm:$0xff]
    %v524 = vld [vmem:[#allocation3 + $0x28] sm:$0xff]
    %v525 = vld [vmem:[#allocation3 + $0x30] sm:$0xff]
    %v526 = vld [vmem:[#allocation3 + $0x38] sm:$0xff]
    %v527 = vld [vmem:[#allocation3 + $0x40] sm:$0xff]
    %v528 = vld [vmem:[#allocation3 + $0x48] sm:$0xff]
    %v529 = vld [vmem:[#allocation3 + $0x50] sm:$0xff]
    %v530 = vld [vmem:[#allocation3 + $0x58] sm:$0xff]
    %v531 = vld [vmem:[#allocation3 + $0x60] sm:$0xff]
    %v532 = vld [vmem:[#allocation3 + $0x68] sm:$0xff]
    %v533 = vld [vmem:[#allocation3 + $0x70] sm:$0xff]
    %v534 = vld [vmem:[#allocation3 + $0x78] sm:$0xff]
    %v535 = vld [vmem:[#allocation3 + $0x80] sm:$0xff]
    %v536 = vld [vmem:[#allocation3 + $0x88] sm:$0xff]
    %v537 = vld [vmem:[#allocation3 + $0x90] sm:$0xff]
    %v538 = vld [vmem:[#allocation3 + $0x98] sm:$0xff]
    %v539 = vld [vmem:[#allocation3 + $0xa0] sm:$0xff]
    %v540 = vld [vmem:[#allocation3 + $0xa8] sm:$0xff]
    %v541 = vld [vmem:[#allocation3 + $0xb0] sm:$0xff]
    %v542 = vld [vmem:[#allocation3 + $0xb8] sm:$0xff]
    %v543 = vld [vmem:[#allocation3 + $0xc0] sm:$0xff]
    %v544 = vld [vmem:[#allocation3 + $0xc8] sm:$0xff]
    %v545 = vld [vmem:[#allocation3 + $0xd0] sm:$0xff]
    %v546 = vld [vmem:[#allocation3 + $0xd8] sm:$0xff]
    %v547 = vld [vmem:[#allocation3 + $0xe0] sm:$0xff]
    %v548 = vld [vmem:[#allocation3 + $0xe8] sm:$0xff]
    %v549 = vld [vmem:[#allocation3 + $0xf0] sm:$0xff]
    %v550 = vld [vmem:[#allocation3 + $0xf8] sm:$0xff]
    %v551 = vld [vmem:[#allocation3 + $0x100] sm:$0xff]
    %v552 = vld [vmem:[#allocation3 + $0x108] sm:$0xff]
    %v553 = vld [vmem:[#allocation3 + $0x110] sm:$0xff]
    %v554 = vld [vmem:[#allocation3 + $0x118] sm:$0xff]
    %v555 = vld [vmem:[#allocation3 + $0x120] sm:$0xff]
    %v556 = vld [vmem:[#allocation3 + $0x128] sm:$0xff]
    %v557 = vld [vmem:[#allocation3 + $0x130] sm:$0xff]
    %v558 = vld [vmem:[#allocation3 + $0x138] sm:$0xff]
    %v559 = vld [vmem:[%s1] sm:$0xf]
    %v560 = vld [vmem:[%s1 + $0x4] sm:$0xf]
    %v561 = vld [vmem:[%s1 + $0x8] sm:$0xf]
    %v562 = vld [vmem:[%s1 + $0xc] sm:$0xf]
    %v563 = vld [vmem:[%s1 + $0x10] sm:$0xf]
    %v564 = vld [vmem:[%s1 + $0x14] sm:$0xf]
    %v565 = vld [vmem:[%s1 + $0x18] sm:$0xf]
    %v566 = vld [vmem:[%s1 + $0x1c] sm:$0xf]
    %v567 = vld [vmem:[%s1 + $0x20] sm:$0xf]
    %v568 = vld [vmem:[%s1 + $0x24] sm:$0xf]
    %v569 = vld [vmem:[%s1 + $0x28] sm:$0xf]
    %v570 = vld [vmem:[%s1 + $0x2c] sm:$0xf]
    %v571 = vld [vmem:[%s1 + $0x30] sm:$0xf]
    %v572 = vld [vmem:[%s1 + $0x34] sm:$0xf]
    %v573 = vld [vmem:[%s1 + $0x38] sm:$0xf]
    %v574 = vld [vmem:[%s1 + $0x3c] sm:$0xf]
    %v575 = vld [vmem:[%s1 + $0x40] sm:$0xf]
    %v576 = vld [vmem:[%s1 + $0x44] sm:$0xf]
    %v577 = vld [vmem:[%s1 + $0x48] sm:$0xf]
    %v578 = vld [vmem:[%s1 + $0x4c] sm:$0xf]
    %v579 = vld [vmem:[%s1 + $0x50] sm:$0xf]
    %v580 = vld [vmem:[%s1 + $0x54] sm:$0xf]
    %v581 = vld [vmem:[%s1 + $0x58] sm:$0xf]
    %v582 = vld [vmem:[%s1 + $0x5c] sm:$0xf]
    %v583 = vld [vmem:[%s1 + $0x60] sm:$0xf]
    %v584 = vld [vmem:[%s1 + $0x64] sm:$0xf]
    %v585 = vld [vmem:[%s1 + $0x68] sm:$0xf]
    %v586 = vld [vmem:[%s1 + $0x6c] sm:$0xf]
    %v587 = vld [vmem:[%s1 + $0x70] sm:$0xf]
    %v588 = vld [vmem:[%s1 + $0x74] sm:$0xf]
    %v589 = vld [vmem:[%s1 + $0x78] sm:$0xf]
    %v590 = vld [vmem:[%s1 + $0x7c] sm:$0xf]
    %v591 = vld [vmem:[%s1 + $0x80] sm:$0xf]
    %v592 = vld [vmem:[%s1 + $0x84] sm:$0xf]
    %v593 = vld [vmem:[%s1 + $0x88] sm:$0xf]
    %v594 = vld [vmem:[%s1 + $0x8c] sm:$0xf]
    %v595 = vld [vmem:[%s1 + $0x90] sm:$0xf]
    %v596 = vld [vmem:[%s1 + $0x94] sm:$0xf]
    %v597 = vld [vmem:[%s1 + $0x98] sm:$0xf]
    %v598 = vld [vmem:[%s1 + $0x9c] sm:$0xf]
    %v599 = vld [vmem:[%s1 + $0xa0] sm:$0xf]
    %v600 = vld [vmem:[%s1 + $0xa4] sm:$0xf]
    %v601 = vld [vmem:[%s1 + $0xa8] sm:$0xf]
    %v602 = vld [vmem:[%s1 + $0xac] sm:$0xf]
    %v603 = vld [vmem:[%s1 + $0xb0] sm:$0xf]
    %v604 = vld [vmem:[%s1 + $0xb4] sm:$0xf]
    %v605 = vld [vmem:[%s1 + $0xb8] sm:$0xf]
    %v606 = vld [vmem:[%s1 + $0xbc] sm:$0xf]
    %v607 = vld [vmem:[%s1 + $0xc0] sm:$0xf]
    %v608 = vld [vmem:[%s1 + $0xc4] sm:$0xf]
    %v609 = vld [vmem:[%s1 + $0xc8] sm:$0xf]
    %v610 = vld [vmem:[%s1 + $0xcc] sm:$0xf]
    %v611 = vld [vmem:[%s1 + $0xd0] sm:$0xf]
    %v612 = vld [vmem:[%s1 + $0xd4] sm:$0xf]
    %v613 = vld [vmem:[%s1 + $0xd8] sm:$0xf]
    %v614 = vld [vmem:[%s1 + $0xdc] sm:$0xf]
    %v615 = vld [vmem:[%s1 + $0xe0] sm:$0xf]
    %v616 = vld [vmem:[%s1 + $0xe4] sm:$0xf]
    %v617 = vld [vmem:[%s1 + $0xe8] sm:$0xf]
    %v618 = vld [vmem:[%s1 + $0xec] sm:$0xf]
    %v619 = vld [vmem:[%s1 + $0xf0] sm:$0xf]
    %v620 = vld [vmem:[%s1 + $0xf4] sm:$0xf]
    %v621 = vld [vmem:[%s1 + $0xf8] sm:$0xf]
    %v622 = vld [vmem:[%s1 + $0xfc] sm:$0xf]
    %v623 = vld [vmem:[%s1 + $0x100] sm:$0xf]
    %v624 = vld [vmem:[%s1 + $0x104] sm:$0xf]
    %v625 = vld [vmem:[%s1 + $0x108] sm:$0xf]
    %v626 = vld [vmem:[%s1 + $0x10c] sm:$0xf]
    %v627 = vld [vmem:[%s1 + $0x110] sm:$0xf]
    %v628 = vld [vmem:[%s1 + $0x114] sm:$0xf]
    %v629 = vld [vmem:[%s1 + $0x118] sm:$0xf]
    %v630 = vld [vmem:[%s1 + $0x11c] sm:$0xf]
    %v631 = vld [vmem:[%s2] sm:$0x1]
    %v633 = vlaneseq
    %v634 = vshrl.u32 %v633, 7
    %v635 = vsub.s32 0, %v634
    %v636 = vrot.slane %v631, %v635
    %v710 = vunpack.c.l.b16 %v559
    %v711 = vunpack.c.l.b16 %v560
    %v712 = vunpack.c.l.b16 %v561
    %v713 = vunpack.c.l.b16 %v562
    %v714 = vunpack.c.l.b16 %v563
    %v715 = vunpack.c.l.b16 %v564
    %v716 = vunpack.c.l.b16 %v565
    %v717 = vunpack.c.l.b16 %v566
    %v718 = vunpack.c.l.b16 %v567
    %v719 = vunpack.c.l.b16 %v568
    %v720 = vunpack.c.l.b16 %v569
    %v721 = vunpack.c.l.b16 %v570
    %v722 = vunpack.c.l.b16 %v571
    %v723 = vunpack.c.l.b16 %v572
    %v724 = vunpack.c.l.b16 %v573
    %v725 = vunpack.c.l.b16 %v574
    %v726 = vunpack.c.l.b16 %v575
    %v727 = vunpack.c.l.b16 %v576
    %v728 = vunpack.c.l.b16 %v577
    %v729 = vunpack.c.l.b16 %v578
    %v730 = vunpack.c.l.b16 %v579
    %v731 = vunpack.c.l.b16 %v580
    %v732 = vunpack.c.l.b16 %v581
    %v733 = vunpack.c.l.b16 %v582
    %v734 = vunpack.c.l.b16 %v583
    %v735 = vunpack.c.l.b16 %v584
    %v736 = vunpack.c.l.b16 %v585
    %v737 = vunpack.c.l.b16 %v586
    %v738 = vunpack.c.l.b16 %v587
    %v739 = vunpack.c.l.b16 %v588
    %v740 = vunpack.c.l.b16 %v589
    %v741 = vunpack.c.l.b16 %v590
    %v742 = vunpack.c.l.b16 %v591
    %v743 = vunpack.c.l.b16 %v592
    %v744 = vunpack.c.l.b16 %v593
    %v745 = vunpack.c.l.b16 %v594
    %v746 = vunpack.c.l.b16 %v595
    %v747 = vunpack.c.l.b16 %v596
    %v748 = vunpack.c.l.b16 %v597
    %v749 = vunpack.c.l.b16 %v598
    %v750 = vunpack.c.l.b16 %v599
    %v751 = vunpack.c.l.b16 %v600
    %v752 = vunpack.c.l.b16 %v601
    %v753 = vunpack.c.l.b16 %v602
    %v754 = vunpack.c.l.b16 %v603
    %v755 = vunpack.c.l.b16 %v604
    %v756 = vunpack.c.l.b16 %v605
    %v757 = vunpack.c.l.b16 %v606
    %v758 = vunpack.c.l.b16 %v607
    %v759 = vunpack.c.l.b16 %v608
    %v760 = vunpack.c.l.b16 %v609
    %v761 = vunpack.c.l.b16 %v610
    %v762 = vunpack.c.l.b16 %v611
    %v763 = vunpack.c.l.b16 %v612
    %v764 = vunpack.c.l.b16 %v613
    %v765 = vunpack.c.l.b16 %v614
    %v766 = vunpack.c.l.b16 %v615
    %v767 = vunpack.c.l.b16 %v616
    %v768 = vunpack.c.l.b16 %v617
    %v769 = vunpack.c.l.b16 %v618
    %v770 = vunpack.c.l.b16 %v619
    %v771 = vunpack.c.l.b16 %v620
    %v772 = vunpack.c.l.b16 %v621
    %v773 = vunpack.c.l.b16 %v622
    %v774 = vunpack.c.l.b16 %v623
    %v775 = vunpack.c.l.b16 %v624
    %v776 = vunpack.c.l.b16 %v625
    %v777 = vunpack.c.l.b16 %v626
    %v778 = vunpack.c.l.b16 %v627
    %v779 = vunpack.c.l.b16 %v628
    %v780 = vunpack.c.l.b16 %v629
    %v781 = vunpack.c.l.b16 %v630
    %v782 = vpack.c.b16 %v711, %v710
    %v783 = vpack.c.b16 %v713, %v712
    %v784 = vpack.c.b16 %v715, %v714
    %v785 = vpack.c.b16 %v717, %v716
    %v786 = vpack.c.b16 %v719, %v718
    %v787 = vpack.c.b16 %v721, %v720
    %v788 = vpack.c.b16 %v723, %v722
    %v789 = vpack.c.b16 %v725, %v724
    %v790 = vpack.c.b16 %v727, %v726
    %v791 = vpack.c.b16 %v729, %v728
    %v792 = vpack.c.b16 %v731, %v730
    %v793 = vpack.c.b16 %v733, %v732
    %v794 = vpack.c.b16 %v735, %v734
    %v795 = vpack.c.b16 %v737, %v736
    %v796 = vpack.c.b16 %v739, %v738
    %v797 = vpack.c.b16 %v741, %v740
    %v798 = vpack.c.b16 %v743, %v742
    %v799 = vpack.c.b16 %v745, %v744
    %v800 = vpack.c.b16 %v747, %v746
    %v801 = vpack.c.b16 %v749, %v748
    %v802 = vpack.c.b16 %v751, %v750
    %v803 = vpack.c.b16 %v753, %v752
    %v804 = vpack.c.b16 %v755, %v754
    %v805 = vpack.c.b16 %v757, %v756
    %v806 = vpack.c.b16 %v759, %v758
    %v807 = vpack.c.b16 %v761, %v760
    %v808 = vpack.c.b16 %v763, %v762
    %v809 = vpack.c.b16 %v765, %v764
    %v810 = vpack.c.b16 %v767, %v766
    %v811 = vpack.c.b16 %v769, %v768
    %v812 = vpack.c.b16 %v771, %v770
    %v813 = vpack.c.b16 %v773, %v772
    %v814 = vpack.c.b16 %v775, %v774
    %v815 = vpack.c.b16 %v777, %v776
    %v816 = vpack.c.b16 %v779, %v778
    %v817 = vpack.c.b16 %v781, %v780
    %v855 = vsel %vm16, %v523, 0
    %v858 = vsel %vm16, %v528, 0
    %v861 = vsel %vm16, %v533, 0
    %v864 = vsel %vm16, %v538, 0
    %v867 = vsel %vm16, %v543, 0
    %v870 = vsel %vm16, %v548, 0
    %v873 = vsel %vm16, %v553, 0
    %v876 = vsel %vm16, %v558, 0
    %878 = vmatprep.subr.bf16.mxu0 0
    %879 = vmatpush1.bf16.msra.mxu0 %v782
    %880 = vmatprep.subr.bf16.mxu0 0
    %881 = vmatpush1.bf16.msra.mxu0 %v783
    %882 = vmatprep.subr.bf16.mxu0 0
    %883 = vmatpush1.bf16.msra.mxu0 %v784
    %884 = vmatprep.subr.bf16.mxu0 0
    %885 = vmatpush1.bf16.msra.mxu0 %v785
    %886 = vmatprep.subr.bf16.mxu0 0
    %887 = vmatpush1.bf16.msra.mxu0 %v786
    %888 = vmatprep.subr.bf16.mxu0 0
    %889 = vmatpush1.bf16.msra.mxu0 %v787
    %890 = vmatprep.subr.bf16.mxu0 0
    %891 = vmatpush1.bf16.msra.mxu0 %v788
    %892 = vmatprep.subr.bf16.mxu0 0
    %893 = vmatpush1.bf16.msra.mxu0 %v789
    %894 = vmatprep.subr.bf16.mxu0 0
    %895 = vmatpush1.bf16.msra.mxu0 %v790
    %896 = vmatprep.subr.bf16.mxu0 0
    %897 = vmatpush1.bf16.msra.mxu0 %v791
    %898 = vmatprep.subr.bf16.mxu0 0
    %899 = vmatpush1.bf16.msra.mxu0 %v792
    %900 = vmatprep.subr.bf16.mxu0 0
    %901 = vmatpush1.bf16.msra.mxu0 %v793
    %902 = vmatprep.subr.bf16.mxu0 0
    %903 = vmatpush1.bf16.msra.mxu0 %v794
    %904 = vmatprep.subr.bf16.mxu0 0
    %905 = vmatpush1.bf16.msra.mxu0 %v795
    %906 = vmatprep.subr.bf16.mxu0 0
    %907 = vmatpush1.bf16.msra.mxu0 %v796
    %908 = vmatprep.subr.bf16.mxu0 0
    %909 = vmatpush1.bf16.msra.mxu0 %v797
    %910 = vmatprep.mubr.bf16.mxu0 %v520
    %911 = vmatmul.mubr.bf16.gmra.mrb[0].mxu0 %v519
    %v912 = vpop.f32.mrb[0].mxu0
    %v913 = vadd.f32 %v636, %v912
    %v914 = vpop.f32.mrb[0].mxu0
    %v915 = vpop.f32.mrb[0].mxu0
    %v916 = vadd.f32 %v636, %v915
    %v917 = vpop.f32.mrb[0].mxu0
    %918 = vmatprep.mubr.bf16.mxu0 %v525
    %919 = vmatmul.mubr.bf16.gmra.mrb[0].mxu0 %v524
    %v920 = vpop.f32.mrb[0].mxu0
    %v921 = vadd.f32 %v636, %v920
    %v922 = vpop.f32.mrb[0].mxu0
    %v923 = vpop.f32.mrb[0].mxu0
    %v924 = vadd.f32 %v636, %v923
    %v925 = vpop.f32.mrb[0].mxu0
    %926 = vmatprep.mubr.bf16.mxu0 %v530
    %927 = vmatmul.mubr.bf16.gmra.mrb[0].mxu0 %v529
    %v928 = vpop.f32.mrb[0].mxu0
    %v929 = vadd.f32 %v636, %v928
    %v930 = vpop.f32.mrb[0].mxu0
    %v931 = vpop.f32.mrb[0].mxu0
    %v932 = vadd.f32 %v636, %v931
    %v933 = vpop.f32.mrb[0].mxu0
    %934 = vmatprep.mubr.bf16.mxu0 %v535
    %935 = vmatmul.mubr.bf16.gmra.mrb[0].mxu0 %v534
    %v936 = vpop.f32.mrb[0].mxu0
    %v937 = vadd.f32 %v636, %v936
    %v938 = vpop.f32.mrb[0].mxu0
    %v939 = vpop.f32.mrb[0].mxu0
    %v940 = vadd.f32 %v636, %v939
    %v941 = vpop.f32.mrb[0].mxu0
    %942 = vmatprep.mubr.bf16.mxu0 %v540
    %943 = vmatmul.mubr.bf16.gmra.mrb[0].mxu0 %v539
    %v944 = vpop.f32.mrb[0].mxu0
    %v945 = vadd.f32 %v636, %v944
    %v946 = vpop.f32.mrb[0].mxu0
    %v947 = vpop.f32.mrb[0].mxu0
    %v948 = vadd.f32 %v636, %v947
    %v949 = vpop.f32.mrb[0].mxu0
    %950 = vmatprep.mubr.bf16.mxu0 %v545
    %951 = vmatmul.mubr.bf16.gmra.mrb[0].mxu0 %v544
    %v952 = vpop.f32.mrb[0].mxu0
    %v953 = vadd.f32 %v636, %v952
    %v954 = vpop.f32.mrb[0].mxu0
    %v955 = vpop.f32.mrb[0].mxu0
    %v956 = vadd.f32 %v636, %v955
    %v957 = vpop.f32.mrb[0].mxu0
    %958 = vmatprep.mubr.bf16.mxu0 %v550
    %959 = vmatmul.mubr.bf16.gmra.mrb[0].mxu0 %v549
    %v960 = vpop.f32.mrb[0].mxu0
    %v961 = vadd.f32 %v636, %v960
    %v962 = vpop.f32.mrb[0].mxu0
    %v963 = vpop.f32.mrb[0].mxu0
    %v964 = vadd.f32 %v636, %v963
    %v965 = vpop.f32.mrb[0].mxu0
    %966 = vmatprep.mubr.bf16.mxu0 %v555
    %967 = vmatmul.mubr.bf16.gmra.mrb[0].mxu0 %v554
    %v968 = vpop.f32.mrb[0].mxu0
    %v969 = vadd.f32 %v636, %v968
    %v970 = vpop.f32.mrb[0].mxu0
    %v971 = vpop.f32.mrb[0].mxu0
    %v972 = vadd.f32 %v636, %v971
    %v973 = vpop.f32.mrb[0].mxu0
    %974 = vdwg.mxu0
    %975 = vmatprep.subr.bf16.mxu0 0
    %976 = vmatpush1.bf16.msra.mxu0 %v798
    %977 = vmatprep.subr.bf16.mxu0 0
    %978 = vmatpush1.bf16.msra.mxu0 %v799
    %979 = vmatprep.subr.bf16.mxu0 0
    %980 = vmatpush1.bf16.msra.mxu0 %v800
    %981 = vmatprep.subr.bf16.mxu0 0
    %982 = vmatpush1.bf16.msra.mxu0 %v801
    %983 = vmatprep.subr.bf16.mxu0 0
    %984 = vmatpush1.bf16.msra.mxu0 %v802
    %985 = vmatprep.subr.bf16.mxu0 0
    %986 = vmatpush1.bf16.msra.mxu0 %v803
    %987 = vmatprep.subr.bf16.mxu0 0
    %988 = vmatpush1.bf16.msra.mxu0 %v804
    %989 = vmatprep.subr.bf16.mxu0 0
    %990 = vmatpush1.bf16.msra.mxu0 %v805
    %991 = vmatprep.subr.bf16.mxu0 0
    %992 = vmatpush1.bf16.msra.mxu0 %v806
    %993 = vmatprep.subr.bf16.mxu0 0
    %994 = vmatpush1.bf16.msra.mxu0 %v807
    %995 = vmatprep.subr.bf16.mxu0 0
    %996 = vmatpush1.bf16.msra.mxu0 %v808
    %997 = vmatprep.subr.bf16.mxu0 0
    %998 = vmatpush1.bf16.msra.mxu0 %v809
    %999 = vmatprep.subr.bf16.mxu0 0
    %1000 = vmatpush1.bf16.msra.mxu0 %v810
    %1001 = vmatprep.subr.bf16.mxu0 0
    %1002 = vmatpush1.bf16.msra.mxu0 %v811
    %1003 = vmatprep.subr.bf16.mxu0 0
    %1004 = vmatpush1.bf16.msra.mxu0 %v812
    %1005 = vmatprep.subr.bf16.mxu0 0
    %1006 = vmatpush1.bf16.msra.mxu0 %v813
    %1007 = vmatprep.mubr.bf16.mxu0 %v522
    %1008 = vmatmul.mubr.bf16.gmra.mrb[0].mxu0 %v521
    %v1009 = vpop.f32.mrb[0].mxu0
    %v1010 = vadd.f32 %v913, %v1009
    %v1011 = vpop.f32.mrb[0].mxu0
    %v1012 = vpop.f32.mrb[0].mxu0
    %v1013 = vadd.f32 %v916, %v1012
    %v1014 = vpop.f32.mrb[0].mxu0
    %1015 = vmatprep.mubr.bf16.mxu0 %v527
    %1016 = vmatmul.mubr.bf16.gmra.mrb[0].mxu0 %v526
    %v1017 = vpop.f32.mrb[0].mxu0
    %v1018 = vadd.f32 %v921, %v1017
    %v1019 = vpop.f32.mrb[0].mxu0
    %v1020 = vpop.f32.mrb[0].mxu0
    %v1021 = vadd.f32 %v924, %v1020
    %v1022 = vpop.f32.mrb[0].mxu0
    %1023 = vmatprep.mubr.bf16.mxu0 %v532
    %1024 = vmatmul.mubr.bf16.gmra.mrb[0].mxu0 %v531
    %v1025 = vpop.f32.mrb[0].mxu0
    %v1026 = vadd.f32 %v929, %v1025
    %v1027 = vpop.f32.mrb[0].mxu0
    %v1028 = vpop.f32.mrb[0].mxu0
    %v1029 = vadd.f32 %v932, %v1028
    %v1030 = vpop.f32.mrb[0].mxu0
    %1031 = vmatprep.mubr.bf16.mxu0 %v537
    %1032 = vmatmul.mubr.bf16.gmra.mrb[0].mxu0 %v536
    %v1033 = vpop.f32.mrb[0].mxu0
    %v1034 = vadd.f32 %v937, %v1033
    %v1035 = vpop.f32.mrb[0].mxu0
    %v1036 = vpop.f32.mrb[0].mxu0
    %v1037 = vadd.f32 %v940, %v1036
    %v1038 = vpop.f32.mrb[0].mxu0
    %1039 = vmatprep.mubr.bf16.mxu0 %v542
    %1040 = vmatmul.mubr.bf16.gmra.mrb[0].mxu0 %v541
    %v1041 = vpop.f32.mrb[0].mxu0
    %v1042 = vadd.f32 %v945, %v1041
    %v1043 = vpop.f32.mrb[0].mxu0
    %v1044 = vpop.f32.mrb[0].mxu0
    %v1045 = vadd.f32 %v948, %v1044
    %v1046 = vpop.f32.mrb[0].mxu0
    %1047 = vmatprep.mubr.bf16.mxu0 %v547
    %1048 = vmatmul.mubr.bf16.gmra.mrb[0].mxu0 %v546
    %v1049 = vpop.f32.mrb[0].mxu0
    %v1050 = vadd.f32 %v953, %v1049
    %v1051 = vpop.f32.mrb[0].mxu0
    %v1052 = vpop.f32.mrb[0].mxu0
    %v1053 = vadd.f32 %v956, %v1052
    %v1054 = vpop.f32.mrb[0].mxu0
    %1055 = vmatprep.mubr.bf16.mxu0 %v552
    %1056 = vmatmul.mubr.bf16.gmra.mrb[0].mxu0 %v551
    %v1057 = vpop.f32.mrb[0].mxu0
    %v1058 = vadd.f32 %v961, %v1057
    %v1059 = vpop.f32.mrb[0].mxu0
    %v1060 = vpop.f32.mrb[0].mxu0
    %v1061 = vadd.f32 %v964, %v1060
    %v1062 = vpop.f32.mrb[0].mxu0
    %1063 = vmatprep.mubr.bf16.mxu0 %v557
    %1064 = vmatmul.mubr.bf16.gmra.mrb[0].mxu0 %v556
    %v1065 = vpop.f32.mrb[0].mxu0
    %v1066 = vadd.f32 %v969, %v1065
    %v1067 = vpop.f32.mrb[0].mxu0
    %v1068 = vpop.f32.mrb[0].mxu0
    %v1069 = vadd.f32 %v972, %v1068
    %v1070 = vpop.f32.mrb[0].mxu0
    %1071 = vdwg.mxu0
    %1072 = vmatprep.subr.bf16.mxu0 0
    %1073 = vmatpush1.bf16.msra.mxu0 %v814
    %1074 = vmatprep.subr.bf16.mxu0 0
    %1075 = vmatpush1.bf16.msra.mxu0 %v815
    %1076 = vmatprep.subr.bf16.mxu0 0
    %1077 = vmatpush1.bf16.msra.mxu0 %v816
    %1078 = vmatprep.subr.bf16.mxu0 0
    %1079 = vmatpush1.bf16.msra.mxu0 %v817
    %1080 = vmatprep.subr.bf16.mxu0 0
    %1081 = vmatpush1.bf16.msra.mxu0 0
    %1082 = vmatprep.subr.bf16.mxu0 0
    %1083 = vmatpush1.bf16.msra.mxu0 0
    %1084 = vmatprep.subr.bf16.mxu0 0
    %1085 = vmatpush1.bf16.msra.mxu0 0
    %1086 = vmatprep.subr.bf16.mxu0 0
    %1087 = vmatpush1.bf16.msra.mxu0 0
    %1088 = vmatprep.subr.bf16.mxu0 0
    %1089 = vmatpush1.bf16.msra.mxu0 0
    %1090 = vmatprep.subr.bf16.mxu0 0
    %1091 = vmatpush1.bf16.msra.mxu0 0
    %1092 = vmatprep.subr.bf16.mxu0 0
    %1093 = vmatpush1.bf16.msra.mxu0 0
    %1094 = vmatprep.subr.bf16.mxu0 0
    %1095 = vmatpush1.bf16.msra.mxu0 0
    %1096 = vmatprep.subr.bf16.mxu0 0
    %1097 = vmatpush1.bf16.msra.mxu0 0
    %1098 = vmatprep.subr.bf16.mxu0 0
    %1099 = vmatpush1.bf16.msra.mxu0 0
    %1100 = vmatprep.subr.bf16.mxu0 0
    %1101 = vmatpush1.bf16.msra.mxu0 0
    %1102 = vmatprep.subr.bf16.mxu0 0
    %1103 = vmatpush1.bf16.msra.mxu0 0
    %1104 = vmatprep.mubr.bf16.mxu0 0
    %1105 = vmatmul.mubr.bf16.gmra.mrb[0].mxu0 %v855
    %v1106 = vpop.f32.mrb[0].mxu0
    %v1107 = vadd.f32 %v1010, %v1106
    %v1108 = vpop.f32.mrb[0].mxu0
    %v1109 = vpop.f32.mrb[0].mxu0
    %v1110 = vadd.f32 %v1013, %v1109
    %v1111 = vpop.f32.mrb[0].mxu0
    %1112 = vmatprep.mubr.bf16.mxu0 0
    %1113 = vmatmul.mubr.bf16.gmra.mrb[0].mxu0 %v858
    %v1114 = vpop.f32.mrb[0].mxu0
    %v1115 = vadd.f32 %v1018, %v1114
    %v1116 = vpop.f32.mrb[0].mxu0
    %v1117 = vpop.f32.mrb[0].mxu0
    %v1118 = vadd.f32 %v1021, %v1117
    %v1119 = vpop.f32.mrb[0].mxu0
    %1120 = vmatprep.mubr.bf16.mxu0 0
    %1121 = vmatmul.mubr.bf16.gmra.mrb[0].mxu0 %v861
    %v1122 = vpop.f32.mrb[0].mxu0
    %v1123 = vadd.f32 %v1026, %v1122
    %v1124 = vpop.f32.mrb[0].mxu0
    %v1125 = vpop.f32.mrb[0].mxu0
    %v1126 = vadd.f32 %v1029, %v1125
    %v1127 = vpop.f32.mrb[0].mxu0
    %1128 = vmatprep.mubr.bf16.mxu0 0
    %1129 = vmatmul.mubr.bf16.gmra.mrb[0].mxu0 %v864
    %v1130 = vpop.f32.mrb[0].mxu0
    %v1131 = vadd.f32 %v1034, %v1130
    %v1132 = vpop.f32.mrb[0].mxu0
    %v1133 = vpop.f32.mrb[0].mxu0
    %v1134 = vadd.f32 %v1037, %v1133
    %v1135 = vpop.f32.mrb[0].mxu0
    %1136 = vmatprep.mubr.bf16.mxu0 0
    %1137 = vmatmul.mubr.bf16.gmra.mrb[0].mxu0 %v867
    %v1138 = vpop.f32.mrb[0].mxu0
    %v1139 = vadd.f32 %v1042, %v1138
    %v1140 = vpop.f32.mrb[0].mxu0
    %v1141 = vpop.f32.mrb[0].mxu0
    %v1142 = vadd.f32 %v1045, %v1141
    %v1143 = vpop.f32.mrb[0].mxu0
    %1144 = vmatprep.mubr.bf16.mxu0 0
    %1145 = vmatmul.mubr.bf16.gmra.mrb[0].mxu0 %v870
    %v1146 = vpop.f32.mrb[0].mxu0
    %v1147 = vadd.f32 %v1050, %v1146
    %v1148 = vpop.f32.mrb[0].mxu0
    %v1149 = vpop.f32.mrb[0].mxu0
    %v1150 = vadd.f32 %v1053, %v1149
    %v1151 = vpop.f32.mrb[0].mxu0
    %1152 = vmatprep.mubr.bf16.mxu0 0
    %1153 = vmatmul.mubr.bf16.gmra.mrb[0].mxu0 %v873
    %v1154 = vpop.f32.mrb[0].mxu0
    %v1155 = vadd.f32 %v1058, %v1154
    %v1156 = vpop.f32.mrb[0].mxu0
    %v1157 = vpop.f32.mrb[0].mxu0
    %v1158 = vadd.f32 %v1061, %v1157
    %v1159 = vpop.f32.mrb[0].mxu0
    %1160 = vmatprep.mubr.bf16.mxu0 0
    %1161 = vmatmul.mubr.bf16.gmra.mrb[0].mxu0 %v876
    %v1162 = vpop.f32.mrb[0].mxu0
    %v1163 = vadd.f32 %v1066, %v1162
    %v1164 = vpop.f32.mrb[0].mxu0
    %v1165 = vpop.f32.mrb[0].mxu0
    %v1166 = vadd.f32 %v1069, %v1165
    %v1167 = vpop.f32.mrb[0].mxu0
    %1168 = vdwg.mxu0
    %v1169 = vmax.f32 %v1107, 0.0
    %v1170 = vmax.f32 %v1110, 0.0
    %v1171 = vmax.f32 %v1115, 0.0
    %v1172 = vmax.f32 %v1118, 0.0
    %v1173 = vmax.f32 %v1123, 0.0
    %v1174 = vmax.f32 %v1126, 0.0
    %v1175 = vmax.f32 %v1131, 0.0
    %v1176 = vmax.f32 %v1134, 0.0
    %v1177 = vmax.f32 %v1139, 0.0
    %v1178 = vmax.f32 %v1142, 0.0
    %v1179 = vmax.f32 %v1147, 0.0
    %v1180 = vmax.f32 %v1150, 0.0
    %v1181 = vmax.f32 %v1155, 0.0
    %v1182 = vmax.f32 %v1158, 0.0
    %v1183 = vmax.f32 %v1163, 0.0
    %v1184 = vmax.f32 %v1166, 0.0
    %1185 = vst.msk [vmem:[%s84 + $0x1] sm:$0xff] %vm16, %v1169
    %1186 = vst.msk [vmem:[%s84 + $0x11] sm:$0xff] %vm16, %v1170
    %1187 = vst.msk [vmem:[%s84 + $0x21] sm:$0xff] %vm16, %v1171
    %1188 = vst.msk [vmem:[%s84 + $0x31] sm:$0xff] %vm16, %v1172
    %1189 = vst.msk [vmem:[%s84 + $0x41] sm:$0xff] %vm16, %v1173
    %1190 = vst.msk [vmem:[%s84 + $0x51] sm:$0xff] %vm16, %v1174
    %1191 = vst.msk [vmem:[%s84 + $0x61] sm:$0xff] %vm16, %v1175
    %1192 = vst.msk [vmem:[%s84 + $0x71] sm:$0xff] %vm16, %v1176
    %1193 = vst.msk [vmem:[%s84 + $0xa1] sm:$0xff] %vm16, %v1177
    %1194 = vst.msk [vmem:[%s84 + $0xb1] sm:$0xff] %vm16, %v1178
    %1195 = vst.msk [vmem:[%s84 + $0xc1] sm:$0xff] %vm16, %v1179
    %1196 = vst.msk [vmem:[%s84 + $0xd1] sm:$0xff] %vm16, %v1180
    %1197 = vst.msk [vmem:[%s84 + $0xe1] sm:$0xff] %vm16, %v1181
    %1198 = vst.msk [vmem:[%s84 + $0xf1] sm:$0xff] %vm16, %v1182
    %1199 = vst.msk [vmem:[%s84 + $0x101] sm:$0xff] %vm16, %v1183
    %1200 = vst.msk [vmem:[%s84 + $0x111] sm:$0xff] %vm16, %v1184
    %v1201 = vld [vmem:[#allocation2] sm:$0xff]
    %v1202 = vld [vmem:[#allocation2 + $0x10] sm:$0xff]
    %v1203 = vld [vmem:[#allocation2 + $0x20] sm:$0xff]
    %v1204 = vld [vmem:[#allocation2 + $0x30] sm:$0xff]
    %v1205 = vld [vmem:[#allocation2 + $0x40] sm:$0xff]
    %v1206 = vld [vmem:[#allocation2 + $0x50] sm:$0xff]
    %v1207 = vld [vmem:[#allocation2 + $0x60] sm:$0xff]
    %v1208 = vld [vmem:[#allocation2 + $0x70] sm:$0xff]
    %v1209 = vld [vmem:[#allocation2 + $0xa0] sm:$0xff]
    %v1210 = vld [vmem:[#allocation2 + $0xb0] sm:$0xff]
    %v1211 = vld [vmem:[#allocation2 + $0xc0] sm:$0xff]
    %v1212 = vld [vmem:[#allocation2 + $0xd0] sm:$0xff]
    %v1213 = vld [vmem:[#allocation2 + $0xe0] sm:$0xff]
    %v1214 = vld [vmem:[#allocation2 + $0xf0] sm:$0xff]
    %v1215 = vld [vmem:[#allocation2 + $0x100] sm:$0xff]
    %v1216 = vld [vmem:[#allocation2 + $0x110] sm:$0xff]
    %v1217 = vpack.c.bf16 %v1202, %v1201
    %v1218 = vpack.c.bf16 %v1204, %v1203
    %v1219 = vpack.c.bf16 %v1206, %v1205
    %v1220 = vpack.c.bf16 %v1208, %v1207
    %v1221 = vpack.c.bf16 %v1210, %v1209
    %v1222 = vpack.c.bf16 %v1212, %v1211
    %v1223 = vpack.c.bf16 %v1214, %v1213
    %v1224 = vpack.c.bf16 %v1216, %v1215
    %1225 = vst.msk [vmem:[#allocation3] sm:$0xff] %vm16, %v1217
    %1226 = vst.msk [vmem:[#allocation3 + $0x28] sm:$0xff] %vm16, %v1218
    %1227 = vst.msk [vmem:[#allocation3 + $0x50] sm:$0xff] %vm16, %v1219
    %1228 = vst.msk [vmem:[#allocation3 + $0x78] sm:$0xff] %vm16, %v1220
    %1229 = vst.msk [vmem:[#allocation3 + $0xa0] sm:$0xff] %vm16, %v1221
    %1230 = vst.msk [vmem:[#allocation3 + $0xc8] sm:$0xff] %vm16, %v1222
    %1231 = vst.msk [vmem:[#allocation3 + $0xf0] sm:$0xff] %vm16, %v1223
    %1232 = vst.msk [vmem:[#allocation3 + $0x118] sm:$0xff] %vm16, %v1224
    %v1233 = vld [vmem:[#allocation2 + $0x1] sm:$0xff]
    %v1234 = vld [vmem:[#allocation2 + $0x11] sm:$0xff]
    %v1235 = vld [vmem:[#allocation2 + $0x21] sm:$0xff]
    %v1236 = vld [vmem:[#allocation2 + $0x31] sm:$0xff]
    %v1237 = vld [vmem:[#allocation2 + $0x41] sm:$0xff]
    %v1238 = vld [vmem:[#allocation2 + $0x51] sm:$0xff]
    %v1239 = vld [vmem:[#allocation2 + $0x61] sm:$0xff]
    %v1240 = vld [vmem:[#allocation2 + $0x71] sm:$0xff]
    %v1241 = vld [vmem:[#allocation2 + $0xa1] sm:$0xff]
    %v1242 = vld [vmem:[#allocation2 + $0xb1] sm:$0xff]
    %v1243 = vld [vmem:[#allocation2 + $0xc1] sm:$0xff]
    %v1244 = vld [vmem:[#allocation2 + $0xd1] sm:$0xff]
    %v1245 = vld [vmem:[#allocation2 + $0xe1] sm:$0xff]
    %v1246 = vld [vmem:[#allocation2 + $0xf1] sm:$0xff]
    %v1247 = vld [vmem:[#allocation2 + $0x101] sm:$0xff]
    %v1248 = vld [vmem:[#allocation2 + $0x111] sm:$0xff]
    %v1249 = vpack.c.bf16 %v1234, %v1233
    %v1250 = vpack.c.bf16 %v1236, %v1235
    %v1251 = vpack.c.bf16 %v1238, %v1237
    %v1252 = vpack.c.bf16 %v1240, %v1239
    %v1253 = vpack.c.bf16 %v1242, %v1241
    %v1254 = vpack.c.bf16 %v1244, %v1243
    %v1255 = vpack.c.bf16 %v1246, %v1245
    %v1256 = vpack.c.bf16 %v1248, %v1247
    %1265 = vrot.lane.b32.xlu0 %v1249, 64
    %v1266 = vpop.permute.xlu0 %1265
    %1267 = vrot.lane.b32.xlu0 %v1250, 64
    %v1268 = vpop.permute.xlu0 %1267
    %1269 = vrot.lane.b32.xlu0 %v1251, 64
    %v1270 = vpop.permute.xlu0 %1269
    %1271 = vrot.lane.b32.xlu0 %v1252, 64
    %v1272 = vpop.permute.xlu0 %1271
    %1273 = vrot.lane.b32.xlu0 %v1253, 64
    %v1274 = vpop.permute.xlu0 %1273
    %1275 = vrot.lane.b32.xlu0 %v1254, 64
    %v1276 = vpop.permute.xlu0 %1275
    %1277 = vrot.lane.b32.xlu0 %v1255, 64
    %v1278 = vpop.permute.xlu0 %1277
    %1279 = vrot.lane.b32.xlu0 %v1256, 64
    %v1280 = vpop.permute.xlu0 %1279
    %1289 = vst.msk [vmem:[#allocation3] sm:$0xff] %vm189, %v1266
    %1290 = vst.msk [vmem:[#allocation3 + $0x28] sm:$0xff] %vm189, %v1268
    %1291 = vst.msk [vmem:[#allocation3 + $0x50] sm:$0xff] %vm189, %v1270
    %1292 = vst.msk [vmem:[#allocation3 + $0x78] sm:$0xff] %vm189, %v1272
    %1293 = vst.msk [vmem:[#allocation3 + $0xa0] sm:$0xff] %vm189, %v1274
    %1294 = vst.msk [vmem:[#allocation3 + $0xc8] sm:$0xff] %vm189, %v1276
    %1295 = vst.msk [vmem:[#allocation3 + $0xf0] sm:$0xff] %vm189, %v1278
    %1296 = vst.msk [vmem:[#allocation3 + $0x118] sm:$0xff] %vm189, %v1280
    %v1297 = vld [vmem:[#allocation2 + $0x2] sm:$0xff]
    %v1298 = vld [vmem:[#allocation2 + $0x12] sm:$0xff]
    %v1299 = vld [vmem:[#allocation2 + $0x22] sm:$0xff]
    %v1300 = vld [vmem:[#allocation2 + $0x32] sm:$0xff]
    %v1301 = vld [vmem:[#allocation2 + $0x42] sm:$0xff]
    %v1302 = vld [vmem:[#allocation2 + $0x52] sm:$0xff]
    %v1303 = vld [vmem:[#allocation2 + $0x62] sm:$0xff]
    %v1304 = vld [vmem:[#allocation2 + $0x72] sm:$0xff]
    %v1305 = vld [vmem:[#allocation2 + $0xa2] sm:$0xff]
    %v1306 = vld [vmem:[#allocation2 + $0xb2] sm:$0xff]
    %v1307 = vld [vmem:[#allocation2 + $0xc2] sm:$0xff]
    %v1308 = vld [vmem:[#allocation2 + $0xd2] sm:$0xff]
    %v1309 = vld [vmem:[#allocation2 + $0xe2] sm:$0xff]
    %v1310 = vld [vmem:[#allocation2 + $0xf2] sm:$0xff]
    %v1311 = vld [vmem:[#allocation2 + $0x102] sm:$0xff]
    %v1312 = vld [vmem:[#allocation2 + $0x112] sm:$0xff]
    %v1313 = vpack.c.bf16 %v1298, %v1297
    %v1314 = vpack.c.bf16 %v1300, %v1299
    %v1315 = vpack.c.bf16 %v1302, %v1301
    %v1316 = vpack.c.bf16 %v1304, %v1303
    %v1317 = vpack.c.bf16 %v1306, %v1305
    %v1318 = vpack.c.bf16 %v1308, %v1307
    %v1319 = vpack.c.bf16 %v1310, %v1309
    %v1320 = vpack.c.bf16 %v1312, %v1311
    %1321 = vst.msk [vmem:[#allocation3 + $0x8] sm:$0xff] %vm16, %v1313
    %1322 = vst.msk [vmem:[#allocation3 + $0x30] sm:$0xff] %vm16, %v1314
    %1323 = vst.msk [vmem:[#allocation3 + $0x58] sm:$0xff] %vm16, %v1315
    %1324 = vst.msk [vmem:[#allocation3 + $0x80] sm:$0xff] %vm16, %v1316
    %1325 = vst.msk [vmem:[#allocation3 + $0xa8] sm:$0xff] %vm16, %v1317
    %1326 = vst.msk [vmem:[#allocation3 + $0xd0] sm:$0xff] %vm16, %v1318
    %1327 = vst.msk [vmem:[#allocation3 + $0xf8] sm:$0xff] %vm16, %v1319
    %1328 = vst.msk [vmem:[#allocation3 + $0x120] sm:$0xff] %vm16, %v1320
    %v1329 = vld [vmem:[%s84] sm:$0xff]
    %v1330 = vld [vmem:[%s84 + $0x10] sm:$0xff]
    %v1331 = vld [vmem:[%s84 + $0x20] sm:$0xff]
    %v1332 = vld [vmem:[%s84 + $0x30] sm:$0xff]
    %v1333 = vld [vmem:[%s84 + $0x40] sm:$0xff]
    %v1334 = vld [vmem:[%s84 + $0x50] sm:$0xff]
    %v1335 = vld [vmem:[%s84 + $0x60] sm:$0xff]
    %v1336 = vld [vmem:[%s84 + $0x70] sm:$0xff]
    %v1337 = vld [vmem:[%s84 + $0xa0] sm:$0xff]
    %v1338 = vld [vmem:[%s84 + $0xb0] sm:$0xff]
    %v1339 = vld [vmem:[%s84 + $0xc0] sm:$0xff]
    %v1340 = vld [vmem:[%s84 + $0xd0] sm:$0xff]
    %v1341 = vld [vmem:[%s84 + $0xe0] sm:$0xff]
    %v1342 = vld [vmem:[%s84 + $0xf0] sm:$0xff]
    %v1343 = vld [vmem:[%s84 + $0x100] sm:$0xff]
    %v1344 = vld [vmem:[%s84 + $0x110] sm:$0xff]
    %v1345 = vpack.c.bf16 %v1330, %v1329
    %v1346 = vpack.c.bf16 %v1332, %v1331
    %v1347 = vpack.c.bf16 %v1334, %v1333
    %v1348 = vpack.c.bf16 %v1336, %v1335
    %v1349 = vpack.c.bf16 %v1338, %v1337
    %v1350 = vpack.c.bf16 %v1340, %v1339
    %v1351 = vpack.c.bf16 %v1342, %v1341
    %v1352 = vpack.c.bf16 %v1344, %v1343
    %1361 = vrot.lane.b32.xlu0 %v1345, 64
    %v1362 = vpop.permute.xlu0 %1361
    %1363 = vrot.lane.b32.xlu0 %v1346, 64
    %v1364 = vpop.permute.xlu0 %1363
    %1365 = vrot.lane.b32.xlu0 %v1347, 64
    %v1366 = vpop.permute.xlu0 %1365
    %1367 = vrot.lane.b32.xlu0 %v1348, 64
    %v1368 = vpop.permute.xlu0 %1367
    %1369 = vrot.lane.b32.xlu0 %v1349, 64
    %v1370 = vpop.permute.xlu0 %1369
    %1371 = vrot.lane.b32.xlu0 %v1350, 64
    %v1372 = vpop.permute.xlu0 %1371
    %1373 = vrot.lane.b32.xlu0 %v1351, 64
    %v1374 = vpop.permute.xlu0 %1373
    %1375 = vrot.lane.b32.xlu0 %v1352, 64
    %v1376 = vpop.permute.xlu0 %1375
    %1385 = vst.msk [vmem:[#allocation3 + $0x8] sm:$0xff] %vm189, %v1362
    %1386 = vst.msk [vmem:[#allocation3 + $0x30] sm:$0xff] %vm189, %v1364
    %1387 = vst.msk [vmem:[#allocation3 + $0x58] sm:$0xff] %vm189, %v1366
    %1388 = vst.msk [vmem:[#allocation3 + $0x80] sm:$0xff] %vm189, %v1368
    %1389 = vst.msk [vmem:[#allocation3 + $0xa8] sm:$0xff] %vm189, %v1370
    %1390 = vst.msk [vmem:[#allocation3 + $0xd0] sm:$0xff] %vm189, %v1372
    %1391 = vst.msk [vmem:[#allocation3 + $0xf8] sm:$0xff] %vm189, %v1374
    %1392 = vst.msk [vmem:[#allocation3 + $0x120] sm:$0xff] %vm189, %v1376
    %v1393 = vld [vmem:[%s84 + $0x1] sm:$0xff]
    %v1394 = vld [vmem:[%s84 + $0x11] sm:$0xff]
    %v1395 = vld [vmem:[%s84 + $0x21] sm:$0xff]
    %v1396 = vld [vmem:[%s84 + $0x31] sm:$0xff]
    %v1397 = vld [vmem:[%s84 + $0x41] sm:$0xff]
    %v1398 = vld [vmem:[%s84 + $0x51] sm:$0xff]
    %v1399 = vld [vmem:[%s84 + $0x61] sm:$0xff]
    %v1400 = vld [vmem:[%s84 + $0x71] sm:$0xff]
    %v1401 = vld [vmem:[%s84 + $0xa1] sm:$0xff]
    %v1402 = vld [vmem:[%s84 + $0xb1] sm:$0xff]
    %v1403 = vld [vmem:[%s84 + $0xc1] sm:$0xff]
    %v1404 = vld [vmem:[%s84 + $0xd1] sm:$0xff]
    %v1405 = vld [vmem:[%s84 + $0xe1] sm:$0xff]
    %v1406 = vld [vmem:[%s84 + $0xf1] sm:$0xff]
    %v1407 = vld [vmem:[%s84 + $0x101] sm:$0xff]
    %v1408 = vld [vmem:[%s84 + $0x111] sm:$0xff]
    %v1409 = vpack.c.bf16 %v1394, %v1393
    %v1410 = vpack.c.bf16 %v1396, %v1395
    %v1411 = vpack.c.bf16 %v1398, %v1397
    %v1412 = vpack.c.bf16 %v1400, %v1399
    %v1413 = vpack.c.bf16 %v1402, %v1401
    %v1414 = vpack.c.bf16 %v1404, %v1403
    %v1415 = vpack.c.bf16 %v1406, %v1405
    %v1416 = vpack.c.bf16 %v1408, %v1407
    %1417 = vst.msk [vmem:[#allocation3 + $0x10] sm:$0xff] %vm16, %v1409
    %1418 = vst.msk [vmem:[#allocation3 + $0x38] sm:$0xff] %vm16, %v1410
    %1419 = vst.msk [vmem:[#allocation3 + $0x60] sm:$0xff] %vm16, %v1411
    %1420 = vst.msk [vmem:[#allocation3 + $0x88] sm:$0xff] %vm16, %v1412
    %1421 = vst.msk [vmem:[#allocation3 + $0xb0] sm:$0xff] %vm16, %v1413
    %1422 = vst.msk [vmem:[#allocation3 + $0xd8] sm:$0xff] %vm16, %v1414
    %1423 = vst.msk [vmem:[#allocation3 + $0x100] sm:$0xff] %vm16, %v1415
    %1424 = vst.msk [vmem:[#allocation3 + $0x128] sm:$0xff] %vm16, %v1416
    %v1425 = vld [vmem:[%s84 + $0x2] sm:$0xff]
    %v1426 = vld [vmem:[%s84 + $0x12] sm:$0xff]
    %v1427 = vld [vmem:[%s84 + $0x22] sm:$0xff]
    %v1428 = vld [vmem:[%s84 + $0x32] sm:$0xff]
    %v1429 = vld [vmem:[%s84 + $0x42] sm:$0xff]
    %v1430 = vld [vmem:[%s84 + $0x52] sm:$0xff]
    %v1431 = vld [vmem:[%s84 + $0x62] sm:$0xff]
    %v1432 = vld [vmem:[%s84 + $0x72] sm:$0xff]
    %v1433 = vld [vmem:[%s84 + $0xa2] sm:$0xff]
    %v1434 = vld [vmem:[%s84 + $0xb2] sm:$0xff]
    %v1435 = vld [vmem:[%s84 + $0xc2] sm:$0xff]
    %v1436 = vld [vmem:[%s84 + $0xd2] sm:$0xff]
    %v1437 = vld [vmem:[%s84 + $0xe2] sm:$0xff]
    %v1438 = vld [vmem:[%s84 + $0xf2] sm:$0xff]
    %v1439 = vld [vmem:[%s84 + $0x102] sm:$0xff]
    %v1440 = vld [vmem:[%s84 + $0x112] sm:$0xff]
    %v1441 = vpack.c.bf16 %v1426, %v1425
    %v1442 = vpack.c.bf16 %v1428, %v1427
    %v1443 = vpack.c.bf16 %v1430, %v1429
    %v1444 = vpack.c.bf16 %v1432, %v1431
    %v1445 = vpack.c.bf16 %v1434, %v1433
    %v1446 = vpack.c.bf16 %v1436, %v1435
    %v1447 = vpack.c.bf16 %v1438, %v1437
    %v1448 = vpack.c.bf16 %v1440, %v1439
    %1457 = vrot.lane.b32.xlu0 %v1441, 64
    %v1458 = vpop.permute.xlu0 %1457
    %1459 = vrot.lane.b32.xlu0 %v1442, 64
    %v1460 = vpop.permute.xlu0 %1459
    %1461 = vrot.lane.b32.xlu0 %v1443, 64
    %v1462 = vpop.permute.xlu0 %1461
    %1463 = vrot.lane.b32.xlu0 %v1444, 64
    %v1464 = vpop.permute.xlu0 %1463
    %1465 = vrot.lane.b32.xlu0 %v1445, 64
    %v1466 = vpop.permute.xlu0 %1465
    %1467 = vrot.lane.b32.xlu0 %v1446, 64
    %v1468 = vpop.permute.xlu0 %1467
    %1469 = vrot.lane.b32.xlu0 %v1447, 64
    %v1470 = vpop.permute.xlu0 %1469
    %1471 = vrot.lane.b32.xlu0 %v1448, 64
    %v1472 = vpop.permute.xlu0 %1471
    %1481 = vst.msk [vmem:[#allocation3 + $0x10] sm:$0xff] %vm189, %v1458
    %1482 = vst.msk [vmem:[#allocation3 + $0x38] sm:$0xff] %vm189, %v1460
    %1483 = vst.msk [vmem:[#allocation3 + $0x60] sm:$0xff] %vm189, %v1462
    %1484 = vst.msk [vmem:[#allocation3 + $0x88] sm:$0xff] %vm189, %v1464
    %1485 = vst.msk [vmem:[#allocation3 + $0xb0] sm:$0xff] %vm189, %v1466
    %1486 = vst.msk [vmem:[#allocation3 + $0xd8] sm:$0xff] %vm189, %v1468
    %1487 = vst.msk [vmem:[#allocation3 + $0x100] sm:$0xff] %vm189, %v1470
    %1488 = vst.msk [vmem:[#allocation3 + $0x128] sm:$0xff] %vm189, %v1472
    %v1489 = vld [vmem:[%s390] sm:$0xff]
    %v1490 = vld [vmem:[%s390 + $0x10] sm:$0xff]
    %v1491 = vld [vmem:[%s390 + $0x20] sm:$0xff]
    %v1492 = vld [vmem:[%s390 + $0x30] sm:$0xff]
    %v1493 = vld [vmem:[%s390 + $0x40] sm:$0xff]
    %v1494 = vld [vmem:[%s390 + $0x50] sm:$0xff]
    %v1495 = vld [vmem:[%s390 + $0x60] sm:$0xff]
    %v1496 = vld [vmem:[%s390 + $0x70] sm:$0xff]
    %v1497 = vld [vmem:[%s390 + $0xa0] sm:$0xff]
    %v1498 = vld [vmem:[%s390 + $0xb0] sm:$0xff]
    %v1499 = vld [vmem:[%s390 + $0xc0] sm:$0xff]
    %v1500 = vld [vmem:[%s390 + $0xd0] sm:$0xff]
    %v1501 = vld [vmem:[%s390 + $0xe0] sm:$0xff]
    %v1502 = vld [vmem:[%s390 + $0xf0] sm:$0xff]
    %v1503 = vld [vmem:[%s390 + $0x100] sm:$0xff]
    %v1504 = vld [vmem:[%s390 + $0x110] sm:$0xff]
    %v1505 = vpack.c.bf16 %v1490, %v1489
    %v1506 = vpack.c.bf16 %v1492, %v1491
    %v1507 = vpack.c.bf16 %v1494, %v1493
    %v1508 = vpack.c.bf16 %v1496, %v1495
    %v1509 = vpack.c.bf16 %v1498, %v1497
    %v1510 = vpack.c.bf16 %v1500, %v1499
    %v1511 = vpack.c.bf16 %v1502, %v1501
    %v1512 = vpack.c.bf16 %v1504, %v1503
    %1513 = vst.msk [vmem:[#allocation3 + $0x18] sm:$0xff] %vm16, %v1505
    %1514 = vst.msk [vmem:[#allocation3 + $0x40] sm:$0xff] %vm16, %v1506
    %1515 = vst.msk [vmem:[#allocation3 + $0x68] sm:$0xff] %vm16, %v1507
    %1516 = vst.msk [vmem:[#allocation3 + $0x90] sm:$0xff] %vm16, %v1508
    %1517 = vst.msk [vmem:[#allocation3 + $0xb8] sm:$0xff] %vm16, %v1509
    %1518 = vst.msk [vmem:[#allocation3 + $0xe0] sm:$0xff] %vm16, %v1510
    %1519 = vst.msk [vmem:[#allocation3 + $0x108] sm:$0xff] %vm16, %v1511
    %1520 = vst.msk [vmem:[#allocation3 + $0x130] sm:$0xff] %vm16, %v1512
    %v1521 = vld [vmem:[%s390 + $0x1] sm:$0xff]
    %v1522 = vld [vmem:[%s390 + $0x11] sm:$0xff]
    %v1523 = vld [vmem:[%s390 + $0x21] sm:$0xff]
    %v1524 = vld [vmem:[%s390 + $0x31] sm:$0xff]
    %v1525 = vld [vmem:[%s390 + $0x41] sm:$0xff]
    %v1526 = vld [vmem:[%s390 + $0x51] sm:$0xff]
    %v1527 = vld [vmem:[%s390 + $0x61] sm:$0xff]
    %v1528 = vld [vmem:[%s390 + $0x71] sm:$0xff]
    %v1529 = vld [vmem:[%s390 + $0xa1] sm:$0xff]
    %v1530 = vld [vmem:[%s390 + $0xb1] sm:$0xff]
    %v1531 = vld [vmem:[%s390 + $0xc1] sm:$0xff]
    %v1532 = vld [vmem:[%s390 + $0xd1] sm:$0xff]
    %v1533 = vld [vmem:[%s390 + $0xe1] sm:$0xff]
    %v1534 = vld [vmem:[%s390 + $0xf1] sm:$0xff]
    %v1535 = vld [vmem:[%s390 + $0x101] sm:$0xff]
    %v1536 = vld [vmem:[%s390 + $0x111] sm:$0xff]
    %v1537 = vpack.c.bf16 %v1522, %v1521
    %v1538 = vpack.c.bf16 %v1524, %v1523
    %v1539 = vpack.c.bf16 %v1526, %v1525
    %v1540 = vpack.c.bf16 %v1528, %v1527
    %v1541 = vpack.c.bf16 %v1530, %v1529
    %v1542 = vpack.c.bf16 %v1532, %v1531
    %v1543 = vpack.c.bf16 %v1534, %v1533
    %v1544 = vpack.c.bf16 %v1536, %v1535
    %1553 = vrot.lane.b32.xlu0 %v1537, 64
    %v1554 = vpop.permute.xlu0 %1553
    %1555 = vrot.lane.b32.xlu0 %v1538, 64
    %v1556 = vpop.permute.xlu0 %1555
    %1557 = vrot.lane.b32.xlu0 %v1539, 64
    %v1558 = vpop.permute.xlu0 %1557
    %1559 = vrot.lane.b32.xlu0 %v1540, 64
    %v1560 = vpop.permute.xlu0 %1559
    %1561 = vrot.lane.b32.xlu0 %v1541, 64
    %v1562 = vpop.permute.xlu0 %1561
    %1563 = vrot.lane.b32.xlu0 %v1542, 64
    %v1564 = vpop.permute.xlu0 %1563
    %1565 = vrot.lane.b32.xlu0 %v1543, 64
    %v1566 = vpop.permute.xlu0 %1565
    %1567 = vrot.lane.b32.xlu0 %v1544, 64
    %v1568 = vpop.permute.xlu0 %1567
    %1577 = vst.msk [vmem:[#allocation3 + $0x18] sm:$0xff] %vm189, %v1554
    %1578 = vst.msk [vmem:[#allocation3 + $0x40] sm:$0xff] %vm189, %v1556
    %1579 = vst.msk [vmem:[#allocation3 + $0x68] sm:$0xff] %vm189, %v1558
    %1580 = vst.msk [vmem:[#allocation3 + $0x90] sm:$0xff] %vm189, %v1560
    %1581 = vst.msk [vmem:[#allocation3 + $0xb8] sm:$0xff] %vm189, %v1562
    %1582 = vst.msk [vmem:[#allocation3 + $0xe0] sm:$0xff] %vm189, %v1564
    %1583 = vst.msk [vmem:[#allocation3 + $0x108] sm:$0xff] %vm189, %v1566
    %1584 = vst.msk [vmem:[#allocation3 + $0x130] sm:$0xff] %vm189, %v1568
    %v1585 = vld [vmem:[%s390 + $0x2] sm:$0xff]
    %v1586 = vld [vmem:[%s390 + $0x12] sm:$0xff]
    %v1587 = vld [vmem:[%s390 + $0x22] sm:$0xff]
    %v1588 = vld [vmem:[%s390 + $0x32] sm:$0xff]
    %v1589 = vld [vmem:[%s390 + $0x42] sm:$0xff]
    %v1590 = vld [vmem:[%s390 + $0x52] sm:$0xff]
    %v1591 = vld [vmem:[%s390 + $0x62] sm:$0xff]
    %v1592 = vld [vmem:[%s390 + $0x72] sm:$0xff]
    %v1593 = vld [vmem:[%s390 + $0xa2] sm:$0xff]
    %v1594 = vld [vmem:[%s390 + $0xb2] sm:$0xff]
    %v1595 = vld [vmem:[%s390 + $0xc2] sm:$0xff]
    %v1596 = vld [vmem:[%s390 + $0xd2] sm:$0xff]
    %v1597 = vld [vmem:[%s390 + $0xe2] sm:$0xff]
    %v1598 = vld [vmem:[%s390 + $0xf2] sm:$0xff]
    %v1599 = vld [vmem:[%s390 + $0x102] sm:$0xff]
    %v1600 = vld [vmem:[%s390 + $0x112] sm:$0xff]
    %v1601 = vpack.c.bf16 %v1586, %v1585
    %v1602 = vpack.c.bf16 %v1588, %v1587
    %v1603 = vpack.c.bf16 %v1590, %v1589
    %v1604 = vpack.c.bf16 %v1592, %v1591
    %v1605 = vpack.c.bf16 %v1594, %v1593
    %v1606 = vpack.c.bf16 %v1596, %v1595
    %v1607 = vpack.c.bf16 %v1598, %v1597
    %v1608 = vpack.c.bf16 %v1600, %v1599
    %1609 = vst.msk [vmem:[#allocation3 + $0x20] sm:$0xff] %vm16, %v1601
    %1610 = vst.msk [vmem:[#allocation3 + $0x48] sm:$0xff] %vm16, %v1602
    %1611 = vst.msk [vmem:[#allocation3 + $0x70] sm:$0xff] %vm16, %v1603
    %1612 = vst.msk [vmem:[#allocation3 + $0x98] sm:$0xff] %vm16, %v1604
    %1613 = vst.msk [vmem:[#allocation3 + $0xc0] sm:$0xff] %vm16, %v1605
    %1614 = vst.msk [vmem:[#allocation3 + $0xe8] sm:$0xff] %vm16, %v1606
    %1615 = vst.msk [vmem:[#allocation3 + $0x110] sm:$0xff] %vm16, %v1607
    %1616 = vst.msk [vmem:[#allocation3 + $0x138] sm:$0xff] %vm16, %v1608
    %v1617 = vld [vmem:[#allocation3] sm:$0xff]
    %v1618 = vld [vmem:[#allocation3 + $0x8] sm:$0xff]
    %v1619 = vld [vmem:[#allocation3 + $0x10] sm:$0xff]
    %v1620 = vld [vmem:[#allocation3 + $0x18] sm:$0xff]
    %v1621 = vld [vmem:[#allocation3 + $0x20] sm:$0xff]
    %v1622 = vld [vmem:[#allocation3 + $0x28] sm:$0xff]
    %v1623 = vld [vmem:[#allocation3 + $0x30] sm:$0xff]
    %v1624 = vld [vmem:[#allocation3 + $0x38] sm:$0xff]
    %v1625 = vld [vmem:[#allocation3 + $0x40] sm:$0xff]
    %v1626 = vld [vmem:[#allocation3 + $0x48] sm:$0xff]
    %v1627 = vld [vmem:[#allocation3 + $0x50] sm:$0xff]
    %v1628 = vld [vmem:[#allocation3 + $0x58] sm:$0xff]
    %v1629 = vld [vmem:[#allocation3 + $0x60] sm:$0xff]
    %v1630 = vld [vmem:[#allocation3 + $0x68] sm:$0xff]
    %v1631 = vld [vmem:[#allocation3 + $0x70] sm:$0xff]
    %v1632 = vld [vmem:[#allocation3 + $0x78] sm:$0xff]
    %v1633 = vld [vmem:[#allocation3 + $0x80] sm:$0xff]
    %v1634 = vld [vmem:[#allocation3 + $0x88] sm:$0xff]
    %v1635 = vld [vmem:[#allocation3 + $0x90] sm:$0xff]
    %v1636 = vld [vmem:[#allocation3 + $0x98] sm:$0xff]
    %v1637 = vld [vmem:[#allocation3 + $0xa0] sm:$0xff]
    %v1638 = vld [vmem:[#allocation3 + $0xa8] sm:$0xff]
    %v1639 = vld [vmem:[#allocation3 + $0xb0] sm:$0xff]
    %v1640 = vld [vmem:[#allocation3 + $0xb8] sm:$0xff]
    %v1641 = vld [vmem:[#allocation3 + $0xc0] sm:$0xff]
    %v1642 = vld [vmem:[#allocation3 + $0xc8] sm:$0xff]
    %v1643 = vld [vmem:[#allocation3 + $0xd0] sm:$0xff]
    %v1644 = vld [vmem:[#allocation3 + $0xd8] sm:$0xff]
    %v1645 = vld [vmem:[#allocation3 + $0xe0] sm:$0xff]
    %v1646 = vld [vmem:[#allocation3 + $0xe8] sm:$0xff]
    %v1647 = vld [vmem:[#allocation3 + $0xf0] sm:$0xff]
    %v1648 = vld [vmem:[#allocation3 + $0xf8] sm:$0xff]
    %v1649 = vld [vmem:[#allocation3 + $0x100] sm:$0xff]
    %v1650 = vld [vmem:[#allocation3 + $0x108] sm:$0xff]
    %v1651 = vld [vmem:[#allocation3 + $0x110] sm:$0xff]
    %v1652 = vld [vmem:[#allocation3 + $0x118] sm:$0xff]
    %v1653 = vld [vmem:[#allocation3 + $0x120] sm:$0xff]
    %v1654 = vld [vmem:[#allocation3 + $0x128] sm:$0xff]
    %v1655 = vld [vmem:[#allocation3 + $0x130] sm:$0xff]
    %v1656 = vld [vmem:[#allocation3 + $0x138] sm:$0xff]
    %s1657 = scalar_lea.vmem %s1, 288
    %v1658 = vld [vmem:[%s1657] sm:$0xf]
    %v1659 = vld [vmem:[%s1657 + $0x4] sm:$0xf]
    %v1660 = vld [vmem:[%s1657 + $0x8] sm:$0xf]
    %v1661 = vld [vmem:[%s1657 + $0xc] sm:$0xf]
    %v1662 = vld [vmem:[%s1657 + $0x10] sm:$0xf]
    %v1663 = vld [vmem:[%s1657 + $0x14] sm:$0xf]
    %v1664 = vld [vmem:[%s1657 + $0x18] sm:$0xf]
    %v1665 = vld [vmem:[%s1657 + $0x1c] sm:$0xf]
    %v1666 = vld [vmem:[%s1657 + $0x20] sm:$0xf]
    %v1667 = vld [vmem:[%s1657 + $0x24] sm:$0xf]
    %v1668 = vld [vmem:[%s1657 + $0x28] sm:$0xf]
    %v1669 = vld [vmem:[%s1657 + $0x2c] sm:$0xf]
    %v1670 = vld [vmem:[%s1657 + $0x30] sm:$0xf]
    %v1671 = vld [vmem:[%s1657 + $0x34] sm:$0xf]
    %v1672 = vld [vmem:[%s1657 + $0x38] sm:$0xf]
    %v1673 = vld [vmem:[%s1657 + $0x3c] sm:$0xf]
    %v1674 = vld [vmem:[%s1657 + $0x40] sm:$0xf]
    %v1675 = vld [vmem:[%s1657 + $0x44] sm:$0xf]
    %v1676 = vld [vmem:[%s1657 + $0x48] sm:$0xf]
    %v1677 = vld [vmem:[%s1657 + $0x4c] sm:$0xf]
    %v1678 = vld [vmem:[%s1657 + $0x50] sm:$0xf]
    %v1679 = vld [vmem:[%s1657 + $0x54] sm:$0xf]
    %v1680 = vld [vmem:[%s1657 + $0x58] sm:$0xf]
    %v1681 = vld [vmem:[%s1657 + $0x5c] sm:$0xf]
    %v1682 = vld [vmem:[%s1657 + $0x60] sm:$0xf]
    %v1683 = vld [vmem:[%s1657 + $0x64] sm:$0xf]
    %v1684 = vld [vmem:[%s1657 + $0x68] sm:$0xf]
    %v1685 = vld [vmem:[%s1657 + $0x6c] sm:$0xf]
    %v1686 = vld [vmem:[%s1657 + $0x70] sm:$0xf]
    %v1687 = vld [vmem:[%s1657 + $0x74] sm:$0xf]
    %v1688 = vld [vmem:[%s1657 + $0x78] sm:$0xf]
    %v1689 = vld [vmem:[%s1657 + $0x7c] sm:$0xf]
    %v1690 = vld [vmem:[%s1657 + $0x80] sm:$0xf]
    %v1691 = vld [vmem:[%s1657 + $0x84] sm:$0xf]
    %v1692 = vld [vmem:[%s1657 + $0x88] sm:$0xf]
    %v1693 = vld [vmem:[%s1657 + $0x8c] sm:$0xf]
    %v1694 = vld [vmem:[%s1657 + $0x90] sm:$0xf]
    %v1695 = vld [vmem:[%s1657 + $0x94] sm:$0xf]
    %v1696 = vld [vmem:[%s1657 + $0x98] sm:$0xf]
    %v1697 = vld [vmem:[%s1657 + $0x9c] sm:$0xf]
    %v1698 = vld [vmem:[%s1657 + $0xa0] sm:$0xf]
    %v1699 = vld [vmem:[%s1657 + $0xa4] sm:$0xf]
    %v1700 = vld [vmem:[%s1657 + $0xa8] sm:$0xf]
    %v1701 = vld [vmem:[%s1657 + $0xac] sm:$0xf]
    %v1702 = vld [vmem:[%s1657 + $0xb0] sm:$0xf]
    %v1703 = vld [vmem:[%s1657 + $0xb4] sm:$0xf]
    %v1704 = vld [vmem:[%s1657 + $0xb8] sm:$0xf]
    %v1705 = vld [vmem:[%s1657 + $0xbc] sm:$0xf]
    %v1706 = vld [vmem:[%s1657 + $0xc0] sm:$0xf]
    %v1707 = vld [vmem:[%s1657 + $0xc4] sm:$0xf]
    %v1708 = vld [vmem:[%s1657 + $0xc8] sm:$0xf]
    %v1709 = vld [vmem:[%s1657 + $0xcc] sm:$0xf]
    %v1710 = vld [vmem:[%s1657 + $0xd0] sm:$0xf]
    %v1711 = vld [vmem:[%s1657 + $0xd4] sm:$0xf]
    %v1712 = vld [vmem:[%s1657 + $0xd8] sm:$0xf]
    %v1713 = vld [vmem:[%s1657 + $0xdc] sm:$0xf]
    %v1714 = vld [vmem:[%s1657 + $0xe0] sm:$0xf]
    %v1715 = vld [vmem:[%s1657 + $0xe4] sm:$0xf]
    %v1716 = vld [vmem:[%s1657 + $0xe8] sm:$0xf]
    %v1717 = vld [vmem:[%s1657 + $0xec] sm:$0xf]
    %v1718 = vld [vmem:[%s1657 + $0xf0] sm:$0xf]
    %v1719 = vld [vmem:[%s1657 + $0xf4] sm:$0xf]
    %v1720 = vld [vmem:[%s1657 + $0xf8] sm:$0xf]
    %v1721 = vld [vmem:[%s1657 + $0xfc] sm:$0xf]
    %v1722 = vld [vmem:[%s1657 + $0x100] sm:$0xf]
    %v1723 = vld [vmem:[%s1657 + $0x104] sm:$0xf]
    %v1724 = vld [vmem:[%s1657 + $0x108] sm:$0xf]
    %v1725 = vld [vmem:[%s1657 + $0x10c] sm:$0xf]
    %v1726 = vld [vmem:[%s1657 + $0x110] sm:$0xf]
    %v1727 = vld [vmem:[%s1657 + $0x114] sm:$0xf]
    %v1728 = vld [vmem:[%s1657 + $0x118] sm:$0xf]
    %v1729 = vld [vmem:[%s1657 + $0x11c] sm:$0xf]
    %s1730 = scalar_lea.vmem %s2, 1
    %v1731 = vld [vmem:[%s1730] sm:$0x1]
    %v1733 = vlaneseq
    %v1734 = vshrl.u32 %v1733, 7
    %v1735 = vsub.s32 0, %v1734
    %v1736 = vrot.slane %v1731, %v1735
    %v1810 = vunpack.c.l.b16 %v1658
    %v1811 = vunpack.c.l.b16 %v1659
    %v1812 = vunpack.c.l.b16 %v1660
    %v1813 = vunpack.c.l.b16 %v1661
    %v1814 = vunpack.c.l.b16 %v1662
    %v1815 = vunpack.c.l.b16 %v1663
    %v1816 = vunpack.c.l.b16 %v1664
    %v1817 = vunpack.c.l.b16 %v1665
    %v1818 = vunpack.c.l.b16 %v1666
    %v1819 = vunpack.c.l.b16 %v1667
    %v1820 = vunpack.c.l.b16 %v1668
    %v1821 = vunpack.c.l.b16 %v1669
    %v1822 = vunpack.c.l.b16 %v1670
    %v1823 = vunpack.c.l.b16 %v1671
    %v1824 = vunpack.c.l.b16 %v1672
    %v1825 = vunpack.c.l.b16 %v1673
    %v1826 = vunpack.c.l.b16 %v1674
    %v1827 = vunpack.c.l.b16 %v1675
    %v1828 = vunpack.c.l.b16 %v1676
    %v1829 = vunpack.c.l.b16 %v1677
    %v1830 = vunpack.c.l.b16 %v1678
    %v1831 = vunpack.c.l.b16 %v1679
    %v1832 = vunpack.c.l.b16 %v1680
    %v1833 = vunpack.c.l.b16 %v1681
    %v1834 = vunpack.c.l.b16 %v1682
    %v1835 = vunpack.c.l.b16 %v1683
    %v1836 = vunpack.c.l.b16 %v1684
    %v1837 = vunpack.c.l.b16 %v1685
    %v1838 = vunpack.c.l.b16 %v1686
    %v1839 = vunpack.c.l.b16 %v1687
    %v1840 = vunpack.c.l.b16 %v1688
    %v1841 = vunpack.c.l.b16 %v1689
    %v1842 = vunpack.c.l.b16 %v1690
    %v1843 = vunpack.c.l.b16 %v1691
    %v1844 = vunpack.c.l.b16 %v1692
    %v1845 = vunpack.c.l.b16 %v1693
    %v1846 = vunpack.c.l.b16 %v1694
    %v1847 = vunpack.c.l.b16 %v1695
    %v1848 = vunpack.c.l.b16 %v1696
    %v1849 = vunpack.c.l.b16 %v1697
    %v1850 = vunpack.c.l.b16 %v1698
    %v1851 = vunpack.c.l.b16 %v1699
    %v1852 = vunpack.c.l.b16 %v1700
    %v1853 = vunpack.c.l.b16 %v1701
    %v1854 = vunpack.c.l.b16 %v1702
    %v1855 = vunpack.c.l.b16 %v1703
    %v1856 = vunpack.c.l.b16 %v1704
    %v1857 = vunpack.c.l.b16 %v1705
    %v1858 = vunpack.c.l.b16 %v1706
    %v1859 = vunpack.c.l.b16 %v1707
    %v1860 = vunpack.c.l.b16 %v1708
    %v1861 = vunpack.c.l.b16 %v1709
    %v1862 = vunpack.c.l.b16 %v1710
    %v1863 = vunpack.c.l.b16 %v1711
    %v1864 = vunpack.c.l.b16 %v1712
    %v1865 = vunpack.c.l.b16 %v1713
    %v1866 = vunpack.c.l.b16 %v1714
    %v1867 = vunpack.c.l.b16 %v1715
    %v1868 = vunpack.c.l.b16 %v1716
    %v1869 = vunpack.c.l.b16 %v1717
    %v1870 = vunpack.c.l.b16 %v1718
    %v1871 = vunpack.c.l.b16 %v1719
    %v1872 = vunpack.c.l.b16 %v1720
    %v1873 = vunpack.c.l.b16 %v1721
    %v1874 = vunpack.c.l.b16 %v1722
    %v1875 = vunpack.c.l.b16 %v1723
    %v1876 = vunpack.c.l.b16 %v1724
    %v1877 = vunpack.c.l.b16 %v1725
    %v1878 = vunpack.c.l.b16 %v1726
    %v1879 = vunpack.c.l.b16 %v1727
    %v1880 = vunpack.c.l.b16 %v1728
    %v1881 = vunpack.c.l.b16 %v1729
    %v1882 = vpack.c.b16 %v1811, %v1810
    %v1883 = vpack.c.b16 %v1813, %v1812
    %v1884 = vpack.c.b16 %v1815, %v1814
    %v1885 = vpack.c.b16 %v1817, %v1816
    %v1886 = vpack.c.b16 %v1819, %v1818
    %v1887 = vpack.c.b16 %v1821, %v1820
    %v1888 = vpack.c.b16 %v1823, %v1822
    %v1889 = vpack.c.b16 %v1825, %v1824
    %v1890 = vpack.c.b16 %v1827, %v1826
    %v1891 = vpack.c.b16 %v1829, %v1828
    %v1892 = vpack.c.b16 %v1831, %v1830
    %v1893 = vpack.c.b16 %v1833, %v1832
    %v1894 = vpack.c.b16 %v1835, %v1834
    %v1895 = vpack.c.b16 %v1837, %v1836
    %v1896 = vpack.c.b16 %v1839, %v1838
    %v1897 = vpack.c.b16 %v1841, %v1840
    %v1898 = vpack.c.b16 %v1843, %v1842
    %v1899 = vpack.c.b16 %v1845, %v1844
    %v1900 = vpack.c.b16 %v1847, %v1846
    %v1901 = vpack.c.b16 %v1849, %v1848
    %v1902 = vpack.c.b16 %v1851, %v1850
    %v1903 = vpack.c.b16 %v1853, %v1852
    %v1904 = vpack.c.b16 %v1855, %v1854
    %v1905 = vpack.c.b16 %v1857, %v1856
    %v1906 = vpack.c.b16 %v1859, %v1858
    %v1907 = vpack.c.b16 %v1861, %v1860
    %v1908 = vpack.c.b16 %v1863, %v1862
    %v1909 = vpack.c.b16 %v1865, %v1864
    %v1910 = vpack.c.b16 %v1867, %v1866
    %v1911 = vpack.c.b16 %v1869, %v1868
    %v1912 = vpack.c.b16 %v1871, %v1870
    %v1913 = vpack.c.b16 %v1873, %v1872
    %v1914 = vpack.c.b16 %v1875, %v1874
    %v1915 = vpack.c.b16 %v1877, %v1876
    %v1916 = vpack.c.b16 %v1879, %v1878
    %v1917 = vpack.c.b16 %v1881, %v1880
    %v1955 = vsel %vm16, %v1621, 0
    %v1958 = vsel %vm16, %v1626, 0
    %v1961 = vsel %vm16, %v1631, 0
    %v1964 = vsel %vm16, %v1636, 0
    %v1967 = vsel %vm16, %v1641, 0
    %v1970 = vsel %vm16, %v1646, 0
    %v1973 = vsel %vm16, %v1651, 0
    %v1976 = vsel %vm16, %v1656, 0
    %1978 = vmatprep.subr.bf16.mxu0 0
    %1979 = vmatpush1.bf16.msra.mxu0 %v1882
    %1980 = vmatprep.subr.bf16.mxu0 0
    %1981 = vmatpush1.bf16.msra.mxu0 %v1883
    %1982 = vmatprep.subr.bf16.mxu0 0
    %1983 = vmatpush1.bf16.msra.mxu0 %v1884
    %1984 = vmatprep.subr.bf16.mxu0 0
    %1985 = vmatpush1.bf16.msra.mxu0 %v1885
    %1986 = vmatprep.subr.bf16.mxu0 0
    %1987 = vmatpush1.bf16.msra.mxu0 %v1886
    %1988 = vmatprep.subr.bf16.mxu0 0
    %1989 = vmatpush1.bf16.msra.mxu0 %v1887
    %1990 = vmatprep.subr.bf16.mxu0 0
    %1991 = vmatpush1.bf16.msra.mxu0 %v1888
    %1992 = vmatprep.subr.bf16.mxu0 0
    %1993 = vmatpush1.bf16.msra.mxu0 %v1889
    %1994 = vmatprep.subr.bf16.mxu0 0
    %1995 = vmatpush1.bf16.msra.mxu0 %v1890
    %1996 = vmatprep.subr.bf16.mxu0 0
    %1997 = vmatpush1.bf16.msra.mxu0 %v1891
    %1998 = vmatprep.subr.bf16.mxu0 0
    %1999 = vmatpush1.bf16.msra.mxu0 %v1892
    %2000 = vmatprep.subr.bf16.mxu0 0
    %2001 = vmatpush1.bf16.msra.mxu0 %v1893
    %2002 = vmatprep.subr.bf16.mxu0 0
    %2003 = vmatpush1.bf16.msra.mxu0 %v1894
    %2004 = vmatprep.subr.bf16.mxu0 0
    %2005 = vmatpush1.bf16.msra.mxu0 %v1895
    %2006 = vmatprep.subr.bf16.mxu0 0
    %2007 = vmatpush1.bf16.msra.mxu0 %v1896
    %2008 = vmatprep.subr.bf16.mxu0 0
    %2009 = vmatpush1.bf16.msra.mxu0 %v1897
    %2010 = vmatprep.mubr.bf16.mxu0 %v1618
    %2011 = vmatmul.mubr.bf16.gmra.mrb[0].mxu0 %v1617
    %v2012 = vpop.f32.mrb[0].mxu0
    %v2013 = vadd.f32 %v1736, %v2012
    %v2014 = vpop.f32.mrb[0].mxu0
    %v2015 = vpop.f32.mrb[0].mxu0
    %v2016 = vadd.f32 %v1736, %v2015
    %v2017 = vpop.f32.mrb[0].mxu0
    %2018 = vmatprep.mubr.bf16.mxu0 %v1623
    %2019 = vmatmul.mubr.bf16.gmra.mrb[0].mxu0 %v1622
    %v2020 = vpop.f32.mrb[0].mxu0
    %v2021 = vadd.f32 %v1736, %v2020
    %v2022 = vpop.f32.mrb[0].mxu0
    %v2023 = vpop.f32.mrb[0].mxu0
    %v2024 = vadd.f32 %v1736, %v2023
    %v2025 = vpop.f32.mrb[0].mxu0
    %2026 = vmatprep.mubr.bf16.mxu0 %v1628
    %2027 = vmatmul.mubr.bf16.gmra.mrb[0].mxu0 %v1627
    %v2028 = vpop.f32.mrb[0].mxu0
    %v2029 = vadd.f32 %v1736, %v2028
    %v2030 = vpop.f32.mrb[0].mxu0
    %v2031 = vpop.f32.mrb[0].mxu0
    %v2032 = vadd.f32 %v1736, %v2031
    %v2033 = vpop.f32.mrb[0].mxu0
    %2034 = vmatprep.mubr.bf16.mxu0 %v1633
    %2035 = vmatmul.mubr.bf16.gmra.mrb[0].mxu0 %v1632
    %v2036 = vpop.f32.mrb[0].mxu0
    %v2037 = vadd.f32 %v1736, %v2036
    %v2038 = vpop.f32.mrb[0].mxu0
    %v2039 = vpop.f32.mrb[0].mxu0
    %v2040 = vadd.f32 %v1736, %v2039
    %v2041 = vpop.f32.mrb[0].mxu0
    %2042 = vmatprep.mubr.bf16.mxu0 %v1638
    %2043 = vmatmul.mubr.bf16.gmra.mrb[0].mxu0 %v1637
    %v2044 = vpop.f32.mrb[0].mxu0
    %v2045 = vadd.f32 %v1736, %v2044
    %v2046 = vpop.f32.mrb[0].mxu0
    %v2047 = vpop.f32.mrb[0].mxu0
    %v2048 = vadd.f32 %v1736, %v2047
    %v2049 = vpop.f32.mrb[0].mxu0
    %2050 = vmatprep.mubr.bf16.mxu0 %v1643
    %2051 = vmatmul.mubr.bf16.gmra.mrb[0].mxu0 %v1642
    %v2052 = vpop.f32.mrb[0].mxu0
    %v2053 = vadd.f32 %v1736, %v2052
    %v2054 = vpop.f32.mrb[0].mxu0
    %v2055 = vpop.f32.mrb[0].mxu0
    %v2056 = vadd.f32 %v1736, %v2055
    %v2057 = vpop.f32.mrb[0].mxu0
    %2058 = vmatprep.mubr.bf16.mxu0 %v1648
    %2059 = vmatmul.mubr.bf16.gmra.mrb[0].mxu0 %v1647
    %v2060 = vpop.f32.mrb[0].mxu0
    %v2061 = vadd.f32 %v1736, %v2060
    %v2062 = vpop.f32.mrb[0].mxu0
    %v2063 = vpop.f32.mrb[0].mxu0
    %v2064 = vadd.f32 %v1736, %v2063
    %v2065 = vpop.f32.mrb[0].mxu0
    %2066 = vmatprep.mubr.bf16.mxu0 %v1653
    %2067 = vmatmul.mubr.bf16.gmra.mrb[0].mxu0 %v1652
    %v2068 = vpop.f32.mrb[0].mxu0
    %v2069 = vadd.f32 %v1736, %v2068
    %v2070 = vpop.f32.mrb[0].mxu0
    %v2071 = vpop.f32.mrb[0].mxu0
    %v2072 = vadd.f32 %v1736, %v2071
    %v2073 = vpop.f32.mrb[0].mxu0
    %2074 = vdwg.mxu0
    %2075 = vmatprep.subr.bf16.mxu0 0
    %2076 = vmatpush1.bf16.msra.mxu0 %v1898
    %2077 = vmatprep.subr.bf16.mxu0 0
    %2078 = vmatpush1.bf16.msra.mxu0 %v1899
    %2079 = vmatprep.subr.bf16.mxu0 0
    %2080 = vmatpush1.bf16.msra.mxu0 %v1900
    %2081 = vmatprep.subr.bf16.mxu0 0
    %2082 = vmatpush1.bf16.msra.mxu0 %v1901
    %2083 = vmatprep.subr.bf16.mxu0 0
    %2084 = vmatpush1.bf16.msra.mxu0 %v1902
    %2085 = vmatprep.subr.bf16.mxu0 0
    %2086 = vmatpush1.bf16.msra.mxu0 %v1903
    %2087 = vmatprep.subr.bf16.mxu0 0
    %2088 = vmatpush1.bf16.msra.mxu0 %v1904
    %2089 = vmatprep.subr.bf16.mxu0 0
    %2090 = vmatpush1.bf16.msra.mxu0 %v1905
    %2091 = vmatprep.subr.bf16.mxu0 0
    %2092 = vmatpush1.bf16.msra.mxu0 %v1906
    %2093 = vmatprep.subr.bf16.mxu0 0
    %2094 = vmatpush1.bf16.msra.mxu0 %v1907
    %2095 = vmatprep.subr.bf16.mxu0 0
    %2096 = vmatpush1.bf16.msra.mxu0 %v1908
    %2097 = vmatprep.subr.bf16.mxu0 0
    %2098 = vmatpush1.bf16.msra.mxu0 %v1909
    %2099 = vmatprep.subr.bf16.mxu0 0
    %2100 = vmatpush1.bf16.msra.mxu0 %v1910
    %2101 = vmatprep.subr.bf16.mxu0 0
    %2102 = vmatpush1.bf16.msra.mxu0 %v1911
    %2103 = vmatprep.subr.bf16.mxu0 0
    %2104 = vmatpush1.bf16.msra.mxu0 %v1912
    %2105 = vmatprep.subr.bf16.mxu0 0
    %2106 = vmatpush1.bf16.msra.mxu0 %v1913
    %2107 = vmatprep.mubr.bf16.mxu0 %v1620
    %2108 = vmatmul.mubr.bf16.gmra.mrb[0].mxu0 %v1619
    %v2109 = vpop.f32.mrb[0].mxu0
    %v2110 = vadd.f32 %v2013, %v2109
    %v2111 = vpop.f32.mrb[0].mxu0
    %v2112 = vpop.f32.mrb[0].mxu0
    %v2113 = vadd.f32 %v2016, %v2112
    %v2114 = vpop.f32.mrb[0].mxu0
    %2115 = vmatprep.mubr.bf16.mxu0 %v1625
    %2116 = vmatmul.mubr.bf16.gmra.mrb[0].mxu0 %v1624
    %v2117 = vpop.f32.mrb[0].mxu0
    %v2118 = vadd.f32 %v2021, %v2117
    %v2119 = vpop.f32.mrb[0].mxu0
    %v2120 = vpop.f32.mrb[0].mxu0
    %v2121 = vadd.f32 %v2024, %v2120
    %v2122 = vpop.f32.mrb[0].mxu0
    %2123 = vmatprep.mubr.bf16.mxu0 %v1630
    %2124 = vmatmul.mubr.bf16.gmra.mrb[0].mxu0 %v1629
    %v2125 = vpop.f32.mrb[0].mxu0
    %v2126 = vadd.f32 %v2029, %v2125
    %v2127 = vpop.f32.mrb[0].mxu0
    %v2128 = vpop.f32.mrb[0].mxu0
    %v2129 = vadd.f32 %v2032, %v2128
    %v2130 = vpop.f32.mrb[0].mxu0
    %2131 = vmatprep.mubr.bf16.mxu0 %v1635
    %2132 = vmatmul.mubr.bf16.gmra.mrb[0].mxu0 %v1634
    %v2133 = vpop.f32.mrb[0].mxu0
    %v2134 = vadd.f32 %v2037, %v2133
    %v2135 = vpop.f32.mrb[0].mxu0
    %v2136 = vpop.f32.mrb[0].mxu0
    %v2137 = vadd.f32 %v2040, %v2136
    %v2138 = vpop.f32.mrb[0].mxu0
    %2139 = vmatprep.mubr.bf16.mxu0 %v1640
    %2140 = vmatmul.mubr.bf16.gmra.mrb[0].mxu0 %v1639
    %v2141 = vpop.f32.mrb[0].mxu0
    %v2142 = vadd.f32 %v2045, %v2141
    %v2143 = vpop.f32.mrb[0].mxu0
    %v2144 = vpop.f32.mrb[0].mxu0
    %v2145 = vadd.f32 %v2048, %v2144
    %v2146 = vpop.f32.mrb[0].mxu0
    %2147 = vmatprep.mubr.bf16.mxu0 %v1645
    %2148 = vmatmul.mubr.bf16.gmra.mrb[0].mxu0 %v1644
    %v2149 = vpop.f32.mrb[0].mxu0
    %v2150 = vadd.f32 %v2053, %v2149
    %v2151 = vpop.f32.mrb[0].mxu0
    %v2152 = vpop.f32.mrb[0].mxu0
    %v2153 = vadd.f32 %v2056, %v2152
    %v2154 = vpop.f32.mrb[0].mxu0
    %2155 = vmatprep.mubr.bf16.mxu0 %v1650
    %2156 = vmatmul.mubr.bf16.gmra.mrb[0].mxu0 %v1649
    %v2157 = vpop.f32.mrb[0].mxu0
    %v2158 = vadd.f32 %v2061, %v2157
    %v2159 = vpop.f32.mrb[0].mxu0
    %v2160 = vpop.f32.mrb[0].mxu0
    %v2161 = vadd.f32 %v2064, %v2160
    %v2162 = vpop.f32.mrb[0].mxu0
    %2163 = vmatprep.mubr.bf16.mxu0 %v1655
    %2164 = vmatmul.mubr.bf16.gmra.mrb[0].mxu0 %v1654
    %v2165 = vpop.f32.mrb[0].mxu0
    %v2166 = vadd.f32 %v2069, %v2165
    %v2167 = vpop.f32.mrb[0].mxu0
    %v2168 = vpop.f32.mrb[0].mxu0
    %v2169 = vadd.f32 %v2072, %v2168
    %v2170 = vpop.f32.mrb[0].mxu0
    %2171 = vdwg.mxu0
    %2172 = vmatprep.subr.bf16.mxu0 0
    %2173 = vmatpush1.bf16.msra.mxu0 %v1914
    %2174 = vmatprep.subr.bf16.mxu0 0
    %2175 = vmatpush1.bf16.msra.mxu0 %v1915
    %2176 = vmatprep.subr.bf16.mxu0 0
    %2177 = vmatpush1.bf16.msra.mxu0 %v1916
    %2178 = vmatprep.subr.bf16.mxu0 0
    %2179 = vmatpush1.bf16.msra.mxu0 %v1917
    %2180 = vmatprep.subr.bf16.mxu0 0
    %2181 = vmatpush1.bf16.msra.mxu0 0
    %2182 = vmatprep.subr.bf16.mxu0 0
    %2183 = vmatpush1.bf16.msra.mxu0 0
    %2184 = vmatprep.subr.bf16.mxu0 0
    %2185 = vmatpush1.bf16.msra.mxu0 0
    %2186 = vmatprep.subr.bf16.mxu0 0
    %2187 = vmatpush1.bf16.msra.mxu0 0
    %2188 = vmatprep.subr.bf16.mxu0 0
    %2189 = vmatpush1.bf16.msra.mxu0 0
    %2190 = vmatprep.subr.bf16.mxu0 0
    %2191 = vmatpush1.bf16.msra.mxu0 0
    %2192 = vmatprep.subr.bf16.mxu0 0
    %2193 = vmatpush1.bf16.msra.mxu0 0
    %2194 = vmatprep.subr.bf16.mxu0 0
    %2195 = vmatpush1.bf16.msra.mxu0 0
    %2196 = vmatprep.subr.bf16.mxu0 0
    %2197 = vmatpush1.bf16.msra.mxu0 0
    %2198 = vmatprep.subr.bf16.mxu0 0
    %2199 = vmatpush1.bf16.msra.mxu0 0
    %2200 = vmatprep.subr.bf16.mxu0 0
    %2201 = vmatpush1.bf16.msra.mxu0 0
    %2202 = vmatprep.subr.bf16.mxu0 0
    %2203 = vmatpush1.bf16.msra.mxu0 0
    %2204 = vmatprep.mubr.bf16.mxu0 0
    %2205 = vmatmul.mubr.bf16.gmra.mrb[0].mxu0 %v1955
    %v2206 = vpop.f32.mrb[0].mxu0
    %v2207 = vadd.f32 %v2110, %v2206
    %v2208 = vpop.f32.mrb[0].mxu0
    %v2209 = vpop.f32.mrb[0].mxu0
    %v2210 = vadd.f32 %v2113, %v2209
    %v2211 = vpop.f32.mrb[0].mxu0
    %2212 = vmatprep.mubr.bf16.mxu0 0
    %2213 = vmatmul.mubr.bf16.gmra.mrb[0].mxu0 %v1958
    %v2214 = vpop.f32.mrb[0].mxu0
    %v2215 = vadd.f32 %v2118, %v2214
    %v2216 = vpop.f32.mrb[0].mxu0
    %v2217 = vpop.f32.mrb[0].mxu0
    %v2218 = vadd.f32 %v2121, %v2217
    %v2219 = vpop.f32.mrb[0].mxu0
    %2220 = vmatprep.mubr.bf16.mxu0 0
    %2221 = vmatmul.mubr.bf16.gmra.mrb[0].mxu0 %v1961
    %v2222 = vpop.f32.mrb[0].mxu0
    %v2223 = vadd.f32 %v2126, %v2222
    %v2224 = vpop.f32.mrb[0].mxu0
    %v2225 = vpop.f32.mrb[0].mxu0
    %v2226 = vadd.f32 %v2129, %v2225
    %v2227 = vpop.f32.mrb[0].mxu0
    %2228 = vmatprep.mubr.bf16.mxu0 0
    %2229 = vmatmul.mubr.bf16.gmra.mrb[0].mxu0 %v1964
    %v2230 = vpop.f32.mrb[0].mxu0
    %v2231 = vadd.f32 %v2134, %v2230
    %v2232 = vpop.f32.mrb[0].mxu0
    %v2233 = vpop.f32.mrb[0].mxu0
    %v2234 = vadd.f32 %v2137, %v2233
    %v2235 = vpop.f32.mrb[0].mxu0
    %2236 = vmatprep.mubr.bf16.mxu0 0
    %2237 = vmatmul.mubr.bf16.gmra.mrb[0].mxu0 %v1967
    %v2238 = vpop.f32.mrb[0].mxu0
    %v2239 = vadd.f32 %v2142, %v2238
    %v2240 = vpop.f32.mrb[0].mxu0
    %v2241 = vpop.f32.mrb[0].mxu0
    %v2242 = vadd.f32 %v2145, %v2241
    %v2243 = vpop.f32.mrb[0].mxu0
    %2244 = vmatprep.mubr.bf16.mxu0 0
    %2245 = vmatmul.mubr.bf16.gmra.mrb[0].mxu0 %v1970
    %v2246 = vpop.f32.mrb[0].mxu0
    %v2247 = vadd.f32 %v2150, %v2246
    %v2248 = vpop.f32.mrb[0].mxu0
    %v2249 = vpop.f32.mrb[0].mxu0
    %v2250 = vadd.f32 %v2153, %v2249
    %v2251 = vpop.f32.mrb[0].mxu0
    %2252 = vmatprep.mubr.bf16.mxu0 0
    %2253 = vmatmul.mubr.bf16.gmra.mrb[0].mxu0 %v1973
    %v2254 = vpop.f32.mrb[0].mxu0
    %v2255 = vadd.f32 %v2158, %v2254
    %v2256 = vpop.f32.mrb[0].mxu0
    %v2257 = vpop.f32.mrb[0].mxu0
    %v2258 = vadd.f32 %v2161, %v2257
    %v2259 = vpop.f32.mrb[0].mxu0
    %2260 = vmatprep.mubr.bf16.mxu0 0
    %2261 = vmatmul.mubr.bf16.gmra.mrb[0].mxu0 %v1976
    %v2262 = vpop.f32.mrb[0].mxu0
    %v2263 = vadd.f32 %v2166, %v2262
    %v2264 = vpop.f32.mrb[0].mxu0
    %v2265 = vpop.f32.mrb[0].mxu0
    %v2266 = vadd.f32 %v2169, %v2265
    %v2267 = vpop.f32.mrb[0].mxu0
    %2268 = vdwg.mxu0
    %v2269 = vadd.f32 %v68, %v2207
    %v2270 = vadd.f32 %v69, %v2210
    %v2271 = vadd.f32 %v70, %v2215
    %v2272 = vadd.f32 %v71, %v2218
    %v2273 = vadd.f32 %v72, %v2223
    %v2274 = vadd.f32 %v73, %v2226
    %v2275 = vadd.f32 %v74, %v2231
    %v2276 = vadd.f32 %v75, %v2234
    %v2277 = vadd.f32 %v76, %v2239
    %v2278 = vadd.f32 %v77, %v2242
    %v2279 = vadd.f32 %v78, %v2247
    %v2280 = vadd.f32 %v79, %v2250
    %v2281 = vadd.f32 %v80, %v2255
    %v2282 = vadd.f32 %v81, %v2258
    %v2283 = vadd.f32 %v82, %v2263
    %v2284 = vadd.f32 %v83, %v2266
    %v2285 = vmax.f32 %v2269, 0.0
    %v2286 = vmax.f32 %v2270, 0.0
    %v2287 = vmax.f32 %v2271, 0.0
    %v2288 = vmax.f32 %v2272, 0.0
    %v2289 = vmax.f32 %v2273, 0.0
    %v2290 = vmax.f32 %v2274, 0.0
    %v2291 = vmax.f32 %v2275, 0.0
    %v2292 = vmax.f32 %v2276, 0.0
    %v2293 = vmax.f32 %v2277, 0.0
    %v2294 = vmax.f32 %v2278, 0.0
    %v2295 = vmax.f32 %v2279, 0.0
    %v2296 = vmax.f32 %v2280, 0.0
    %v2297 = vmax.f32 %v2281, 0.0
    %v2298 = vmax.f32 %v2282, 0.0
    %v2299 = vmax.f32 %v2283, 0.0
    %v2300 = vmax.f32 %v2284, 0.0
    %2301 = vst.msk [vmem:[%s84 + $0x1] sm:$0xff] %vm16, %v2285
    %2302 = vst.msk [vmem:[%s84 + $0x11] sm:$0xff] %vm16, %v2286
    %2303 = vst.msk [vmem:[%s84 + $0x21] sm:$0xff] %vm16, %v2287
    %2304 = vst.msk [vmem:[%s84 + $0x31] sm:$0xff] %vm16, %v2288
    %2305 = vst.msk [vmem:[%s84 + $0x41] sm:$0xff] %vm16, %v2289
    %2306 = vst.msk [vmem:[%s84 + $0x51] sm:$0xff] %vm16, %v2290
    %2307 = vst.msk [vmem:[%s84 + $0x61] sm:$0xff] %vm16, %v2291
    %2308 = vst.msk [vmem:[%s84 + $0x71] sm:$0xff] %vm16, %v2292
    %2309 = vst.msk [vmem:[%s84 + $0xa1] sm:$0xff] %vm16, %v2293
    %2310 = vst.msk [vmem:[%s84 + $0xb1] sm:$0xff] %vm16, %v2294
    %2311 = vst.msk [vmem:[%s84 + $0xc1] sm:$0xff] %vm16, %v2295
    %2312 = vst.msk [vmem:[%s84 + $0xd1] sm:$0xff] %vm16, %v2296
    %2313 = vst.msk [vmem:[%s84 + $0xe1] sm:$0xff] %vm16, %v2297
    %2314 = vst.msk [vmem:[%s84 + $0xf1] sm:$0xff] %vm16, %v2298
    %2315 = vst.msk [vmem:[%s84 + $0x101] sm:$0xff] %vm16, %v2299
    %2316 = vst.msk [vmem:[%s84 + $0x111] sm:$0xff] %vm16, %v2300
    %v2317 = vld [vmem:[#allocation2] sm:$0xff]
    %v2318 = vld [vmem:[#allocation2 + $0x10] sm:$0xff]
    %v2319 = vld [vmem:[#allocation2 + $0x20] sm:$0xff]
    %v2320 = vld [vmem:[#allocation2 + $0x30] sm:$0xff]
    %v2321 = vld [vmem:[#allocation2 + $0x40] sm:$0xff]
    %v2322 = vld [vmem:[#allocation2 + $0x50] sm:$0xff]
    %v2323 = vld [vmem:[#allocation2 + $0x60] sm:$0xff]
    %v2324 = vld [vmem:[#allocation2 + $0x70] sm:$0xff]
    %v2325 = vld [vmem:[#allocation2 + $0xa0] sm:$0xff]
    %v2326 = vld [vmem:[#allocation2 + $0xb0] sm:$0xff]
    %v2327 = vld [vmem:[#allocation2 + $0xc0] sm:$0xff]
    %v2328 = vld [vmem:[#allocation2 + $0xd0] sm:$0xff]
    %v2329 = vld [vmem:[#allocation2 + $0xe0] sm:$0xff]
    %v2330 = vld [vmem:[#allocation2 + $0xf0] sm:$0xff]
    %v2331 = vld [vmem:[#allocation2 + $0x100] sm:$0xff]
    %v2332 = vld [vmem:[#allocation2 + $0x110] sm:$0xff]
    %v2333 = vpack.c.bf16 %v2318, %v2317
    %v2334 = vpack.c.bf16 %v2320, %v2319
    %v2335 = vpack.c.bf16 %v2322, %v2321
    %v2336 = vpack.c.bf16 %v2324, %v2323
    %v2337 = vpack.c.bf16 %v2326, %v2325
    %v2338 = vpack.c.bf16 %v2328, %v2327
    %v2339 = vpack.c.bf16 %v2330, %v2329
    %v2340 = vpack.c.bf16 %v2332, %v2331
    %2341 = vst.msk [vmem:[#allocation3] sm:$0xff] %vm16, %v2333
    %2342 = vst.msk [vmem:[#allocation3 + $0x28] sm:$0xff] %vm16, %v2334
    %2343 = vst.msk [vmem:[#allocation3 + $0x50] sm:$0xff] %vm16, %v2335
    %2344 = vst.msk [vmem:[#allocation3 + $0x78] sm:$0xff] %vm16, %v2336
    %2345 = vst.msk [vmem:[#allocation3 + $0xa0] sm:$0xff] %vm16, %v2337
    %2346 = vst.msk [vmem:[#allocation3 + $0xc8] sm:$0xff] %vm16, %v2338
    %2347 = vst.msk [vmem:[#allocation3 + $0xf0] sm:$0xff] %vm16, %v2339
    %2348 = vst.msk [vmem:[#allocation3 + $0x118] sm:$0xff] %vm16, %v2340
    %v2349 = vld [vmem:[#allocation2 + $0x1] sm:$0xff]
    %v2350 = vld [vmem:[#allocation2 + $0x11] sm:$0xff]
    %v2351 = vld [vmem:[#allocation2 + $0x21] sm:$0xff]
    %v2352 = vld [vmem:[#allocation2 + $0x31] sm:$0xff]
    %v2353 = vld [vmem:[#allocation2 + $0x41] sm:$0xff]
    %v2354 = vld [vmem:[#allocation2 + $0x51] sm:$0xff]
    %v2355 = vld [vmem:[#allocation2 + $0x61] sm:$0xff]
    %v2356 = vld [vmem:[#allocation2 + $0x71] sm:$0xff]
    %v2357 = vld [vmem:[#allocation2 + $0xa1] sm:$0xff]
    %v2358 = vld [vmem:[#allocation2 + $0xb1] sm:$0xff]
    %v2359 = vld [vmem:[#allocation2 + $0xc1] sm:$0xff]
    %v2360 = vld [vmem:[#allocation2 + $0xd1] sm:$0xff]
    %v2361 = vld [vmem:[#allocation2 + $0xe1] sm:$0xff]
    %v2362 = vld [vmem:[#allocation2 + $0xf1] sm:$0xff]
    %v2363 = vld [vmem:[#allocation2 + $0x101] sm:$0xff]
    %v2364 = vld [vmem:[#allocation2 + $0x111] sm:$0xff]
    %v2365 = vpack.c.bf16 %v2350, %v2349
    %v2366 = vpack.c.bf16 %v2352, %v2351
    %v2367 = vpack.c.bf16 %v2354, %v2353
    %v2368 = vpack.c.bf16 %v2356, %v2355
    %v2369 = vpack.c.bf16 %v2358, %v2357
    %v2370 = vpack.c.bf16 %v2360, %v2359
    %v2371 = vpack.c.bf16 %v2362, %v2361
    %v2372 = vpack.c.bf16 %v2364, %v2363
    %2381 = vrot.lane.b32.xlu0 %v2365, 64
    %v2382 = vpop.permute.xlu0 %2381
    %2383 = vrot.lane.b32.xlu0 %v2366, 64
    %v2384 = vpop.permute.xlu0 %2383
    %2385 = vrot.lane.b32.xlu0 %v2367, 64
    %v2386 = vpop.permute.xlu0 %2385
    %2387 = vrot.lane.b32.xlu0 %v2368, 64
    %v2388 = vpop.permute.xlu0 %2387
    %2389 = vrot.lane.b32.xlu0 %v2369, 64
    %v2390 = vpop.permute.xlu0 %2389
    %2391 = vrot.lane.b32.xlu0 %v2370, 64
    %v2392 = vpop.permute.xlu0 %2391
    %2393 = vrot.lane.b32.xlu0 %v2371, 64
    %v2394 = vpop.permute.xlu0 %2393
    %2395 = vrot.lane.b32.xlu0 %v2372, 64
    %v2396 = vpop.permute.xlu0 %2395
    %2405 = vst.msk [vmem:[#allocation3] sm:$0xff] %vm189, %v2382
    %2406 = vst.msk [vmem:[#allocation3 + $0x28] sm:$0xff] %vm189, %v2384
    %2407 = vst.msk [vmem:[#allocation3 + $0x50] sm:$0xff] %vm189, %v2386
    %2408 = vst.msk [vmem:[#allocation3 + $0x78] sm:$0xff] %vm189, %v2388
    %2409 = vst.msk [vmem:[#allocation3 + $0xa0] sm:$0xff] %vm189, %v2390
    %2410 = vst.msk [vmem:[#allocation3 + $0xc8] sm:$0xff] %vm189, %v2392
    %2411 = vst.msk [vmem:[#allocation3 + $0xf0] sm:$0xff] %vm189, %v2394
    %2412 = vst.msk [vmem:[#allocation3 + $0x118] sm:$0xff] %vm189, %v2396
    %v2413 = vld [vmem:[#allocation2 + $0x2] sm:$0xff]
    %v2414 = vld [vmem:[#allocation2 + $0x12] sm:$0xff]
    %v2415 = vld [vmem:[#allocation2 + $0x22] sm:$0xff]
    %v2416 = vld [vmem:[#allocation2 + $0x32] sm:$0xff]
    %v2417 = vld [vmem:[#allocation2 + $0x42] sm:$0xff]
    %v2418 = vld [vmem:[#allocation2 + $0x52] sm:$0xff]
    %v2419 = vld [vmem:[#allocation2 + $0x62] sm:$0xff]
    %v2420 = vld [vmem:[#allocation2 + $0x72] sm:$0xff]
    %v2421 = vld [vmem:[#allocation2 + $0xa2] sm:$0xff]
    %v2422 = vld [vmem:[#allocation2 + $0xb2] sm:$0xff]
    %v2423 = vld [vmem:[#allocation2 + $0xc2] sm:$0xff]
    %v2424 = vld [vmem:[#allocation2 + $0xd2] sm:$0xff]
    %v2425 = vld [vmem:[#allocation2 + $0xe2] sm:$0xff]
    %v2426 = vld [vmem:[#allocation2 + $0xf2] sm:$0xff]
    %v2427 = vld [vmem:[#allocation2 + $0x102] sm:$0xff]
    %v2428 = vld [vmem:[#allocation2 + $0x112] sm:$0xff]
    %v2429 = vpack.c.bf16 %v2414, %v2413
    %v2430 = vpack.c.bf16 %v2416, %v2415
    %v2431 = vpack.c.bf16 %v2418, %v2417
    %v2432 = vpack.c.bf16 %v2420, %v2419
    %v2433 = vpack.c.bf16 %v2422, %v2421
    %v2434 = vpack.c.bf16 %v2424, %v2423
    %v2435 = vpack.c.bf16 %v2426, %v2425
    %v2436 = vpack.c.bf16 %v2428, %v2427
    %2437 = vst.msk [vmem:[#allocation3 + $0x8] sm:$0xff] %vm16, %v2429
    %2438 = vst.msk [vmem:[#allocation3 + $0x30] sm:$0xff] %vm16, %v2430
    %2439 = vst.msk [vmem:[#allocation3 + $0x58] sm:$0xff] %vm16, %v2431
    %2440 = vst.msk [vmem:[#allocation3 + $0x80] sm:$0xff] %vm16, %v2432
    %2441 = vst.msk [vmem:[#allocation3 + $0xa8] sm:$0xff] %vm16, %v2433
    %2442 = vst.msk [vmem:[#allocation3 + $0xd0] sm:$0xff] %vm16, %v2434
    %2443 = vst.msk [vmem:[#allocation3 + $0xf8] sm:$0xff] %vm16, %v2435
    %2444 = vst.msk [vmem:[#allocation3 + $0x120] sm:$0xff] %vm16, %v2436
    %v2445 = vld [vmem:[%s84] sm:$0xff]
    %v2446 = vld [vmem:[%s84 + $0x10] sm:$0xff]
    %v2447 = vld [vmem:[%s84 + $0x20] sm:$0xff]
    %v2448 = vld [vmem:[%s84 + $0x30] sm:$0xff]
    %v2449 = vld [vmem:[%s84 + $0x40] sm:$0xff]
    %v2450 = vld [vmem:[%s84 + $0x50] sm:$0xff]
    %v2451 = vld [vmem:[%s84 + $0x60] sm:$0xff]
    %v2452 = vld [vmem:[%s84 + $0x70] sm:$0xff]
    %v2453 = vld [vmem:[%s84 + $0xa0] sm:$0xff]
    %v2454 = vld [vmem:[%s84 + $0xb0] sm:$0xff]
    %v2455 = vld [vmem:[%s84 + $0xc0] sm:$0xff]
    %v2456 = vld [vmem:[%s84 + $0xd0] sm:$0xff]
    %v2457 = vld [vmem:[%s84 + $0xe0] sm:$0xff]
    %v2458 = vld [vmem:[%s84 + $0xf0] sm:$0xff]
    %v2459 = vld [vmem:[%s84 + $0x100] sm:$0xff]
    %v2460 = vld [vmem:[%s84 + $0x110] sm:$0xff]
    %v2461 = vpack.c.bf16 %v2446, %v2445
    %v2462 = vpack.c.bf16 %v2448, %v2447
    %v2463 = vpack.c.bf16 %v2450, %v2449
    %v2464 = vpack.c.bf16 %v2452, %v2451
    %v2465 = vpack.c.bf16 %v2454, %v2453
    %v2466 = vpack.c.bf16 %v2456, %v2455
    %v2467 = vpack.c.bf16 %v2458, %v2457
    %v2468 = vpack.c.bf16 %v2460, %v2459
    %2477 = vrot.lane.b32.xlu0 %v2461, 64
    %v2478 = vpop.permute.xlu0 %2477
    %2479 = vrot.lane.b32.xlu0 %v2462, 64
    %v2480 = vpop.permute.xlu0 %2479
    %2481 = vrot.lane.b32.xlu0 %v2463, 64
    %v2482 = vpop.permute.xlu0 %2481
    %2483 = vrot.lane.b32.xlu0 %v2464, 64
    %v2484 = vpop.permute.xlu0 %2483
    %2485 = vrot.lane.b32.xlu0 %v2465, 64
    %v2486 = vpop.permute.xlu0 %2485
    %2487 = vrot.lane.b32.xlu0 %v2466, 64
    %v2488 = vpop.permute.xlu0 %2487
    %2489 = vrot.lane.b32.xlu0 %v2467, 64
    %v2490 = vpop.permute.xlu0 %2489
    %2491 = vrot.lane.b32.xlu0 %v2468, 64
    %v2492 = vpop.permute.xlu0 %2491
    %2501 = vst.msk [vmem:[#allocation3 + $0x8] sm:$0xff] %vm189, %v2478
    %2502 = vst.msk [vmem:[#allocation3 + $0x30] sm:$0xff] %vm189, %v2480
    %2503 = vst.msk [vmem:[#allocation3 + $0x58] sm:$0xff] %vm189, %v2482
    %2504 = vst.msk [vmem:[#allocation3 + $0x80] sm:$0xff] %vm189, %v2484
    %2505 = vst.msk [vmem:[#allocation3 + $0xa8] sm:$0xff] %vm189, %v2486
    %2506 = vst.msk [vmem:[#allocation3 + $0xd0] sm:$0xff] %vm189, %v2488
    %2507 = vst.msk [vmem:[#allocation3 + $0xf8] sm:$0xff] %vm189, %v2490
    %2508 = vst.msk [vmem:[#allocation3 + $0x120] sm:$0xff] %vm189, %v2492
    %v2509 = vld [vmem:[%s84 + $0x1] sm:$0xff]
    %v2510 = vld [vmem:[%s84 + $0x11] sm:$0xff]
    %v2511 = vld [vmem:[%s84 + $0x21] sm:$0xff]
    %v2512 = vld [vmem:[%s84 + $0x31] sm:$0xff]
    %v2513 = vld [vmem:[%s84 + $0x41] sm:$0xff]
    %v2514 = vld [vmem:[%s84 + $0x51] sm:$0xff]
    %v2515 = vld [vmem:[%s84 + $0x61] sm:$0xff]
    %v2516 = vld [vmem:[%s84 + $0x71] sm:$0xff]
    %v2517 = vld [vmem:[%s84 + $0xa1] sm:$0xff]
    %v2518 = vld [vmem:[%s84 + $0xb1] sm:$0xff]
    %v2519 = vld [vmem:[%s84 + $0xc1] sm:$0xff]
    %v2520 = vld [vmem:[%s84 + $0xd1] sm:$0xff]
    %v2521 = vld [vmem:[%s84 + $0xe1] sm:$0xff]
    %v2522 = vld [vmem:[%s84 + $0xf1] sm:$0xff]
    %v2523 = vld [vmem:[%s84 + $0x101] sm:$0xff]
    %v2524 = vld [vmem:[%s84 + $0x111] sm:$0xff]
    %v2525 = vpack.c.bf16 %v2510, %v2509
    %v2526 = vpack.c.bf16 %v2512, %v2511
    %v2527 = vpack.c.bf16 %v2514, %v2513
    %v2528 = vpack.c.bf16 %v2516, %v2515
    %v2529 = vpack.c.bf16 %v2518, %v2517
    %v2530 = vpack.c.bf16 %v2520, %v2519
    %v2531 = vpack.c.bf16 %v2522, %v2521
    %v2532 = vpack.c.bf16 %v2524, %v2523
    %2533 = vst.msk [vmem:[#allocation3 + $0x10] sm:$0xff] %vm16, %v2525
    %2534 = vst.msk [vmem:[#allocation3 + $0x38] sm:$0xff] %vm16, %v2526
    %2535 = vst.msk [vmem:[#allocation3 + $0x60] sm:$0xff] %vm16, %v2527
    %2536 = vst.msk [vmem:[#allocation3 + $0x88] sm:$0xff] %vm16, %v2528
    %2537 = vst.msk [vmem:[#allocation3 + $0xb0] sm:$0xff] %vm16, %v2529
    %2538 = vst.msk [vmem:[#allocation3 + $0xd8] sm:$0xff] %vm16, %v2530
    %2539 = vst.msk [vmem:[#allocation3 + $0x100] sm:$0xff] %vm16, %v2531
    %2540 = vst.msk [vmem:[#allocation3 + $0x128] sm:$0xff] %vm16, %v2532
    %v2541 = vld [vmem:[%s84 + $0x2] sm:$0xff]
    %v2542 = vld [vmem:[%s84 + $0x12] sm:$0xff]
    %v2543 = vld [vmem:[%s84 + $0x22] sm:$0xff]
    %v2544 = vld [vmem:[%s84 + $0x32] sm:$0xff]
    %v2545 = vld [vmem:[%s84 + $0x42] sm:$0xff]
    %v2546 = vld [vmem:[%s84 + $0x52] sm:$0xff]
    %v2547 = vld [vmem:[%s84 + $0x62] sm:$0xff]
    %v2548 = vld [vmem:[%s84 + $0x72] sm:$0xff]
    %v2549 = vld [vmem:[%s84 + $0xa2] sm:$0xff]
    %v2550 = vld [vmem:[%s84 + $0xb2] sm:$0xff]
    %v2551 = vld [vmem:[%s84 + $0xc2] sm:$0xff]
    %v2552 = vld [vmem:[%s84 + $0xd2] sm:$0xff]
    %v2553 = vld [vmem:[%s84 + $0xe2] sm:$0xff]
    %v2554 = vld [vmem:[%s84 + $0xf2] sm:$0xff]
    %v2555 = vld [vmem:[%s84 + $0x102] sm:$0xff]
    %v2556 = vld [vmem:[%s84 + $0x112] sm:$0xff]
    %v2557 = vpack.c.bf16 %v2542, %v2541
    %v2558 = vpack.c.bf16 %v2544, %v2543
    %v2559 = vpack.c.bf16 %v2546, %v2545
    %v2560 = vpack.c.bf16 %v2548, %v2547
    %v2561 = vpack.c.bf16 %v2550, %v2549
    %v2562 = vpack.c.bf16 %v2552, %v2551
    %v2563 = vpack.c.bf16 %v2554, %v2553
    %v2564 = vpack.c.bf16 %v2556, %v2555
    %2573 = vrot.lane.b32.xlu0 %v2557, 64
    %v2574 = vpop.permute.xlu0 %2573
    %2575 = vrot.lane.b32.xlu0 %v2558, 64
    %v2576 = vpop.permute.xlu0 %2575
    %2577 = vrot.lane.b32.xlu0 %v2559, 64
    %v2578 = vpop.permute.xlu0 %2577
    %2579 = vrot.lane.b32.xlu0 %v2560, 64
    %v2580 = vpop.permute.xlu0 %2579
    %2581 = vrot.lane.b32.xlu0 %v2561, 64
    %v2582 = vpop.permute.xlu0 %2581
    %2583 = vrot.lane.b32.xlu0 %v2562, 64
    %v2584 = vpop.permute.xlu0 %2583
    %2585 = vrot.lane.b32.xlu0 %v2563, 64
    %v2586 = vpop.permute.xlu0 %2585
    %2587 = vrot.lane.b32.xlu0 %v2564, 64
    %v2588 = vpop.permute.xlu0 %2587
    %2597 = vst.msk [vmem:[#allocation3 + $0x10] sm:$0xff] %vm189, %v2574
    %2598 = vst.msk [vmem:[#allocation3 + $0x38] sm:$0xff] %vm189, %v2576
    %2599 = vst.msk [vmem:[#allocation3 + $0x60] sm:$0xff] %vm189, %v2578
    %2600 = vst.msk [vmem:[#allocation3 + $0x88] sm:$0xff] %vm189, %v2580
    %2601 = vst.msk [vmem:[#allocation3 + $0xb0] sm:$0xff] %vm189, %v2582
    %2602 = vst.msk [vmem:[#allocation3 + $0xd8] sm:$0xff] %vm189, %v2584
    %2603 = vst.msk [vmem:[#allocation3 + $0x100] sm:$0xff] %vm189, %v2586
    %2604 = vst.msk [vmem:[#allocation3 + $0x128] sm:$0xff] %vm189, %v2588
    %v2605 = vld [vmem:[%s390] sm:$0xff]
    %v2606 = vld [vmem:[%s390 + $0x10] sm:$0xff]
    %v2607 = vld [vmem:[%s390 + $0x20] sm:$0xff]
    %v2608 = vld [vmem:[%s390 + $0x30] sm:$0xff]
    %v2609 = vld [vmem:[%s390 + $0x40] sm:$0xff]
    %v2610 = vld [vmem:[%s390 + $0x50] sm:$0xff]
    %v2611 = vld [vmem:[%s390 + $0x60] sm:$0xff]
    %v2612 = vld [vmem:[%s390 + $0x70] sm:$0xff]
    %v2613 = vld [vmem:[%s390 + $0xa0] sm:$0xff]
    %v2614 = vld [vmem:[%s390 + $0xb0] sm:$0xff]
    %v2615 = vld [vmem:[%s390 + $0xc0] sm:$0xff]
    %v2616 = vld [vmem:[%s390 + $0xd0] sm:$0xff]
    %v2617 = vld [vmem:[%s390 + $0xe0] sm:$0xff]
    %v2618 = vld [vmem:[%s390 + $0xf0] sm:$0xff]
    %v2619 = vld [vmem:[%s390 + $0x100] sm:$0xff]
    %v2620 = vld [vmem:[%s390 + $0x110] sm:$0xff]
    %v2621 = vpack.c.bf16 %v2606, %v2605
    %v2622 = vpack.c.bf16 %v2608, %v2607
    %v2623 = vpack.c.bf16 %v2610, %v2609
    %v2624 = vpack.c.bf16 %v2612, %v2611
    %v2625 = vpack.c.bf16 %v2614, %v2613
    %v2626 = vpack.c.bf16 %v2616, %v2615
    %v2627 = vpack.c.bf16 %v2618, %v2617
    %v2628 = vpack.c.bf16 %v2620, %v2619
    %2629 = vst.msk [vmem:[#allocation3 + $0x18] sm:$0xff] %vm16, %v2621
    %2630 = vst.msk [vmem:[#allocation3 + $0x40] sm:$0xff] %vm16, %v2622
    %2631 = vst.msk [vmem:[#allocation3 + $0x68] sm:$0xff] %vm16, %v2623
    %2632 = vst.msk [vmem:[#allocation3 + $0x90] sm:$0xff] %vm16, %v2624
    %2633 = vst.msk [vmem:[#allocation3 + $0xb8] sm:$0xff] %vm16, %v2625
    %2634 = vst.msk [vmem:[#allocation3 + $0xe0] sm:$0xff] %vm16, %v2626
    %2635 = vst.msk [vmem:[#allocation3 + $0x108] sm:$0xff] %vm16, %v2627
    %2636 = vst.msk [vmem:[#allocation3 + $0x130] sm:$0xff] %vm16, %v2628
    %v2637 = vld [vmem:[%s390 + $0x1] sm:$0xff]
    %v2638 = vld [vmem:[%s390 + $0x11] sm:$0xff]
    %v2639 = vld [vmem:[%s390 + $0x21] sm:$0xff]
    %v2640 = vld [vmem:[%s390 + $0x31] sm:$0xff]
    %v2641 = vld [vmem:[%s390 + $0x41] sm:$0xff]
    %v2642 = vld [vmem:[%s390 + $0x51] sm:$0xff]
    %v2643 = vld [vmem:[%s390 + $0x61] sm:$0xff]
    %v2644 = vld [vmem:[%s390 + $0x71] sm:$0xff]
    %v2645 = vld [vmem:[%s390 + $0xa1] sm:$0xff]
    %v2646 = vld [vmem:[%s390 + $0xb1] sm:$0xff]
    %v2647 = vld [vmem:[%s390 + $0xc1] sm:$0xff]
    %v2648 = vld [vmem:[%s390 + $0xd1] sm:$0xff]
    %v2649 = vld [vmem:[%s390 + $0xe1] sm:$0xff]
    %v2650 = vld [vmem:[%s390 + $0xf1] sm:$0xff]
    %v2651 = vld [vmem:[%s390 + $0x101] sm:$0xff]
    %v2652 = vld [vmem:[%s390 + $0x111] sm:$0xff]
    %v2653 = vpack.c.bf16 %v2638, %v2637
    %v2654 = vpack.c.bf16 %v2640, %v2639
    %v2655 = vpack.c.bf16 %v2642, %v2641
    %v2656 = vpack.c.bf16 %v2644, %v2643
    %v2657 = vpack.c.bf16 %v2646, %v2645
    %v2658 = vpack.c.bf16 %v2648, %v2647
    %v2659 = vpack.c.bf16 %v2650, %v2649
    %v2660 = vpack.c.bf16 %v2652, %v2651
    %2669 = vrot.lane.b32.xlu0 %v2653, 64
    %v2670 = vpop.permute.xlu0 %2669
    %2671 = vrot.lane.b32.xlu0 %v2654, 64
    %v2672 = vpop.permute.xlu0 %2671
    %2673 = vrot.lane.b32.xlu0 %v2655, 64
    %v2674 = vpop.permute.xlu0 %2673
    %2675 = vrot.lane.b32.xlu0 %v2656, 64
    %v2676 = vpop.permute.xlu0 %2675
    %2677 = vrot.lane.b32.xlu0 %v2657, 64
    %v2678 = vpop.permute.xlu0 %2677
    %2679 = vrot.lane.b32.xlu0 %v2658, 64
    %v2680 = vpop.permute.xlu0 %2679
    %2681 = vrot.lane.b32.xlu0 %v2659, 64
    %v2682 = vpop.permute.xlu0 %2681
    %2683 = vrot.lane.b32.xlu0 %v2660, 64
    %v2684 = vpop.permute.xlu0 %2683
    %2693 = vst.msk [vmem:[#allocation3 + $0x18] sm:$0xff] %vm189, %v2670
    %2694 = vst.msk [vmem:[#allocation3 + $0x40] sm:$0xff] %vm189, %v2672
    %2695 = vst.msk [vmem:[#allocation3 + $0x68] sm:$0xff] %vm189, %v2674
    %2696 = vst.msk [vmem:[#allocation3 + $0x90] sm:$0xff] %vm189, %v2676
    %2697 = vst.msk [vmem:[#allocation3 + $0xb8] sm:$0xff] %vm189, %v2678
    %2698 = vst.msk [vmem:[#allocation3 + $0xe0] sm:$0xff] %vm189, %v2680
    %2699 = vst.msk [vmem:[#allocation3 + $0x108] sm:$0xff] %vm189, %v2682
    %2700 = vst.msk [vmem:[#allocation3 + $0x130] sm:$0xff] %vm189, %v2684
    %v2701 = vld [vmem:[%s390 + $0x2] sm:$0xff]
    %v2702 = vld [vmem:[%s390 + $0x12] sm:$0xff]
    %v2703 = vld [vmem:[%s390 + $0x22] sm:$0xff]
    %v2704 = vld [vmem:[%s390 + $0x32] sm:$0xff]
    %v2705 = vld [vmem:[%s390 + $0x42] sm:$0xff]
    %v2706 = vld [vmem:[%s390 + $0x52] sm:$0xff]
    %v2707 = vld [vmem:[%s390 + $0x62] sm:$0xff]
    %v2708 = vld [vmem:[%s390 + $0x72] sm:$0xff]
    %v2709 = vld [vmem:[%s390 + $0xa2] sm:$0xff]
    %v2710 = vld [vmem:[%s390 + $0xb2] sm:$0xff]
    %v2711 = vld [vmem:[%s390 + $0xc2] sm:$0xff]
    %v2712 = vld [vmem:[%s390 + $0xd2] sm:$0xff]
    %v2713 = vld [vmem:[%s390 + $0xe2] sm:$0xff]
    %v2714 = vld [vmem:[%s390 + $0xf2] sm:$0xff]
    %v2715 = vld [vmem:[%s390 + $0x102] sm:$0xff]
    %v2716 = vld [vmem:[%s390 + $0x112] sm:$0xff]
    %v2717 = vpack.c.bf16 %v2702, %v2701
    %v2718 = vpack.c.bf16 %v2704, %v2703
    %v2719 = vpack.c.bf16 %v2706, %v2705
    %v2720 = vpack.c.bf16 %v2708, %v2707
    %v2721 = vpack.c.bf16 %v2710, %v2709
    %v2722 = vpack.c.bf16 %v2712, %v2711
    %v2723 = vpack.c.bf16 %v2714, %v2713
    %v2724 = vpack.c.bf16 %v2716, %v2715
    %2725 = vst.msk [vmem:[#allocation3 + $0x20] sm:$0xff] %vm16, %v2717
    %2726 = vst.msk [vmem:[#allocation3 + $0x48] sm:$0xff] %vm16, %v2718
    %2727 = vst.msk [vmem:[#allocation3 + $0x70] sm:$0xff] %vm16, %v2719
    %2728 = vst.msk [vmem:[#allocation3 + $0x98] sm:$0xff] %vm16, %v2720
    %2729 = vst.msk [vmem:[#allocation3 + $0xc0] sm:$0xff] %vm16, %v2721
    %2730 = vst.msk [vmem:[#allocation3 + $0xe8] sm:$0xff] %vm16, %v2722
    %2731 = vst.msk [vmem:[#allocation3 + $0x110] sm:$0xff] %vm16, %v2723
    %2732 = vst.msk [vmem:[#allocation3 + $0x138] sm:$0xff] %vm16, %v2724
    %v2733 = vld [vmem:[#allocation3] sm:$0xff]
    %v2734 = vld [vmem:[#allocation3 + $0x8] sm:$0xff]
    %v2735 = vld [vmem:[#allocation3 + $0x10] sm:$0xff]
    %v2736 = vld [vmem:[#allocation3 + $0x18] sm:$0xff]
    %v2737 = vld [vmem:[#allocation3 + $0x20] sm:$0xff]
    %v2738 = vld [vmem:[#allocation3 + $0x28] sm:$0xff]
    %v2739 = vld [vmem:[#allocation3 + $0x30] sm:$0xff]
    %v2740 = vld [vmem:[#allocation3 + $0x38] sm:$0xff]
    %v2741 = vld [vmem:[#allocation3 + $0x40] sm:$0xff]
    %v2742 = vld [vmem:[#allocation3 + $0x48] sm:$0xff]
    %v2743 = vld [vmem:[#allocation3 + $0x50] sm:$0xff]
    %v2744 = vld [vmem:[#allocation3 + $0x58] sm:$0xff]
    %v2745 = vld [vmem:[#allocation3 + $0x60] sm:$0xff]
    %v2746 = vld [vmem:[#allocation3 + $0x68] sm:$0xff]
    %v2747 = vld [vmem:[#allocation3 + $0x70] sm:$0xff]
    %v2748 = vld [vmem:[#allocation3 + $0x78] sm:$0xff]
    %v2749 = vld [vmem:[#allocation3 + $0x80] sm:$0xff]
    %v2750 = vld [vmem:[#allocation3 + $0x88] sm:$0xff]
    %v2751 = vld [vmem:[#allocation3 + $0x90] sm:$0xff]
    %v2752 = vld [vmem:[#allocation3 + $0x98] sm:$0xff]
    %v2753 = vld [vmem:[#allocation3 + $0xa0] sm:$0xff]
    %v2754 = vld [vmem:[#allocation3 + $0xa8] sm:$0xff]
    %v2755 = vld [vmem:[#allocation3 + $0xb0] sm:$0xff]
    %v2756 = vld [vmem:[#allocation3 + $0xb8] sm:$0xff]
    %v2757 = vld [vmem:[#allocation3 + $0xc0] sm:$0xff]
    %v2758 = vld [vmem:[#allocation3 + $0xc8] sm:$0xff]
    %v2759 = vld [vmem:[#allocation3 + $0xd0] sm:$0xff]
    %v2760 = vld [vmem:[#allocation3 + $0xd8] sm:$0xff]
    %v2761 = vld [vmem:[#allocation3 + $0xe0] sm:$0xff]
    %v2762 = vld [vmem:[#allocation3 + $0xe8] sm:$0xff]
    %v2763 = vld [vmem:[#allocation3 + $0xf0] sm:$0xff]
    %v2764 = vld [vmem:[#allocation3 + $0xf8] sm:$0xff]
    %v2765 = vld [vmem:[#allocation3 + $0x100] sm:$0xff]
    %v2766 = vld [vmem:[#allocation3 + $0x108] sm:$0xff]
    %v2767 = vld [vmem:[#allocation3 + $0x110] sm:$0xff]
    %v2768 = vld [vmem:[#allocation3 + $0x118] sm:$0xff]
    %v2769 = vld [vmem:[#allocation3 + $0x120] sm:$0xff]
    %v2770 = vld [vmem:[#allocation3 + $0x128] sm:$0xff]
    %v2771 = vld [vmem:[#allocation3 + $0x130] sm:$0xff]
    %v2772 = vld [vmem:[#allocation3 + $0x138] sm:$0xff]
    %s2773 = scalar_lea.vmem %s1, 576
    %v2774 = vld [vmem:[%s2773] sm:$0xf]
    %v2775 = vld [vmem:[%s2773 + $0x4] sm:$0xf]
    %v2776 = vld [vmem:[%s2773 + $0x8] sm:$0xf]
    %v2777 = vld [vmem:[%s2773 + $0xc] sm:$0xf]
    %v2778 = vld [vmem:[%s2773 + $0x10] sm:$0xf]
    %v2779 = vld [vmem:[%s2773 + $0x14] sm:$0xf]
    %v2780 = vld [vmem:[%s2773 + $0x18] sm:$0xf]
    %v2781 = vld [vmem:[%s2773 + $0x1c] sm:$0xf]
    %v2782 = vld [vmem:[%s2773 + $0x20] sm:$0xf]
    %v2783 = vld [vmem:[%s2773 + $0x24] sm:$0xf]
    %v2784 = vld [vmem:[%s2773 + $0x28] sm:$0xf]
    %v2785 = vld [vmem:[%s2773 + $0x2c] sm:$0xf]
    %v2786 = vld [vmem:[%s2773 + $0x30] sm:$0xf]
    %v2787 = vld [vmem:[%s2773 + $0x34] sm:$0xf]
    %v2788 = vld [vmem:[%s2773 + $0x38] sm:$0xf]
    %v2789 = vld [vmem:[%s2773 + $0x3c] sm:$0xf]
    %v2790 = vld [vmem:[%s2773 + $0x40] sm:$0xf]
    %v2791 = vld [vmem:[%s2773 + $0x44] sm:$0xf]
    %v2792 = vld [vmem:[%s2773 + $0x48] sm:$0xf]
    %v2793 = vld [vmem:[%s2773 + $0x4c] sm:$0xf]
    %v2794 = vld [vmem:[%s2773 + $0x50] sm:$0xf]
    %v2795 = vld [vmem:[%s2773 + $0x54] sm:$0xf]
    %v2796 = vld [vmem:[%s2773 + $0x58] sm:$0xf]
    %v2797 = vld [vmem:[%s2773 + $0x5c] sm:$0xf]
    %v2798 = vld [vmem:[%s2773 + $0x60] sm:$0xf]
    %v2799 = vld [vmem:[%s2773 + $0x64] sm:$0xf]
    %v2800 = vld [vmem:[%s2773 + $0x68] sm:$0xf]
    %v2801 = vld [vmem:[%s2773 + $0x6c] sm:$0xf]
    %v2802 = vld [vmem:[%s2773 + $0x70] sm:$0xf]
    %v2803 = vld [vmem:[%s2773 + $0x74] sm:$0xf]
    %v2804 = vld [vmem:[%s2773 + $0x78] sm:$0xf]
    %v2805 = vld [vmem:[%s2773 + $0x7c] sm:$0xf]
    %v2806 = vld [vmem:[%s2773 + $0x80] sm:$0xf]
    %v2807 = vld [vmem:[%s2773 + $0x84] sm:$0xf]
    %v2808 = vld [vmem:[%s2773 + $0x88] sm:$0xf]
    %v2809 = vld [vmem:[%s2773 + $0x8c] sm:$0xf]
    %v2810 = vld [vmem:[%s2773 + $0x90] sm:$0xf]
    %v2811 = vld [vmem:[%s2773 + $0x94] sm:$0xf]
    %v2812 = vld [vmem:[%s2773 + $0x98] sm:$0xf]
    %v2813 = vld [vmem:[%s2773 + $0x9c] sm:$0xf]
    %v2814 = vld [vmem:[%s2773 + $0xa0] sm:$0xf]
    %v2815 = vld [vmem:[%s2773 + $0xa4] sm:$0xf]
    %v2816 = vld [vmem:[%s2773 + $0xa8] sm:$0xf]
    %v2817 = vld [vmem:[%s2773 + $0xac] sm:$0xf]
    %v2818 = vld [vmem:[%s2773 + $0xb0] sm:$0xf]
    %v2819 = vld [vmem:[%s2773 + $0xb4] sm:$0xf]
    %v2820 = vld [vmem:[%s2773 + $0xb8] sm:$0xf]
    %v2821 = vld [vmem:[%s2773 + $0xbc] sm:$0xf]
    %v2822 = vld [vmem:[%s2773 + $0xc0] sm:$0xf]
    %v2823 = vld [vmem:[%s2773 + $0xc4] sm:$0xf]
    %v2824 = vld [vmem:[%s2773 + $0xc8] sm:$0xf]
    %v2825 = vld [vmem:[%s2773 + $0xcc] sm:$0xf]
    %v2826 = vld [vmem:[%s2773 + $0xd0] sm:$0xf]
    %v2827 = vld [vmem:[%s2773 + $0xd4] sm:$0xf]
    %v2828 = vld [vmem:[%s2773 + $0xd8] sm:$0xf]
    %v2829 = vld [vmem:[%s2773 + $0xdc] sm:$0xf]
    %v2830 = vld [vmem:[%s2773 + $0xe0] sm:$0xf]
    %v2831 = vld [vmem:[%s2773 + $0xe4] sm:$0xf]
    %v2832 = vld [vmem:[%s2773 + $0xe8] sm:$0xf]
    %v2833 = vld [vmem:[%s2773 + $0xec] sm:$0xf]
    %v2834 = vld [vmem:[%s2773 + $0xf0] sm:$0xf]
    %v2835 = vld [vmem:[%s2773 + $0xf4] sm:$0xf]
    %v2836 = vld [vmem:[%s2773 + $0xf8] sm:$0xf]
    %v2837 = vld [vmem:[%s2773 + $0xfc] sm:$0xf]
    %v2838 = vld [vmem:[%s2773 + $0x100] sm:$0xf]
    %v2839 = vld [vmem:[%s2773 + $0x104] sm:$0xf]
    %v2840 = vld [vmem:[%s2773 + $0x108] sm:$0xf]
    %v2841 = vld [vmem:[%s2773 + $0x10c] sm:$0xf]
    %v2842 = vld [vmem:[%s2773 + $0x110] sm:$0xf]
    %v2843 = vld [vmem:[%s2773 + $0x114] sm:$0xf]
    %v2844 = vld [vmem:[%s2773 + $0x118] sm:$0xf]
    %v2845 = vld [vmem:[%s2773 + $0x11c] sm:$0xf]
    %s2846 = scalar_lea.vmem %s2, 2
    %v2847 = vld [vmem:[%s2846] sm:$0x1]
    %v2849 = vlaneseq
    %v2850 = vshrl.u32 %v2849, 7
    %v2851 = vsub.s32 0, %v2850
    %v2852 = vrot.slane %v2847, %v2851
    %v2926 = vunpack.c.l.b16 %v2774
    %v2927 = vunpack.c.l.b16 %v2775
    %v2928 = vunpack.c.l.b16 %v2776
    %v2929 = vunpack.c.l.b16 %v2777
    %v2930 = vunpack.c.l.b16 %v2778
    %v2931 = vunpack.c.l.b16 %v2779
    %v2932 = vunpack.c.l.b16 %v2780
    %v2933 = vunpack.c.l.b16 %v2781
    %v2934 = vunpack.c.l.b16 %v2782
    %v2935 = vunpack.c.l.b16 %v2783
    %v2936 = vunpack.c.l.b16 %v2784
    %v2937 = vunpack.c.l.b16 %v2785
    %v2938 = vunpack.c.l.b16 %v2786
    %v2939 = vunpack.c.l.b16 %v2787
    %v2940 = vunpack.c.l.b16 %v2788
    %v2941 = vunpack.c.l.b16 %v2789
    %v2942 = vunpack.c.l.b16 %v2790
    %v2943 = vunpack.c.l.b16 %v2791
    %v2944 = vunpack.c.l.b16 %v2792
    %v2945 = vunpack.c.l.b16 %v2793
    %v2946 = vunpack.c.l.b16 %v2794
    %v2947 = vunpack.c.l.b16 %v2795
    %v2948 = vunpack.c.l.b16 %v2796
    %v2949 = vunpack.c.l.b16 %v2797
    %v2950 = vunpack.c.l.b16 %v2798
    %v2951 = vunpack.c.l.b16 %v2799
    %v2952 = vunpack.c.l.b16 %v2800
    %v2953 = vunpack.c.l.b16 %v2801
    %v2954 = vunpack.c.l.b16 %v2802
    %v2955 = vunpack.c.l.b16 %v2803
    %v2956 = vunpack.c.l.b16 %v2804
    %v2957 = vunpack.c.l.b16 %v2805
    %v2958 = vunpack.c.l.b16 %v2806
    %v2959 = vunpack.c.l.b16 %v2807
    %v2960 = vunpack.c.l.b16 %v2808
    %v2961 = vunpack.c.l.b16 %v2809
    %v2962 = vunpack.c.l.b16 %v2810
    %v2963 = vunpack.c.l.b16 %v2811
    %v2964 = vunpack.c.l.b16 %v2812
    %v2965 = vunpack.c.l.b16 %v2813
    %v2966 = vunpack.c.l.b16 %v2814
    %v2967 = vunpack.c.l.b16 %v2815
    %v2968 = vunpack.c.l.b16 %v2816
    %v2969 = vunpack.c.l.b16 %v2817
    %v2970 = vunpack.c.l.b16 %v2818
    %v2971 = vunpack.c.l.b16 %v2819
    %v2972 = vunpack.c.l.b16 %v2820
    %v2973 = vunpack.c.l.b16 %v2821
    %v2974 = vunpack.c.l.b16 %v2822
    %v2975 = vunpack.c.l.b16 %v2823
    %v2976 = vunpack.c.l.b16 %v2824
    %v2977 = vunpack.c.l.b16 %v2825
    %v2978 = vunpack.c.l.b16 %v2826
    %v2979 = vunpack.c.l.b16 %v2827
    %v2980 = vunpack.c.l.b16 %v2828
    %v2981 = vunpack.c.l.b16 %v2829
    %v2982 = vunpack.c.l.b16 %v2830
    %v2983 = vunpack.c.l.b16 %v2831
    %v2984 = vunpack.c.l.b16 %v2832
    %v2985 = vunpack.c.l.b16 %v2833
    %v2986 = vunpack.c.l.b16 %v2834
    %v2987 = vunpack.c.l.b16 %v2835
    %v2988 = vunpack.c.l.b16 %v2836
    %v2989 = vunpack.c.l.b16 %v2837
    %v2990 = vunpack.c.l.b16 %v2838
    %v2991 = vunpack.c.l.b16 %v2839
    %v2992 = vunpack.c.l.b16 %v2840
    %v2993 = vunpack.c.l.b16 %v2841
    %v2994 = vunpack.c.l.b16 %v2842
    %v2995 = vunpack.c.l.b16 %v2843
    %v2996 = vunpack.c.l.b16 %v2844
    %v2997 = vunpack.c.l.b16 %v2845
    %v2998 = vpack.c.b16 %v2927, %v2926
    %v2999 = vpack.c.b16 %v2929, %v2928
    %v3000 = vpack.c.b16 %v2931, %v2930
    %v3001 = vpack.c.b16 %v2933, %v2932
    %v3002 = vpack.c.b16 %v2935, %v2934
    %v3003 = vpack.c.b16 %v2937, %v2936
    %v3004 = vpack.c.b16 %v2939, %v2938
    %v3005 = vpack.c.b16 %v2941, %v2940
    %v3006 = vpack.c.b16 %v2943, %v2942
    %v3007 = vpack.c.b16 %v2945, %v2944
    %v3008 = vpack.c.b16 %v2947, %v2946
    %v3009 = vpack.c.b16 %v2949, %v2948
    %v3010 = vpack.c.b16 %v2951, %v2950
    %v3011 = vpack.c.b16 %v2953, %v2952
    %v3012 = vpack.c.b16 %v2955, %v2954
    %v3013 = vpack.c.b16 %v2957, %v2956
    %v3014 = vpack.c.b16 %v2959, %v2958
    %v3015 = vpack.c.b16 %v2961, %v2960
    %v3016 = vpack.c.b16 %v2963, %v2962
    %v3017 = vpack.c.b16 %v2965, %v2964
    %v3018 = vpack.c.b16 %v2967, %v2966
    %v3019 = vpack.c.b16 %v2969, %v2968
    %v3020 = vpack.c.b16 %v2971, %v2970
    %v3021 = vpack.c.b16 %v2973, %v2972
    %v3022 = vpack.c.b16 %v2975, %v2974
    %v3023 = vpack.c.b16 %v2977, %v2976
    %v3024 = vpack.c.b16 %v2979, %v2978
    %v3025 = vpack.c.b16 %v2981, %v2980
    %v3026 = vpack.c.b16 %v2983, %v2982
    %v3027 = vpack.c.b16 %v2985, %v2984
    %v3028 = vpack.c.b16 %v2987, %v2986
    %v3029 = vpack.c.b16 %v2989, %v2988
    %v3030 = vpack.c.b16 %v2991, %v2990
    %v3031 = vpack.c.b16 %v2993, %v2992
    %v3032 = vpack.c.b16 %v2995, %v2994
    %v3033 = vpack.c.b16 %v2997, %v2996
    %v3071 = vsel %vm16, %v2737, 0
    %v3074 = vsel %vm16, %v2742, 0
    %v3077 = vsel %vm16, %v2747, 0
    %v3080 = vsel %vm16, %v2752, 0
    %v3083 = vsel %vm16, %v2757, 0
    %v3086 = vsel %vm16, %v2762, 0
    %v3089 = vsel %vm16, %v2767, 0
    %v3092 = vsel %vm16, %v2772, 0
    %3094 = vmatprep.subr.bf16.mxu0 0
    %3095 = vmatpush1.bf16.msra.mxu0 %v2998
    %3096 = vmatprep.subr.bf16.mxu0 0
    %3097 = vmatpush1.bf16.msra.mxu0 %v2999
    %3098 = vmatprep.subr.bf16.mxu0 0
    %3099 = vmatpush1.bf16.msra.mxu0 %v3000
    %3100 = vmatprep.subr.bf16.mxu0 0
    %3101 = vmatpush1.bf16.msra.mxu0 %v3001
    %3102 = vmatprep.subr.bf16.mxu0 0
    %3103 = vmatpush1.bf16.msra.mxu0 %v3002
    %3104 = vmatprep.subr.bf16.mxu0 0
    %3105 = vmatpush1.bf16.msra.mxu0 %v3003
    %3106 = vmatprep.subr.bf16.mxu0 0
    %3107 = vmatpush1.bf16.msra.mxu0 %v3004
    %3108 = vmatprep.subr.bf16.mxu0 0
    %3109 = vmatpush1.bf16.msra.mxu0 %v3005
    %3110 = vmatprep.subr.bf16.mxu0 0
    %3111 = vmatpush1.bf16.msra.mxu0 %v3006
    %3112 = vmatprep.subr.bf16.mxu0 0
    %3113 = vmatpush1.bf16.msra.mxu0 %v3007
    %3114 = vmatprep.subr.bf16.mxu0 0
    %3115 = vmatpush1.bf16.msra.mxu0 %v3008
    %3116 = vmatprep.subr.bf16.mxu0 0
    %3117 = vmatpush1.bf16.msra.mxu0 %v3009
    %3118 = vmatprep.subr.bf16.mxu0 0
    %3119 = vmatpush1.bf16.msra.mxu0 %v3010
    %3120 = vmatprep.subr.bf16.mxu0 0
    %3121 = vmatpush1.bf16.msra.mxu0 %v3011
    %3122 = vmatprep.subr.bf16.mxu0 0
    %3123 = vmatpush1.bf16.msra.mxu0 %v3012
    %3124 = vmatprep.subr.bf16.mxu0 0
    %3125 = vmatpush1.bf16.msra.mxu0 %v3013
    %3126 = vmatprep.mubr.bf16.mxu0 %v2734
    %3127 = vmatmul.mubr.bf16.gmra.mrb[0].mxu0 %v2733
    %v3128 = vpop.f32.mrb[0].mxu0
    %v3129 = vadd.f32 %v2852, %v3128
    %v3130 = vpop.f32.mrb[0].mxu0
    %v3131 = vpop.f32.mrb[0].mxu0
    %v3132 = vadd.f32 %v2852, %v3131
    %v3133 = vpop.f32.mrb[0].mxu0
    %3134 = vmatprep.mubr.bf16.mxu0 %v2739
    %3135 = vmatmul.mubr.bf16.gmra.mrb[0].mxu0 %v2738
    %v3136 = vpop.f32.mrb[0].mxu0
    %v3137 = vadd.f32 %v2852, %v3136
    %v3138 = vpop.f32.mrb[0].mxu0
    %v3139 = vpop.f32.mrb[0].mxu0
    %v3140 = vadd.f32 %v2852, %v3139
    %v3141 = vpop.f32.mrb[0].mxu0
    %3142 = vmatprep.mubr.bf16.mxu0 %v2744
    %3143 = vmatmul.mubr.bf16.gmra.mrb[0].mxu0 %v2743
    %v3144 = vpop.f32.mrb[0].mxu0
    %v3145 = vadd.f32 %v2852, %v3144
    %v3146 = vpop.f32.mrb[0].mxu0
    %v3147 = vpop.f32.mrb[0].mxu0
    %v3148 = vadd.f32 %v2852, %v3147
    %v3149 = vpop.f32.mrb[0].mxu0
    %3150 = vmatprep.mubr.bf16.mxu0 %v2749
    %3151 = vmatmul.mubr.bf16.gmra.mrb[0].mxu0 %v2748
    %v3152 = vpop.f32.mrb[0].mxu0
    %v3153 = vadd.f32 %v2852, %v3152
    %v3154 = vpop.f32.mrb[0].mxu0
    %v3155 = vpop.f32.mrb[0].mxu0
    %v3156 = vadd.f32 %v2852, %v3155
    %v3157 = vpop.f32.mrb[0].mxu0
    %3158 = vmatprep.mubr.bf16.mxu0 %v2754
    %3159 = vmatmul.mubr.bf16.gmra.mrb[0].mxu0 %v2753
    %v3160 = vpop.f32.mrb[0].mxu0
    %v3161 = vadd.f32 %v2852, %v3160
    %v3162 = vpop.f32.mrb[0].mxu0
    %v3163 = vpop.f32.mrb[0].mxu0
    %v3164 = vadd.f32 %v2852, %v3163
    %v3165 = vpop.f32.mrb[0].mxu0
    %3166 = vmatprep.mubr.bf16.mxu0 %v2759
    %3167 = vmatmul.mubr.bf16.gmra.mrb[0].mxu0 %v2758
    %v3168 = vpop.f32.mrb[0].mxu0
    %v3169 = vadd.f32 %v2852, %v3168
    %v3170 = vpop.f32.mrb[0].mxu0
    %v3171 = vpop.f32.mrb[0].mxu0
    %v3172 = vadd.f32 %v2852, %v3171
    %v3173 = vpop.f32.mrb[0].mxu0
    %3174 = vmatprep.mubr.bf16.mxu0 %v2764
    %3175 = vmatmul.mubr.bf16.gmra.mrb[0].mxu0 %v2763
    %v3176 = vpop.f32.mrb[0].mxu0
    %v3177 = vadd.f32 %v2852, %v3176
    %v3178 = vpop.f32.mrb[0].mxu0
    %v3179 = vpop.f32.mrb[0].mxu0
    %v3180 = vadd.f32 %v2852, %v3179
    %v3181 = vpop.f32.mrb[0].mxu0
    %3182 = vmatprep.mubr.bf16.mxu0 %v2769
    %3183 = vmatmul.mubr.bf16.gmra.mrb[0].mxu0 %v2768
    %v3184 = vpop.f32.mrb[0].mxu0
    %v3185 = vadd.f32 %v2852, %v3184
    %v3186 = vpop.f32.mrb[0].mxu0
    %v3187 = vpop.f32.mrb[0].mxu0
    %v3188 = vadd.f32 %v2852, %v3187
    %v3189 = vpop.f32.mrb[0].mxu0
    %3190 = vdwg.mxu0
    %3191 = vmatprep.subr.bf16.mxu0 0
    %3192 = vmatpush1.bf16.msra.mxu0 %v3014
    %3193 = vmatprep.subr.bf16.mxu0 0
    %3194 = vmatpush1.bf16.msra.mxu0 %v3015
    %3195 = vmatprep.subr.bf16.mxu0 0
    %3196 = vmatpush1.bf16.msra.mxu0 %v3016
    %3197 = vmatprep.subr.bf16.mxu0 0
    %3198 = vmatpush1.bf16.msra.mxu0 %v3017
    %3199 = vmatprep.subr.bf16.mxu0 0
    %3200 = vmatpush1.bf16.msra.mxu0 %v3018
    %3201 = vmatprep.subr.bf16.mxu0 0
    %3202 = vmatpush1.bf16.msra.mxu0 %v3019
    %3203 = vmatprep.subr.bf16.mxu0 0
    %3204 = vmatpush1.bf16.msra.mxu0 %v3020
    %3205 = vmatprep.subr.bf16.mxu0 0
    %3206 = vmatpush1.bf16.msra.mxu0 %v3021
    %3207 = vmatprep.subr.bf16.mxu0 0
    %3208 = vmatpush1.bf16.msra.mxu0 %v3022
    %3209 = vmatprep.subr.bf16.mxu0 0
    %3210 = vmatpush1.bf16.msra.mxu0 %v3023
    %3211 = vmatprep.subr.bf16.mxu0 0
    %3212 = vmatpush1.bf16.msra.mxu0 %v3024
    %3213 = vmatprep.subr.bf16.mxu0 0
    %3214 = vmatpush1.bf16.msra.mxu0 %v3025
    %3215 = vmatprep.subr.bf16.mxu0 0
    %3216 = vmatpush1.bf16.msra.mxu0 %v3026
    %3217 = vmatprep.subr.bf16.mxu0 0
    %3218 = vmatpush1.bf16.msra.mxu0 %v3027
    %3219 = vmatprep.subr.bf16.mxu0 0
    %3220 = vmatpush1.bf16.msra.mxu0 %v3028
    %3221 = vmatprep.subr.bf16.mxu0 0
    %3222 = vmatpush1.bf16.msra.mxu0 %v3029
    %3223 = vmatprep.mubr.bf16.mxu0 %v2736
    %3224 = vmatmul.mubr.bf16.gmra.mrb[0].mxu0 %v2735
    %v3225 = vpop.f32.mrb[0].mxu0
    %v3226 = vadd.f32 %v3129, %v3225
    %v3227 = vpop.f32.mrb[0].mxu0
    %v3228 = vpop.f32.mrb[0].mxu0
    %v3229 = vadd.f32 %v3132, %v3228
    %v3230 = vpop.f32.mrb[0].mxu0
    %3231 = vmatprep.mubr.bf16.mxu0 %v2741
    %3232 = vmatmul.mubr.bf16.gmra.mrb[0].mxu0 %v2740
    %v3233 = vpop.f32.mrb[0].mxu0
    %v3234 = vadd.f32 %v3137, %v3233
    %v3235 = vpop.f32.mrb[0].mxu0
    %v3236 = vpop.f32.mrb[0].mxu0
    %v3237 = vadd.f32 %v3140, %v3236
    %v3238 = vpop.f32.mrb[0].mxu0
    %3239 = vmatprep.mubr.bf16.mxu0 %v2746
    %3240 = vmatmul.mubr.bf16.gmra.mrb[0].mxu0 %v2745
    %v3241 = vpop.f32.mrb[0].mxu0
    %v3242 = vadd.f32 %v3145, %v3241
    %v3243 = vpop.f32.mrb[0].mxu0
    %v3244 = vpop.f32.mrb[0].mxu0
    %v3245 = vadd.f32 %v3148, %v3244
    %v3246 = vpop.f32.mrb[0].mxu0
    %3247 = vmatprep.mubr.bf16.mxu0 %v2751
    %3248 = vmatmul.mubr.bf16.gmra.mrb[0].mxu0 %v2750
    %v3249 = vpop.f32.mrb[0].mxu0
    %v3250 = vadd.f32 %v3153, %v3249
    %v3251 = vpop.f32.mrb[0].mxu0
    %v3252 = vpop.f32.mrb[0].mxu0
    %v3253 = vadd.f32 %v3156, %v3252
    %v3254 = vpop.f32.mrb[0].mxu0
    %3255 = vmatprep.mubr.bf16.mxu0 %v2756
    %3256 = vmatmul.mubr.bf16.gmra.mrb[0].mxu0 %v2755
    %v3257 = vpop.f32.mrb[0].mxu0
    %v3258 = vadd.f32 %v3161, %v3257
    %v3259 = vpop.f32.mrb[0].mxu0
    %v3260 = vpop.f32.mrb[0].mxu0
    %v3261 = vadd.f32 %v3164, %v3260
    %v3262 = vpop.f32.mrb[0].mxu0
    %3263 = vmatprep.mubr.bf16.mxu0 %v2761
    %3264 = vmatmul.mubr.bf16.gmra.mrb[0].mxu0 %v2760
    %v3265 = vpop.f32.mrb[0].mxu0
    %v3266 = vadd.f32 %v3169, %v3265
    %v3267 = vpop.f32.mrb[0].mxu0
    %v3268 = vpop.f32.mrb[0].mxu0
    %v3269 = vadd.f32 %v3172, %v3268
    %v3270 = vpop.f32.mrb[0].mxu0
    %3271 = vmatprep.mubr.bf16.mxu0 %v2766
    %3272 = vmatmul.mubr.bf16.gmra.mrb[0].mxu0 %v2765
    %v3273 = vpop.f32.mrb[0].mxu0
    %v3274 = vadd.f32 %v3177, %v3273
    %v3275 = vpop.f32.mrb[0].mxu0
    %v3276 = vpop.f32.mrb[0].mxu0
    %v3277 = vadd.f32 %v3180, %v3276
    %v3278 = vpop.f32.mrb[0].mxu0
    %3279 = vmatprep.mubr.bf16.mxu0 %v2771
    %3280 = vmatmul.mubr.bf16.gmra.mrb[0].mxu0 %v2770
    %v3281 = vpop.f32.mrb[0].mxu0
    %v3282 = vadd.f32 %v3185, %v3281
    %v3283 = vpop.f32.mrb[0].mxu0
    %v3284 = vpop.f32.mrb[0].mxu0
    %v3285 = vadd.f32 %v3188, %v3284
    %v3286 = vpop.f32.mrb[0].mxu0
    %3287 = vdwg.mxu0
    %3288 = vmatprep.subr.bf16.mxu0 0
    %3289 = vmatpush1.bf16.msra.mxu0 %v3030
    %3290 = vmatprep.subr.bf16.mxu0 0
    %3291 = vmatpush1.bf16.msra.mxu0 %v3031
    %3292 = vmatprep.subr.bf16.mxu0 0
    %3293 = vmatpush1.bf16.msra.mxu0 %v3032
    %3294 = vmatprep.subr.bf16.mxu0 0
    %3295 = vmatpush1.bf16.msra.mxu0 %v3033
    %3296 = vmatprep.subr.bf16.mxu0 0
    %3297 = vmatpush1.bf16.msra.mxu0 0
    %3298 = vmatprep.subr.bf16.mxu0 0
    %3299 = vmatpush1.bf16.msra.mxu0 0
    %3300 = vmatprep.subr.bf16.mxu0 0
    %3301 = vmatpush1.bf16.msra.mxu0 0
    %3302 = vmatprep.subr.bf16.mxu0 0
    %3303 = vmatpush1.bf16.msra.mxu0 0
    %3304 = vmatprep.subr.bf16.mxu0 0
    %3305 = vmatpush1.bf16.msra.mxu0 0
    %3306 = vmatprep.subr.bf16.mxu0 0
    %3307 = vmatpush1.bf16.msra.mxu0 0
    %3308 = vmatprep.subr.bf16.mxu0 0
    %3309 = vmatpush1.bf16.msra.mxu0 0
    %3310 = vmatprep.subr.bf16.mxu0 0
    %3311 = vmatpush1.bf16.msra.mxu0 0
    %3312 = vmatprep.subr.bf16.mxu0 0
    %3313 = vmatpush1.bf16.msra.mxu0 0
    %3314 = vmatprep.subr.bf16.mxu0 0
    %3315 = vmatpush1.bf16.msra.mxu0 0
    %3316 = vmatprep.subr.bf16.mxu0 0
    %3317 = vmatpush1.bf16.msra.mxu0 0
    %3318 = vmatprep.subr.bf16.mxu0 0
    %3319 = vmatpush1.bf16.msra.mxu0 0
    %3320 = vmatprep.mubr.bf16.mxu0 0
    %3321 = vmatmul.mubr.bf16.gmra.mrb[0].mxu0 %v3071
    %v3322 = vpop.f32.mrb[0].mxu0
    %v3323 = vadd.f32 %v3226, %v3322
    %v3324 = vpop.f32.mrb[0].mxu0
    %v3325 = vpop.f32.mrb[0].mxu0
    %v3326 = vadd.f32 %v3229, %v3325
    %v3327 = vpop.f32.mrb[0].mxu0
    %3328 = vmatprep.mubr.bf16.mxu0 0
    %3329 = vmatmul.mubr.bf16.gmra.mrb[0].mxu0 %v3074
    %v3330 = vpop.f32.mrb[0].mxu0
    %v3331 = vadd.f32 %v3234, %v3330
    %v3332 = vpop.f32.mrb[0].mxu0
    %v3333 = vpop.f32.mrb[0].mxu0
    %v3334 = vadd.f32 %v3237, %v3333
    %v3335 = vpop.f32.mrb[0].mxu0
    %3336 = vmatprep.mubr.bf16.mxu0 0
    %3337 = vmatmul.mubr.bf16.gmra.mrb[0].mxu0 %v3077
    %v3338 = vpop.f32.mrb[0].mxu0
    %v3339 = vadd.f32 %v3242, %v3338
    %v3340 = vpop.f32.mrb[0].mxu0
    %v3341 = vpop.f32.mrb[0].mxu0
    %v3342 = vadd.f32 %v3245, %v3341
    %v3343 = vpop.f32.mrb[0].mxu0
    %3344 = vmatprep.mubr.bf16.mxu0 0
    %3345 = vmatmul.mubr.bf16.gmra.mrb[0].mxu0 %v3080
    %v3346 = vpop.f32.mrb[0].mxu0
    %v3347 = vadd.f32 %v3250, %v3346
    %v3348 = vpop.f32.mrb[0].mxu0
    %v3349 = vpop.f32.mrb[0].mxu0
    %v3350 = vadd.f32 %v3253, %v3349
    %v3351 = vpop.f32.mrb[0].mxu0
    %3352 = vmatprep.mubr.bf16.mxu0 0
    %3353 = vmatmul.mubr.bf16.gmra.mrb[0].mxu0 %v3083
    %v3354 = vpop.f32.mrb[0].mxu0
    %v3355 = vadd.f32 %v3258, %v3354
    %v3356 = vpop.f32.mrb[0].mxu0
    %v3357 = vpop.f32.mrb[0].mxu0
    %v3358 = vadd.f32 %v3261, %v3357
    %v3359 = vpop.f32.mrb[0].mxu0
    %3360 = vmatprep.mubr.bf16.mxu0 0
    %3361 = vmatmul.mubr.bf16.gmra.mrb[0].mxu0 %v3086
    %v3362 = vpop.f32.mrb[0].mxu0
    %v3363 = vadd.f32 %v3266, %v3362
    %v3364 = vpop.f32.mrb[0].mxu0
    %v3365 = vpop.f32.mrb[0].mxu0
    %v3366 = vadd.f32 %v3269, %v3365
    %v3367 = vpop.f32.mrb[0].mxu0
    %3368 = vmatprep.mubr.bf16.mxu0 0
    %3369 = vmatmul.mubr.bf16.gmra.mrb[0].mxu0 %v3089
    %v3370 = vpop.f32.mrb[0].mxu0
    %v3371 = vadd.f32 %v3274, %v3370
    %v3372 = vpop.f32.mrb[0].mxu0
    %v3373 = vpop.f32.mrb[0].mxu0
    %v3374 = vadd.f32 %v3277, %v3373
    %v3375 = vpop.f32.mrb[0].mxu0
    %3376 = vmatprep.mubr.bf16.mxu0 0
    %3377 = vmatmul.mubr.bf16.gmra.mrb[0].mxu0 %v3092
    %v3378 = vpop.f32.mrb[0].mxu0
    %v3379 = vadd.f32 %v3282, %v3378
    %v3380 = vpop.f32.mrb[0].mxu0
    %v3381 = vpop.f32.mrb[0].mxu0
    %v3382 = vadd.f32 %v3285, %v3381
    %v3383 = vpop.f32.mrb[0].mxu0
    %3384 = vdwg.mxu0
    %v3385 = vmax.f32 %v3323, 0.0
    %v3386 = vmax.f32 %v3326, 0.0
    %v3387 = vmax.f32 %v3331, 0.0
    %v3388 = vmax.f32 %v3334, 0.0
    %v3389 = vmax.f32 %v3339, 0.0
    %v3390 = vmax.f32 %v3342, 0.0
    %v3391 = vmax.f32 %v3347, 0.0
    %v3392 = vmax.f32 %v3350, 0.0
    %v3393 = vmax.f32 %v3355, 0.0
    %v3394 = vmax.f32 %v3358, 0.0
    %v3395 = vmax.f32 %v3363, 0.0
    %v3396 = vmax.f32 %v3366, 0.0
    %v3397 = vmax.f32 %v3371, 0.0
    %v3398 = vmax.f32 %v3374, 0.0
    %v3399 = vmax.f32 %v3379, 0.0
    %v3400 = vmax.f32 %v3382, 0.0
    %3401 = vst.msk [vmem:[%s84 + $0x1] sm:$0xff] %vm16, %v3385
    %3402 = vst.msk [vmem:[%s84 + $0x11] sm:$0xff] %vm16, %v3386
    %3403 = vst.msk [vmem:[%s84 + $0x21] sm:$0xff] %vm16, %v3387
    %3404 = vst.msk [vmem:[%s84 + $0x31] sm:$0xff] %vm16, %v3388
    %3405 = vst.msk [vmem:[%s84 + $0x41] sm:$0xff] %vm16, %v3389
    %3406 = vst.msk [vmem:[%s84 + $0x51] sm:$0xff] %vm16, %v3390
    %3407 = vst.msk [vmem:[%s84 + $0x61] sm:$0xff] %vm16, %v3391
    %3408 = vst.msk [vmem:[%s84 + $0x71] sm:$0xff] %vm16, %v3392
    %3409 = vst.msk [vmem:[%s84 + $0xa1] sm:$0xff] %vm16, %v3393
    %3410 = vst.msk [vmem:[%s84 + $0xb1] sm:$0xff] %vm16, %v3394
    %3411 = vst.msk [vmem:[%s84 + $0xc1] sm:$0xff] %vm16, %v3395
    %3412 = vst.msk [vmem:[%s84 + $0xd1] sm:$0xff] %vm16, %v3396
    %3413 = vst.msk [vmem:[%s84 + $0xe1] sm:$0xff] %vm16, %v3397
    %3414 = vst.msk [vmem:[%s84 + $0xf1] sm:$0xff] %vm16, %v3398
    %3415 = vst.msk [vmem:[%s84 + $0x101] sm:$0xff] %vm16, %v3399
    %3416 = vst.msk [vmem:[%s84 + $0x111] sm:$0xff] %vm16, %v3400
    %v3417 = vld [vmem:[#allocation2] sm:$0xff]
    %v3418 = vld [vmem:[#allocation2 + $0x10] sm:$0xff]
    %v3419 = vld [vmem:[#allocation2 + $0x20] sm:$0xff]
    %v3420 = vld [vmem:[#allocation2 + $0x30] sm:$0xff]
    %v3421 = vld [vmem:[#allocation2 + $0x40] sm:$0xff]
    %v3422 = vld [vmem:[#allocation2 + $0x50] sm:$0xff]
    %v3423 = vld [vmem:[#allocation2 + $0x60] sm:$0xff]
    %v3424 = vld [vmem:[#allocation2 + $0x70] sm:$0xff]
    %v3425 = vld [vmem:[#allocation2 + $0xa0] sm:$0xff]
    %v3426 = vld [vmem:[#allocation2 + $0xb0] sm:$0xff]
    %v3427 = vld [vmem:[#allocation2 + $0xc0] sm:$0xff]
    %v3428 = vld [vmem:[#allocation2 + $0xd0] sm:$0xff]
    %v3429 = vld [vmem:[#allocation2 + $0xe0] sm:$0xff]
    %v3430 = vld [vmem:[#allocation2 + $0xf0] sm:$0xff]
    %v3431 = vld [vmem:[#allocation2 + $0x100] sm:$0xff]
    %v3432 = vld [vmem:[#allocation2 + $0x110] sm:$0xff]
    %v3433 = vpack.c.bf16 %v3418, %v3417
    %v3434 = vpack.c.bf16 %v3420, %v3419
    %v3435 = vpack.c.bf16 %v3422, %v3421
    %v3436 = vpack.c.bf16 %v3424, %v3423
    %v3437 = vpack.c.bf16 %v3426, %v3425
    %v3438 = vpack.c.bf16 %v3428, %v3427
    %v3439 = vpack.c.bf16 %v3430, %v3429
    %v3440 = vpack.c.bf16 %v3432, %v3431
    %3441 = vst.msk [vmem:[#allocation3] sm:$0xff] %vm16, %v3433
    %3442 = vst.msk [vmem:[#allocation3 + $0x28] sm:$0xff] %vm16, %v3434
    %3443 = vst.msk [vmem:[#allocation3 + $0x50] sm:$0xff] %vm16, %v3435
    %3444 = vst.msk [vmem:[#allocation3 + $0x78] sm:$0xff] %vm16, %v3436
    %3445 = vst.msk [vmem:[#allocation3 + $0xa0] sm:$0xff] %vm16, %v3437
    %3446 = vst.msk [vmem:[#allocation3 + $0xc8] sm:$0xff] %vm16, %v3438
    %3447 = vst.msk [vmem:[#allocation3 + $0xf0] sm:$0xff] %vm16, %v3439
    %3448 = vst.msk [vmem:[#allocation3 + $0x118] sm:$0xff] %vm16, %v3440
    %v3449 = vld [vmem:[#allocation2 + $0x1] sm:$0xff]
    %v3450 = vld [vmem:[#allocation2 + $0x11] sm:$0xff]
    %v3451 = vld [vmem:[#allocation2 + $0x21] sm:$0xff]
    %v3452 = vld [vmem:[#allocation2 + $0x31] sm:$0xff]
    %v3453 = vld [vmem:[#allocation2 + $0x41] sm:$0xff]
    %v3454 = vld [vmem:[#allocation2 + $0x51] sm:$0xff]
    %v3455 = vld [vmem:[#allocation2 + $0x61] sm:$0xff]
    %v3456 = vld [vmem:[#allocation2 + $0x71] sm:$0xff]
    %v3457 = vld [vmem:[#allocation2 + $0xa1] sm:$0xff]
    %v3458 = vld [vmem:[#allocation2 + $0xb1] sm:$0xff]
    %v3459 = vld [vmem:[#allocation2 + $0xc1] sm:$0xff]
    %v3460 = vld [vmem:[#allocation2 + $0xd1] sm:$0xff]
    %v3461 = vld [vmem:[#allocation2 + $0xe1] sm:$0xff]
    %v3462 = vld [vmem:[#allocation2 + $0xf1] sm:$0xff]
    %v3463 = vld [vmem:[#allocation2 + $0x101] sm:$0xff]
    %v3464 = vld [vmem:[#allocation2 + $0x111] sm:$0xff]
    %v3465 = vpack.c.bf16 %v3450, %v3449
    %v3466 = vpack.c.bf16 %v3452, %v3451
    %v3467 = vpack.c.bf16 %v3454, %v3453
    %v3468 = vpack.c.bf16 %v3456, %v3455
    %v3469 = vpack.c.bf16 %v3458, %v3457
    %v3470 = vpack.c.bf16 %v3460, %v3459
    %v3471 = vpack.c.bf16 %v3462, %v3461
    %v3472 = vpack.c.bf16 %v3464, %v3463
    %3481 = vrot.lane.b32.xlu0 %v3465, 64
    %v3482 = vpop.permute.xlu0 %3481
    %3483 = vrot.lane.b32.xlu0 %v3466, 64
    %v3484 = vpop.permute.xlu0 %3483
    %3485 = vrot.lane.b32.xlu0 %v3467, 64
    %v3486 = vpop.permute.xlu0 %3485
    %3487 = vrot.lane.b32.xlu0 %v3468, 64
    %v3488 = vpop.permute.xlu0 %3487
    %3489 = vrot.lane.b32.xlu0 %v3469, 64
    %v3490 = vpop.permute.xlu0 %3489
    %3491 = vrot.lane.b32.xlu0 %v3470, 64
    %v3492 = vpop.permute.xlu0 %3491
    %3493 = vrot.lane.b32.xlu0 %v3471, 64
    %v3494 = vpop.permute.xlu0 %3493
    %3495 = vrot.lane.b32.xlu0 %v3472, 64
    %v3496 = vpop.permute.xlu0 %3495
    %3505 = vst.msk [vmem:[#allocation3] sm:$0xff] %vm189, %v3482
    %3506 = vst.msk [vmem:[#allocation3 + $0x28] sm:$0xff] %vm189, %v3484
    %3507 = vst.msk [vmem:[#allocation3 + $0x50] sm:$0xff] %vm189, %v3486
    %3508 = vst.msk [vmem:[#allocation3 + $0x78] sm:$0xff] %vm189, %v3488
    %3509 = vst.msk [vmem:[#allocation3 + $0xa0] sm:$0xff] %vm189, %v3490
    %3510 = vst.msk [vmem:[#allocation3 + $0xc8] sm:$0xff] %vm189, %v3492
    %3511 = vst.msk [vmem:[#allocation3 + $0xf0] sm:$0xff] %vm189, %v3494
    %3512 = vst.msk [vmem:[#allocation3 + $0x118] sm:$0xff] %vm189, %v3496
    %v3513 = vld [vmem:[#allocation2 + $0x2] sm:$0xff]
    %v3514 = vld [vmem:[#allocation2 + $0x12] sm:$0xff]
    %v3515 = vld [vmem:[#allocation2 + $0x22] sm:$0xff]
    %v3516 = vld [vmem:[#allocation2 + $0x32] sm:$0xff]
    %v3517 = vld [vmem:[#allocation2 + $0x42] sm:$0xff]
    %v3518 = vld [vmem:[#allocation2 + $0x52] sm:$0xff]
    %v3519 = vld [vmem:[#allocation2 + $0x62] sm:$0xff]
    %v3520 = vld [vmem:[#allocation2 + $0x72] sm:$0xff]
    %v3521 = vld [vmem:[#allocation2 + $0xa2] sm:$0xff]
    %v3522 = vld [vmem:[#allocation2 + $0xb2] sm:$0xff]
    %v3523 = vld [vmem:[#allocation2 + $0xc2] sm:$0xff]
    %v3524 = vld [vmem:[#allocation2 + $0xd2] sm:$0xff]
    %v3525 = vld [vmem:[#allocation2 + $0xe2] sm:$0xff]
    %v3526 = vld [vmem:[#allocation2 + $0xf2] sm:$0xff]
    %v3527 = vld [vmem:[#allocation2 + $0x102] sm:$0xff]
    %v3528 = vld [vmem:[#allocation2 + $0x112] sm:$0xff]
    %v3529 = vpack.c.bf16 %v3514, %v3513
    %v3530 = vpack.c.bf16 %v3516, %v3515
    %v3531 = vpack.c.bf16 %v3518, %v3517
    %v3532 = vpack.c.bf16 %v3520, %v3519
    %v3533 = vpack.c.bf16 %v3522, %v3521
    %v3534 = vpack.c.bf16 %v3524, %v3523
    %v3535 = vpack.c.bf16 %v3526, %v3525
    %v3536 = vpack.c.bf16 %v3528, %v3527
    %3537 = vst.msk [vmem:[#allocation3 + $0x8] sm:$0xff] %vm16, %v3529
    %3538 = vst.msk [vmem:[#allocation3 + $0x30] sm:$0xff] %vm16, %v3530
    %3539 = vst.msk [vmem:[#allocation3 + $0x58] sm:$0xff] %vm16, %v3531
    %3540 = vst.msk [vmem:[#allocation3 + $0x80] sm:$0xff] %vm16, %v3532
    %3541 = vst.msk [vmem:[#allocation3 + $0xa8] sm:$0xff] %vm16, %v3533
    %3542 = vst.msk [vmem:[#allocation3 + $0xd0] sm:$0xff] %vm16, %v3534
    %3543 = vst.msk [vmem:[#allocation3 + $0xf8] sm:$0xff] %vm16, %v3535
    %3544 = vst.msk [vmem:[#allocation3 + $0x120] sm:$0xff] %vm16, %v3536
    %v3545 = vld [vmem:[%s84] sm:$0xff]
    %v3546 = vld [vmem:[%s84 + $0x10] sm:$0xff]
    %v3547 = vld [vmem:[%s84 + $0x20] sm:$0xff]
    %v3548 = vld [vmem:[%s84 + $0x30] sm:$0xff]
    %v3549 = vld [vmem:[%s84 + $0x40] sm:$0xff]
    %v3550 = vld [vmem:[%s84 + $0x50] sm:$0xff]
    %v3551 = vld [vmem:[%s84 + $0x60] sm:$0xff]
    %v3552 = vld [vmem:[%s84 + $0x70] sm:$0xff]
    %v3553 = vld [vmem:[%s84 + $0xa0] sm:$0xff]
    %v3554 = vld [vmem:[%s84 + $0xb0] sm:$0xff]
    %v3555 = vld [vmem:[%s84 + $0xc0] sm:$0xff]
    %v3556 = vld [vmem:[%s84 + $0xd0] sm:$0xff]
    %v3557 = vld [vmem:[%s84 + $0xe0] sm:$0xff]
    %v3558 = vld [vmem:[%s84 + $0xf0] sm:$0xff]
    %v3559 = vld [vmem:[%s84 + $0x100] sm:$0xff]
    %v3560 = vld [vmem:[%s84 + $0x110] sm:$0xff]
    %v3561 = vpack.c.bf16 %v3546, %v3545
    %v3562 = vpack.c.bf16 %v3548, %v3547
    %v3563 = vpack.c.bf16 %v3550, %v3549
    %v3564 = vpack.c.bf16 %v3552, %v3551
    %v3565 = vpack.c.bf16 %v3554, %v3553
    %v3566 = vpack.c.bf16 %v3556, %v3555
    %v3567 = vpack.c.bf16 %v3558, %v3557
    %v3568 = vpack.c.bf16 %v3560, %v3559
    %3577 = vrot.lane.b32.xlu0 %v3561, 64
    %v3578 = vpop.permute.xlu0 %3577
    %3579 = vrot.lane.b32.xlu0 %v3562, 64
    %v3580 = vpop.permute.xlu0 %3579
    %3581 = vrot.lane.b32.xlu0 %v3563, 64
    %v3582 = vpop.permute.xlu0 %3581
    %3583 = vrot.lane.b32.xlu0 %v3564, 64
    %v3584 = vpop.permute.xlu0 %3583
    %3585 = vrot.lane.b32.xlu0 %v3565, 64
    %v3586 = vpop.permute.xlu0 %3585
    %3587 = vrot.lane.b32.xlu0 %v3566, 64
    %v3588 = vpop.permute.xlu0 %3587
    %3589 = vrot.lane.b32.xlu0 %v3567, 64
    %v3590 = vpop.permute.xlu0 %3589
    %3591 = vrot.lane.b32.xlu0 %v3568, 64
    %v3592 = vpop.permute.xlu0 %3591
    %3601 = vst.msk [vmem:[#allocation3 + $0x8] sm:$0xff] %vm189, %v3578
    %3602 = vst.msk [vmem:[#allocation3 + $0x30] sm:$0xff] %vm189, %v3580
    %3603 = vst.msk [vmem:[#allocation3 + $0x58] sm:$0xff] %vm189, %v3582
    %3604 = vst.msk [vmem:[#allocation3 + $0x80] sm:$0xff] %vm189, %v3584
    %3605 = vst.msk [vmem:[#allocation3 + $0xa8] sm:$0xff] %vm189, %v3586
    %3606 = vst.msk [vmem:[#allocation3 + $0xd0] sm:$0xff] %vm189, %v3588
    %3607 = vst.msk [vmem:[#allocation3 + $0xf8] sm:$0xff] %vm189, %v3590
    %3608 = vst.msk [vmem:[#allocation3 + $0x120] sm:$0xff] %vm189, %v3592
    %v3609 = vld [vmem:[%s84 + $0x1] sm:$0xff]
    %v3610 = vld [vmem:[%s84 + $0x11] sm:$0xff]
    %v3611 = vld [vmem:[%s84 + $0x21] sm:$0xff]
    %v3612 = vld [vmem:[%s84 + $0x31] sm:$0xff]
    %v3613 = vld [vmem:[%s84 + $0x41] sm:$0xff]
    %v3614 = vld [vmem:[%s84 + $0x51] sm:$0xff]
    %v3615 = vld [vmem:[%s84 + $0x61] sm:$0xff]
    %v3616 = vld [vmem:[%s84 + $0x71] sm:$0xff]
    %v3617 = vld [vmem:[%s84 + $0xa1] sm:$0xff]
    %v3618 = vld [vmem:[%s84 + $0xb1] sm:$0xff]
    %v3619 = vld [vmem:[%s84 + $0xc1] sm:$0xff]
    %v3620 = vld [vmem:[%s84 + $0xd1] sm:$0xff]
    %v3621 = vld [vmem:[%s84 + $0xe1] sm:$0xff]
    %v3622 = vld [vmem:[%s84 + $0xf1] sm:$0xff]
    %v3623 = vld [vmem:[%s84 + $0x101] sm:$0xff]
    %v3624 = vld [vmem:[%s84 + $0x111] sm:$0xff]
    %v3625 = vpack.c.bf16 %v3610, %v3609
    %v3626 = vpack.c.bf16 %v3612, %v3611
    %v3627 = vpack.c.bf16 %v3614, %v3613
    %v3628 = vpack.c.bf16 %v3616, %v3615
    %v3629 = vpack.c.bf16 %v3618, %v3617
    %v3630 = vpack.c.bf16 %v3620, %v3619
    %v3631 = vpack.c.bf16 %v3622, %v3621
    %v3632 = vpack.c.bf16 %v3624, %v3623
    %3633 = vst.msk [vmem:[#allocation3 + $0x10] sm:$0xff] %vm16, %v3625
    %3634 = vst.msk [vmem:[#allocation3 + $0x38] sm:$0xff] %vm16, %v3626
    %3635 = vst.msk [vmem:[#allocation3 + $0x60] sm:$0xff] %vm16, %v3627
    %3636 = vst.msk [vmem:[#allocation3 + $0x88] sm:$0xff] %vm16, %v3628
    %3637 = vst.msk [vmem:[#allocation3 + $0xb0] sm:$0xff] %vm16, %v3629
    %3638 = vst.msk [vmem:[#allocation3 + $0xd8] sm:$0xff] %vm16, %v3630
    %3639 = vst.msk [vmem:[#allocation3 + $0x100] sm:$0xff] %vm16, %v3631
    %3640 = vst.msk [vmem:[#allocation3 + $0x128] sm:$0xff] %vm16, %v3632
    %v3641 = vld [vmem:[%s84 + $0x2] sm:$0xff]
    %v3642 = vld [vmem:[%s84 + $0x12] sm:$0xff]
    %v3643 = vld [vmem:[%s84 + $0x22] sm:$0xff]
    %v3644 = vld [vmem:[%s84 + $0x32] sm:$0xff]
    %v3645 = vld [vmem:[%s84 + $0x42] sm:$0xff]
    %v3646 = vld [vmem:[%s84 + $0x52] sm:$0xff]
    %v3647 = vld [vmem:[%s84 + $0x62] sm:$0xff]
    %v3648 = vld [vmem:[%s84 + $0x72] sm:$0xff]
    %v3649 = vld [vmem:[%s84 + $0xa2] sm:$0xff]
    %v3650 = vld [vmem:[%s84 + $0xb2] sm:$0xff]
    %v3651 = vld [vmem:[%s84 + $0xc2] sm:$0xff]
    %v3652 = vld [vmem:[%s84 + $0xd2] sm:$0xff]
    %v3653 = vld [vmem:[%s84 + $0xe2] sm:$0xff]
    %v3654 = vld [vmem:[%s84 + $0xf2] sm:$0xff]
    %v3655 = vld [vmem:[%s84 + $0x102] sm:$0xff]
    %v3656 = vld [vmem:[%s84 + $0x112] sm:$0xff]
    %v3657 = vpack.c.bf16 %v3642, %v3641
    %v3658 = vpack.c.bf16 %v3644, %v3643
    %v3659 = vpack.c.bf16 %v3646, %v3645
    %v3660 = vpack.c.bf16 %v3648, %v3647
    %v3661 = vpack.c.bf16 %v3650, %v3649
    %v3662 = vpack.c.bf16 %v3652, %v3651
    %v3663 = vpack.c.bf16 %v3654, %v3653
    %v3664 = vpack.c.bf16 %v3656, %v3655
    %3673 = vrot.lane.b32.xlu0 %v3657, 64
    %v3674 = vpop.permute.xlu0 %3673
    %3675 = vrot.lane.b32.xlu0 %v3658, 64
    %v3676 = vpop.permute.xlu0 %3675
    %3677 = vrot.lane.b32.xlu0 %v3659, 64
    %v3678 = vpop.permute.xlu0 %3677
    %3679 = vrot.lane.b32.xlu0 %v3660, 64
    %v3680 = vpop.permute.xlu0 %3679
    %3681 = vrot.lane.b32.xlu0 %v3661, 64
    %v3682 = vpop.permute.xlu0 %3681
    %3683 = vrot.lane.b32.xlu0 %v3662, 64
    %v3684 = vpop.permute.xlu0 %3683
    %3685 = vrot.lane.b32.xlu0 %v3663, 64
    %v3686 = vpop.permute.xlu0 %3685
    %3687 = vrot.lane.b32.xlu0 %v3664, 64
    %v3688 = vpop.permute.xlu0 %3687
    %3697 = vst.msk [vmem:[#allocation3 + $0x10] sm:$0xff] %vm189, %v3674
    %3698 = vst.msk [vmem:[#allocation3 + $0x38] sm:$0xff] %vm189, %v3676
    %3699 = vst.msk [vmem:[#allocation3 + $0x60] sm:$0xff] %vm189, %v3678
    %3700 = vst.msk [vmem:[#allocation3 + $0x88] sm:$0xff] %vm189, %v3680
    %3701 = vst.msk [vmem:[#allocation3 + $0xb0] sm:$0xff] %vm189, %v3682
    %3702 = vst.msk [vmem:[#allocation3 + $0xd8] sm:$0xff] %vm189, %v3684
    %3703 = vst.msk [vmem:[#allocation3 + $0x100] sm:$0xff] %vm189, %v3686
    %3704 = vst.msk [vmem:[#allocation3 + $0x128] sm:$0xff] %vm189, %v3688
    %v3705 = vld [vmem:[%s390] sm:$0xff]
    %v3706 = vld [vmem:[%s390 + $0x10] sm:$0xff]
    %v3707 = vld [vmem:[%s390 + $0x20] sm:$0xff]
    %v3708 = vld [vmem:[%s390 + $0x30] sm:$0xff]
    %v3709 = vld [vmem:[%s390 + $0x40] sm:$0xff]
    %v3710 = vld [vmem:[%s390 + $0x50] sm:$0xff]
    %v3711 = vld [vmem:[%s390 + $0x60] sm:$0xff]
    %v3712 = vld [vmem:[%s390 + $0x70] sm:$0xff]
    %v3713 = vld [vmem:[%s390 + $0xa0] sm:$0xff]
    %v3714 = vld [vmem:[%s390 + $0xb0] sm:$0xff]
    %v3715 = vld [vmem:[%s390 + $0xc0] sm:$0xff]
    %v3716 = vld [vmem:[%s390 + $0xd0] sm:$0xff]
    %v3717 = vld [vmem:[%s390 + $0xe0] sm:$0xff]
    %v3718 = vld [vmem:[%s390 + $0xf0] sm:$0xff]
    %v3719 = vld [vmem:[%s390 + $0x100] sm:$0xff]
    %v3720 = vld [vmem:[%s390 + $0x110] sm:$0xff]
    %v3721 = vpack.c.bf16 %v3706, %v3705
    %v3722 = vpack.c.bf16 %v3708, %v3707
    %v3723 = vpack.c.bf16 %v3710, %v3709
    %v3724 = vpack.c.bf16 %v3712, %v3711
    %v3725 = vpack.c.bf16 %v3714, %v3713
    %v3726 = vpack.c.bf16 %v3716, %v3715
    %v3727 = vpack.c.bf16 %v3718, %v3717
    %v3728 = vpack.c.bf16 %v3720, %v3719
    %3729 = vst.msk [vmem:[#allocation3 + $0x18] sm:$0xff] %vm16, %v3721
    %3730 = vst.msk [vmem:[#allocation3 + $0x40] sm:$0xff] %vm16, %v3722
    %3731 = vst.msk [vmem:[#allocation3 + $0x68] sm:$0xff] %vm16, %v3723
    %3732 = vst.msk [vmem:[#allocation3 + $0x90] sm:$0xff] %vm16, %v3724
    %3733 = vst.msk [vmem:[#allocation3 + $0xb8] sm:$0xff] %vm16, %v3725
    %3734 = vst.msk [vmem:[#allocation3 + $0xe0] sm:$0xff] %vm16, %v3726
    %3735 = vst.msk [vmem:[#allocation3 + $0x108] sm:$0xff] %vm16, %v3727
    %3736 = vst.msk [vmem:[#allocation3 + $0x130] sm:$0xff] %vm16, %v3728
    %v3737 = vld [vmem:[%s390 + $0x1] sm:$0xff]
    %v3738 = vld [vmem:[%s390 + $0x11] sm:$0xff]
    %v3739 = vld [vmem:[%s390 + $0x21] sm:$0xff]
    %v3740 = vld [vmem:[%s390 + $0x31] sm:$0xff]
    %v3741 = vld [vmem:[%s390 + $0x41] sm:$0xff]
    %v3742 = vld [vmem:[%s390 + $0x51] sm:$0xff]
    %v3743 = vld [vmem:[%s390 + $0x61] sm:$0xff]
    %v3744 = vld [vmem:[%s390 + $0x71] sm:$0xff]
    %v3745 = vld [vmem:[%s390 + $0xa1] sm:$0xff]
    %v3746 = vld [vmem:[%s390 + $0xb1] sm:$0xff]
    %v3747 = vld [vmem:[%s390 + $0xc1] sm:$0xff]
    %v3748 = vld [vmem:[%s390 + $0xd1] sm:$0xff]
    %v3749 = vld [vmem:[%s390 + $0xe1] sm:$0xff]
    %v3750 = vld [vmem:[%s390 + $0xf1] sm:$0xff]
    %v3751 = vld [vmem:[%s390 + $0x101] sm:$0xff]
    %v3752 = vld [vmem:[%s390 + $0x111] sm:$0xff]
    %v3753 = vpack.c.bf16 %v3738, %v3737
    %v3754 = vpack.c.bf16 %v3740, %v3739
    %v3755 = vpack.c.bf16 %v3742, %v3741
    %v3756 = vpack.c.bf16 %v3744, %v3743
    %v3757 = vpack.c.bf16 %v3746, %v3745
    %v3758 = vpack.c.bf16 %v3748, %v3747
    %v3759 = vpack.c.bf16 %v3750, %v3749
    %v3760 = vpack.c.bf16 %v3752, %v3751
    %3769 = vrot.lane.b32.xlu0 %v3753, 64
    %v3770 = vpop.permute.xlu0 %3769
    %3771 = vrot.lane.b32.xlu0 %v3754, 64
    %v3772 = vpop.permute.xlu0 %3771
    %3773 = vrot.lane.b32.xlu0 %v3755, 64
    %v3774 = vpop.permute.xlu0 %3773
    %3775 = vrot.lane.b32.xlu0 %v3756, 64
    %v3776 = vpop.permute.xlu0 %3775
    %3777 = vrot.lane.b32.xlu0 %v3757, 64
    %v3778 = vpop.permute.xlu0 %3777
    %3779 = vrot.lane.b32.xlu0 %v3758, 64
    %v3780 = vpop.permute.xlu0 %3779
    %3781 = vrot.lane.b32.xlu0 %v3759, 64
    %v3782 = vpop.permute.xlu0 %3781
    %3783 = vrot.lane.b32.xlu0 %v3760, 64
    %v3784 = vpop.permute.xlu0 %3783
    %3793 = vst.msk [vmem:[#allocation3 + $0x18] sm:$0xff] %vm189, %v3770
    %3794 = vst.msk [vmem:[#allocation3 + $0x40] sm:$0xff] %vm189, %v3772
    %3795 = vst.msk [vmem:[#allocation3 + $0x68] sm:$0xff] %vm189, %v3774
    %3796 = vst.msk [vmem:[#allocation3 + $0x90] sm:$0xff] %vm189, %v3776
    %3797 = vst.msk [vmem:[#allocation3 + $0xb8] sm:$0xff] %vm189, %v3778
    %3798 = vst.msk [vmem:[#allocation3 + $0xe0] sm:$0xff] %vm189, %v3780
    %3799 = vst.msk [vmem:[#allocation3 + $0x108] sm:$0xff] %vm189, %v3782
    %3800 = vst.msk [vmem:[#allocation3 + $0x130] sm:$0xff] %vm189, %v3784
    %v3801 = vld [vmem:[%s390 + $0x2] sm:$0xff]
    %v3802 = vld [vmem:[%s390 + $0x12] sm:$0xff]
    %v3803 = vld [vmem:[%s390 + $0x22] sm:$0xff]
    %v3804 = vld [vmem:[%s390 + $0x32] sm:$0xff]
    %v3805 = vld [vmem:[%s390 + $0x42] sm:$0xff]
    %v3806 = vld [vmem:[%s390 + $0x52] sm:$0xff]
    %v3807 = vld [vmem:[%s390 + $0x62] sm:$0xff]
    %v3808 = vld [vmem:[%s390 + $0x72] sm:$0xff]
    %v3809 = vld [vmem:[%s390 + $0xa2] sm:$0xff]
    %v3810 = vld [vmem:[%s390 + $0xb2] sm:$0xff]
    %v3811 = vld [vmem:[%s390 + $0xc2] sm:$0xff]
    %v3812 = vld [vmem:[%s390 + $0xd2] sm:$0xff]
    %v3813 = vld [vmem:[%s390 + $0xe2] sm:$0xff]
    %v3814 = vld [vmem:[%s390 + $0xf2] sm:$0xff]
    %v3815 = vld [vmem:[%s390 + $0x102] sm:$0xff]
    %v3816 = vld [vmem:[%s390 + $0x112] sm:$0xff]
    %v3817 = vpack.c.bf16 %v3802, %v3801
    %v3818 = vpack.c.bf16 %v3804, %v3803
    %v3819 = vpack.c.bf16 %v3806, %v3805
    %v3820 = vpack.c.bf16 %v3808, %v3807
    %v3821 = vpack.c.bf16 %v3810, %v3809
    %v3822 = vpack.c.bf16 %v3812, %v3811
    %v3823 = vpack.c.bf16 %v3814, %v3813
    %v3824 = vpack.c.bf16 %v3816, %v3815
    %3825 = vst.msk [vmem:[#allocation3 + $0x20] sm:$0xff] %vm16, %v3817
    %3826 = vst.msk [vmem:[#allocation3 + $0x48] sm:$0xff] %vm16, %v3818
    %3827 = vst.msk [vmem:[#allocation3 + $0x70] sm:$0xff] %vm16, %v3819
    %3828 = vst.msk [vmem:[#allocation3 + $0x98] sm:$0xff] %vm16, %v3820
    %3829 = vst.msk [vmem:[#allocation3 + $0xc0] sm:$0xff] %vm16, %v3821
    %3830 = vst.msk [vmem:[#allocation3 + $0xe8] sm:$0xff] %vm16, %v3822
    %3831 = vst.msk [vmem:[#allocation3 + $0x110] sm:$0xff] %vm16, %v3823
    %3832 = vst.msk [vmem:[#allocation3 + $0x138] sm:$0xff] %vm16, %v3824
    %v3833 = vld [vmem:[#allocation3] sm:$0xff]
    %v3834 = vld [vmem:[#allocation3 + $0x8] sm:$0xff]
    %v3835 = vld [vmem:[#allocation3 + $0x10] sm:$0xff]
    %v3836 = vld [vmem:[#allocation3 + $0x18] sm:$0xff]
    %v3837 = vld [vmem:[#allocation3 + $0x20] sm:$0xff]
    %v3838 = vld [vmem:[#allocation3 + $0x28] sm:$0xff]
    %v3839 = vld [vmem:[#allocation3 + $0x30] sm:$0xff]
    %v3840 = vld [vmem:[#allocation3 + $0x38] sm:$0xff]
    %v3841 = vld [vmem:[#allocation3 + $0x40] sm:$0xff]
    %v3842 = vld [vmem:[#allocation3 + $0x48] sm:$0xff]
    %v3843 = vld [vmem:[#allocation3 + $0x50] sm:$0xff]
    %v3844 = vld [vmem:[#allocation3 + $0x58] sm:$0xff]
    %v3845 = vld [vmem:[#allocation3 + $0x60] sm:$0xff]
    %v3846 = vld [vmem:[#allocation3 + $0x68] sm:$0xff]
    %v3847 = vld [vmem:[#allocation3 + $0x70] sm:$0xff]
    %v3848 = vld [vmem:[#allocation3 + $0x78] sm:$0xff]
    %v3849 = vld [vmem:[#allocation3 + $0x80] sm:$0xff]
    %v3850 = vld [vmem:[#allocation3 + $0x88] sm:$0xff]
    %v3851 = vld [vmem:[#allocation3 + $0x90] sm:$0xff]
    %v3852 = vld [vmem:[#allocation3 + $0x98] sm:$0xff]
    %v3853 = vld [vmem:[#allocation3 + $0xa0] sm:$0xff]
    %v3854 = vld [vmem:[#allocation3 + $0xa8] sm:$0xff]
    %v3855 = vld [vmem:[#allocation3 + $0xb0] sm:$0xff]
    %v3856 = vld [vmem:[#allocation3 + $0xb8] sm:$0xff]
    %v3857 = vld [vmem:[#allocation3 + $0xc0] sm:$0xff]
    %v3858 = vld [vmem:[#allocation3 + $0xc8] sm:$0xff]
    %v3859 = vld [vmem:[#allocation3 + $0xd0] sm:$0xff]
    %v3860 = vld [vmem:[#allocation3 + $0xd8] sm:$0xff]
    %v3861 = vld [vmem:[#allocation3 + $0xe0] sm:$0xff]
    %v3862 = vld [vmem:[#allocation3 + $0xe8] sm:$0xff]
    %v3863 = vld [vmem:[#allocation3 + $0xf0] sm:$0xff]
    %v3864 = vld [vmem:[#allocation3 + $0xf8] sm:$0xff]
    %v3865 = vld [vmem:[#allocation3 + $0x100] sm:$0xff]
    %v3866 = vld [vmem:[#allocation3 + $0x108] sm:$0xff]
    %v3867 = vld [vmem:[#allocation3 + $0x110] sm:$0xff]
    %v3868 = vld [vmem:[#allocation3 + $0x118] sm:$0xff]
    %v3869 = vld [vmem:[#allocation3 + $0x120] sm:$0xff]
    %v3870 = vld [vmem:[#allocation3 + $0x128] sm:$0xff]
    %v3871 = vld [vmem:[#allocation3 + $0x130] sm:$0xff]
    %v3872 = vld [vmem:[#allocation3 + $0x138] sm:$0xff]
    %s3873 = scalar_lea.vmem %s1, 864
    %v3874 = vld [vmem:[%s3873] sm:$0xf]
    %v3875 = vld [vmem:[%s3873 + $0x4] sm:$0xf]
    %v3876 = vld [vmem:[%s3873 + $0x8] sm:$0xf]
    %v3877 = vld [vmem:[%s3873 + $0xc] sm:$0xf]
    %v3878 = vld [vmem:[%s3873 + $0x10] sm:$0xf]
    %v3879 = vld [vmem:[%s3873 + $0x14] sm:$0xf]
    %v3880 = vld [vmem:[%s3873 + $0x18] sm:$0xf]
    %v3881 = vld [vmem:[%s3873 + $0x1c] sm:$0xf]
    %v3882 = vld [vmem:[%s3873 + $0x20] sm:$0xf]
    %v3883 = vld [vmem:[%s3873 + $0x24] sm:$0xf]
    %v3884 = vld [vmem:[%s3873 + $0x28] sm:$0xf]
    %v3885 = vld [vmem:[%s3873 + $0x2c] sm:$0xf]
    %v3886 = vld [vmem:[%s3873 + $0x30] sm:$0xf]
    %v3887 = vld [vmem:[%s3873 + $0x34] sm:$0xf]
    %v3888 = vld [vmem:[%s3873 + $0x38] sm:$0xf]
    %v3889 = vld [vmem:[%s3873 + $0x3c] sm:$0xf]
    %v3890 = vld [vmem:[%s3873 + $0x40] sm:$0xf]
    %v3891 = vld [vmem:[%s3873 + $0x44] sm:$0xf]
    %v3892 = vld [vmem:[%s3873 + $0x48] sm:$0xf]
    %v3893 = vld [vmem:[%s3873 + $0x4c] sm:$0xf]
    %v3894 = vld [vmem:[%s3873 + $0x50] sm:$0xf]
    %v3895 = vld [vmem:[%s3873 + $0x54] sm:$0xf]
    %v3896 = vld [vmem:[%s3873 + $0x58] sm:$0xf]
    %v3897 = vld [vmem:[%s3873 + $0x5c] sm:$0xf]
    %v3898 = vld [vmem:[%s3873 + $0x60] sm:$0xf]
    %v3899 = vld [vmem:[%s3873 + $0x64] sm:$0xf]
    %v3900 = vld [vmem:[%s3873 + $0x68] sm:$0xf]
    %v3901 = vld [vmem:[%s3873 + $0x6c] sm:$0xf]
    %v3902 = vld [vmem:[%s3873 + $0x70] sm:$0xf]
    %v3903 = vld [vmem:[%s3873 + $0x74] sm:$0xf]
    %v3904 = vld [vmem:[%s3873 + $0x78] sm:$0xf]
    %v3905 = vld [vmem:[%s3873 + $0x7c] sm:$0xf]
    %v3906 = vld [vmem:[%s3873 + $0x80] sm:$0xf]
    %v3907 = vld [vmem:[%s3873 + $0x84] sm:$0xf]
    %v3908 = vld [vmem:[%s3873 + $0x88] sm:$0xf]
    %v3909 = vld [vmem:[%s3873 + $0x8c] sm:$0xf]
    %v3910 = vld [vmem:[%s3873 + $0x90] sm:$0xf]
    %v3911 = vld [vmem:[%s3873 + $0x94] sm:$0xf]
    %v3912 = vld [vmem:[%s3873 + $0x98] sm:$0xf]
    %v3913 = vld [vmem:[%s3873 + $0x9c] sm:$0xf]
    %v3914 = vld [vmem:[%s3873 + $0xa0] sm:$0xf]
    %v3915 = vld [vmem:[%s3873 + $0xa4] sm:$0xf]
    %v3916 = vld [vmem:[%s3873 + $0xa8] sm:$0xf]
    %v3917 = vld [vmem:[%s3873 + $0xac] sm:$0xf]
    %v3918 = vld [vmem:[%s3873 + $0xb0] sm:$0xf]
    %v3919 = vld [vmem:[%s3873 + $0xb4] sm:$0xf]
    %v3920 = vld [vmem:[%s3873 + $0xb8] sm:$0xf]
    %v3921 = vld [vmem:[%s3873 + $0xbc] sm:$0xf]
    %v3922 = vld [vmem:[%s3873 + $0xc0] sm:$0xf]
    %v3923 = vld [vmem:[%s3873 + $0xc4] sm:$0xf]
    %v3924 = vld [vmem:[%s3873 + $0xc8] sm:$0xf]
    %v3925 = vld [vmem:[%s3873 + $0xcc] sm:$0xf]
    %v3926 = vld [vmem:[%s3873 + $0xd0] sm:$0xf]
    %v3927 = vld [vmem:[%s3873 + $0xd4] sm:$0xf]
    %v3928 = vld [vmem:[%s3873 + $0xd8] sm:$0xf]
    %v3929 = vld [vmem:[%s3873 + $0xdc] sm:$0xf]
    %v3930 = vld [vmem:[%s3873 + $0xe0] sm:$0xf]
    %v3931 = vld [vmem:[%s3873 + $0xe4] sm:$0xf]
    %v3932 = vld [vmem:[%s3873 + $0xe8] sm:$0xf]
    %v3933 = vld [vmem:[%s3873 + $0xec] sm:$0xf]
    %v3934 = vld [vmem:[%s3873 + $0xf0] sm:$0xf]
    %v3935 = vld [vmem:[%s3873 + $0xf4] sm:$0xf]
    %v3936 = vld [vmem:[%s3873 + $0xf8] sm:$0xf]
    %v3937 = vld [vmem:[%s3873 + $0xfc] sm:$0xf]
    %v3938 = vld [vmem:[%s3873 + $0x100] sm:$0xf]
    %v3939 = vld [vmem:[%s3873 + $0x104] sm:$0xf]
    %v3940 = vld [vmem:[%s3873 + $0x108] sm:$0xf]
    %v3941 = vld [vmem:[%s3873 + $0x10c] sm:$0xf]
    %v3942 = vld [vmem:[%s3873 + $0x110] sm:$0xf]
    %v3943 = vld [vmem:[%s3873 + $0x114] sm:$0xf]
    %v3944 = vld [vmem:[%s3873 + $0x118] sm:$0xf]
    %v3945 = vld [vmem:[%s3873 + $0x11c] sm:$0xf]
    %s3946 = scalar_lea.vmem %s2, 3
    %v3947 = vld [vmem:[%s3946] sm:$0x1]
    %v3949 = vlaneseq
    %v3950 = vshrl.u32 %v3949, 7
    %v3951 = vsub.s32 0, %v3950
    %v3952 = vrot.slane %v3947, %v3951
    %v4026 = vunpack.c.l.b16 %v3874
    %v4027 = vunpack.c.l.b16 %v3875
    %v4028 = vunpack.c.l.b16 %v3876
    %v4029 = vunpack.c.l.b16 %v3877
    %v4030 = vunpack.c.l.b16 %v3878
    %v4031 = vunpack.c.l.b16 %v3879
    %v4032 = vunpack.c.l.b16 %v3880
    %v4033 = vunpack.c.l.b16 %v3881
    %v4034 = vunpack.c.l.b16 %v3882
    %v4035 = vunpack.c.l.b16 %v3883
    %v4036 = vunpack.c.l.b16 %v3884
    %v4037 = vunpack.c.l.b16 %v3885
    %v4038 = vunpack.c.l.b16 %v3886
    %v4039 = vunpack.c.l.b16 %v3887
    %v4040 = vunpack.c.l.b16 %v3888
    %v4041 = vunpack.c.l.b16 %v3889
    %v4042 = vunpack.c.l.b16 %v3890
    %v4043 = vunpack.c.l.b16 %v3891
    %v4044 = vunpack.c.l.b16 %v3892
    %v4045 = vunpack.c.l.b16 %v3893
    %v4046 = vunpack.c.l.b16 %v3894
    %v4047 = vunpack.c.l.b16 %v3895
    %v4048 = vunpack.c.l.b16 %v3896
    %v4049 = vunpack.c.l.b16 %v3897
    %v4050 = vunpack.c.l.b16 %v3898
    %v4051 = vunpack.c.l.b16 %v3899
    %v4052 = vunpack.c.l.b16 %v3900
    %v4053 = vunpack.c.l.b16 %v3901
    %v4054 = vunpack.c.l.b16 %v3902
    %v4055 = vunpack.c.l.b16 %v3903
    %v4056 = vunpack.c.l.b16 %v3904
    %v4057 = vunpack.c.l.b16 %v3905
    %v4058 = vunpack.c.l.b16 %v3906
    %v4059 = vunpack.c.l.b16 %v3907
    %v4060 = vunpack.c.l.b16 %v3908
    %v4061 = vunpack.c.l.b16 %v3909
    %v4062 = vunpack.c.l.b16 %v3910
    %v4063 = vunpack.c.l.b16 %v3911
    %v4064 = vunpack.c.l.b16 %v3912
    %v4065 = vunpack.c.l.b16 %v3913
    %v4066 = vunpack.c.l.b16 %v3914
    %v4067 = vunpack.c.l.b16 %v3915
    %v4068 = vunpack.c.l.b16 %v3916
    %v4069 = vunpack.c.l.b16 %v3917
    %v4070 = vunpack.c.l.b16 %v3918
    %v4071 = vunpack.c.l.b16 %v3919
    %v4072 = vunpack.c.l.b16 %v3920
    %v4073 = vunpack.c.l.b16 %v3921
    %v4074 = vunpack.c.l.b16 %v3922
    %v4075 = vunpack.c.l.b16 %v3923
    %v4076 = vunpack.c.l.b16 %v3924
    %v4077 = vunpack.c.l.b16 %v3925
    %v4078 = vunpack.c.l.b16 %v3926
    %v4079 = vunpack.c.l.b16 %v3927
    %v4080 = vunpack.c.l.b16 %v3928
    %v4081 = vunpack.c.l.b16 %v3929
    %v4082 = vunpack.c.l.b16 %v3930
    %v4083 = vunpack.c.l.b16 %v3931
    %v4084 = vunpack.c.l.b16 %v3932
    %v4085 = vunpack.c.l.b16 %v3933
    %v4086 = vunpack.c.l.b16 %v3934
    %v4087 = vunpack.c.l.b16 %v3935
    %v4088 = vunpack.c.l.b16 %v3936
    %v4089 = vunpack.c.l.b16 %v3937
    %v4090 = vunpack.c.l.b16 %v3938
    %v4091 = vunpack.c.l.b16 %v3939
    %v4092 = vunpack.c.l.b16 %v3940
    %v4093 = vunpack.c.l.b16 %v3941
    %v4094 = vunpack.c.l.b16 %v3942
    %v4095 = vunpack.c.l.b16 %v3943
    %v4096 = vunpack.c.l.b16 %v3944
    %v4097 = vunpack.c.l.b16 %v3945
    %v4098 = vpack.c.b16 %v4027, %v4026
    %v4099 = vpack.c.b16 %v4029, %v4028
    %v4100 = vpack.c.b16 %v4031, %v4030
    %v4101 = vpack.c.b16 %v4033, %v4032
    %v4102 = vpack.c.b16 %v4035, %v4034
    %v4103 = vpack.c.b16 %v4037, %v4036
    %v4104 = vpack.c.b16 %v4039, %v4038
    %v4105 = vpack.c.b16 %v4041, %v4040
    %v4106 = vpack.c.b16 %v4043, %v4042
    %v4107 = vpack.c.b16 %v4045, %v4044
    %v4108 = vpack.c.b16 %v4047, %v4046
    %v4109 = vpack.c.b16 %v4049, %v4048
    %v4110 = vpack.c.b16 %v4051, %v4050
    %v4111 = vpack.c.b16 %v4053, %v4052
    %v4112 = vpack.c.b16 %v4055, %v4054
    %v4113 = vpack.c.b16 %v4057, %v4056
    %v4114 = vpack.c.b16 %v4059, %v4058
    %v4115 = vpack.c.b16 %v4061, %v4060
    %v4116 = vpack.c.b16 %v4063, %v4062
    %v4117 = vpack.c.b16 %v4065, %v4064
    %v4118 = vpack.c.b16 %v4067, %v4066
    %v4119 = vpack.c.b16 %v4069, %v4068
    %v4120 = vpack.c.b16 %v4071, %v4070
    %v4121 = vpack.c.b16 %v4073, %v4072
    %v4122 = vpack.c.b16 %v4075, %v4074
    %v4123 = vpack.c.b16 %v4077, %v4076
    %v4124 = vpack.c.b16 %v4079, %v4078
    %v4125 = vpack.c.b16 %v4081, %v4080
    %v4126 = vpack.c.b16 %v4083, %v4082
    %v4127 = vpack.c.b16 %v4085, %v4084
    %v4128 = vpack.c.b16 %v4087, %v4086
    %v4129 = vpack.c.b16 %v4089, %v4088
    %v4130 = vpack.c.b16 %v4091, %v4090
    %v4131 = vpack.c.b16 %v4093, %v4092
    %v4132 = vpack.c.b16 %v4095, %v4094
    %v4133 = vpack.c.b16 %v4097, %v4096
    %v4171 = vsel %vm16, %v3837, 0
    %v4174 = vsel %vm16, %v3842, 0
    %v4177 = vsel %vm16, %v3847, 0
    %v4180 = vsel %vm16, %v3852, 0
    %v4183 = vsel %vm16, %v3857, 0
    %v4186 = vsel %vm16, %v3862, 0
    %v4189 = vsel %vm16, %v3867, 0
    %v4192 = vsel %vm16, %v3872, 0
    %4194 = vmatprep.subr.bf16.mxu0 0
    %4195 = vmatpush1.bf16.msra.mxu0 %v4098
    %4196 = vmatprep.subr.bf16.mxu0 0
    %4197 = vmatpush1.bf16.msra.mxu0 %v4099
    %4198 = vmatprep.subr.bf16.mxu0 0
    %4199 = vmatpush1.bf16.msra.mxu0 %v4100
    %4200 = vmatprep.subr.bf16.mxu0 0
    %4201 = vmatpush1.bf16.msra.mxu0 %v4101
    %4202 = vmatprep.subr.bf16.mxu0 0
    %4203 = vmatpush1.bf16.msra.mxu0 %v4102
    %4204 = vmatprep.subr.bf16.mxu0 0
    %4205 = vmatpush1.bf16.msra.mxu0 %v4103
    %4206 = vmatprep.subr.bf16.mxu0 0
    %4207 = vmatpush1.bf16.msra.mxu0 %v4104
    %4208 = vmatprep.subr.bf16.mxu0 0
    %4209 = vmatpush1.bf16.msra.mxu0 %v4105
    %4210 = vmatprep.subr.bf16.mxu0 0
    %4211 = vmatpush1.bf16.msra.mxu0 %v4106
    %4212 = vmatprep.subr.bf16.mxu0 0
    %4213 = vmatpush1.bf16.msra.mxu0 %v4107
    %4214 = vmatprep.subr.bf16.mxu0 0
    %4215 = vmatpush1.bf16.msra.mxu0 %v4108
    %4216 = vmatprep.subr.bf16.mxu0 0
    %4217 = vmatpush1.bf16.msra.mxu0 %v4109
    %4218 = vmatprep.subr.bf16.mxu0 0
    %4219 = vmatpush1.bf16.msra.mxu0 %v4110
    %4220 = vmatprep.subr.bf16.mxu0 0
    %4221 = vmatpush1.bf16.msra.mxu0 %v4111
    %4222 = vmatprep.subr.bf16.mxu0 0
    %4223 = vmatpush1.bf16.msra.mxu0 %v4112
    %4224 = vmatprep.subr.bf16.mxu0 0
    %4225 = vmatpush1.bf16.msra.mxu0 %v4113
    %4226 = vmatprep.mubr.bf16.mxu0 %v3834
    %4227 = vmatmul.mubr.bf16.gmra.mrb[0].mxu0 %v3833
    %v4228 = vpop.f32.mrb[0].mxu0
    %v4229 = vadd.f32 %v3952, %v4228
    %v4230 = vpop.f32.mrb[0].mxu0
    %v4231 = vpop.f32.mrb[0].mxu0
    %v4232 = vadd.f32 %v3952, %v4231
    %v4233 = vpop.f32.mrb[0].mxu0
    %4234 = vmatprep.mubr.bf16.mxu0 %v3839
    %4235 = vmatmul.mubr.bf16.gmra.mrb[0].mxu0 %v3838
    %v4236 = vpop.f32.mrb[0].mxu0
    %v4237 = vadd.f32 %v3952, %v4236
    %v4238 = vpop.f32.mrb[0].mxu0
    %v4239 = vpop.f32.mrb[0].mxu0
    %v4240 = vadd.f32 %v3952, %v4239
    %v4241 = vpop.f32.mrb[0].mxu0
    %4242 = vmatprep.mubr.bf16.mxu0 %v3844
    %4243 = vmatmul.mubr.bf16.gmra.mrb[0].mxu0 %v3843
    %v4244 = vpop.f32.mrb[0].mxu0
    %v4245 = vadd.f32 %v3952, %v4244
    %v4246 = vpop.f32.mrb[0].mxu0
    %v4247 = vpop.f32.mrb[0].mxu0
    %v4248 = vadd.f32 %v3952, %v4247
    %v4249 = vpop.f32.mrb[0].mxu0
    %4250 = vmatprep.mubr.bf16.mxu0 %v3849
    %4251 = vmatmul.mubr.bf16.gmra.mrb[0].mxu0 %v3848
    %v4252 = vpop.f32.mrb[0].mxu0
    %v4253 = vadd.f32 %v3952, %v4252
    %v4254 = vpop.f32.mrb[0].mxu0
    %v4255 = vpop.f32.mrb[0].mxu0
    %v4256 = vadd.f32 %v3952, %v4255
    %v4257 = vpop.f32.mrb[0].mxu0
    %4258 = vmatprep.mubr.bf16.mxu0 %v3854
    %4259 = vmatmul.mubr.bf16.gmra.mrb[0].mxu0 %v3853
    %v4260 = vpop.f32.mrb[0].mxu0
    %v4261 = vadd.f32 %v3952, %v4260
    %v4262 = vpop.f32.mrb[0].mxu0
    %v4263 = vpop.f32.mrb[0].mxu0
    %v4264 = vadd.f32 %v3952, %v4263
    %v4265 = vpop.f32.mrb[0].mxu0
    %4266 = vmatprep.mubr.bf16.mxu0 %v3859
    %4267 = vmatmul.mubr.bf16.gmra.mrb[0].mxu0 %v3858
    %v4268 = vpop.f32.mrb[0].mxu0
    %v4269 = vadd.f32 %v3952, %v4268
    %v4270 = vpop.f32.mrb[0].mxu0
    %v4271 = vpop.f32.mrb[0].mxu0
    %v4272 = vadd.f32 %v3952, %v4271
    %v4273 = vpop.f32.mrb[0].mxu0
    %4274 = vmatprep.mubr.bf16.mxu0 %v3864
    %4275 = vmatmul.mubr.bf16.gmra.mrb[0].mxu0 %v3863
    %v4276 = vpop.f32.mrb[0].mxu0
    %v4277 = vadd.f32 %v3952, %v4276
    %v4278 = vpop.f32.mrb[0].mxu0
    %v4279 = vpop.f32.mrb[0].mxu0
    %v4280 = vadd.f32 %v3952, %v4279
    %v4281 = vpop.f32.mrb[0].mxu0
    %4282 = vmatprep.mubr.bf16.mxu0 %v3869
    %4283 = vmatmul.mubr.bf16.gmra.mrb[0].mxu0 %v3868
    %v4284 = vpop.f32.mrb[0].mxu0
    %v4285 = vadd.f32 %v3952, %v4284
    %v4286 = vpop.f32.mrb[0].mxu0
    %v4287 = vpop.f32.mrb[0].mxu0
    %v4288 = vadd.f32 %v3952, %v4287
    %v4289 = vpop.f32.mrb[0].mxu0
    %4290 = vdwg.mxu0
    %4291 = vmatprep.subr.bf16.mxu0 0
    %4292 = vmatpush1.bf16.msra.mxu0 %v4114
    %4293 = vmatprep.subr.bf16.mxu0 0
    %4294 = vmatpush1.bf16.msra.mxu0 %v4115
    %4295 = vmatprep.subr.bf16.mxu0 0
    %4296 = vmatpush1.bf16.msra.mxu0 %v4116
    %4297 = vmatprep.subr.bf16.mxu0 0
    %4298 = vmatpush1.bf16.msra.mxu0 %v4117
    %4299 = vmatprep.subr.bf16.mxu0 0
    %4300 = vmatpush1.bf16.msra.mxu0 %v4118
    %4301 = vmatprep.subr.bf16.mxu0 0
    %4302 = vmatpush1.bf16.msra.mxu0 %v4119
    %4303 = vmatprep.subr.bf16.mxu0 0
    %4304 = vmatpush1.bf16.msra.mxu0 %v4120
    %4305 = vmatprep.subr.bf16.mxu0 0
    %4306 = vmatpush1.bf16.msra.mxu0 %v4121
    %4307 = vmatprep.subr.bf16.mxu0 0
    %4308 = vmatpush1.bf16.msra.mxu0 %v4122
    %4309 = vmatprep.subr.bf16.mxu0 0
    %4310 = vmatpush1.bf16.msra.mxu0 %v4123
    %4311 = vmatprep.subr.bf16.mxu0 0
    %4312 = vmatpush1.bf16.msra.mxu0 %v4124
    %4313 = vmatprep.subr.bf16.mxu0 0
    %4314 = vmatpush1.bf16.msra.mxu0 %v4125
    %4315 = vmatprep.subr.bf16.mxu0 0
    %4316 = vmatpush1.bf16.msra.mxu0 %v4126
    %4317 = vmatprep.subr.bf16.mxu0 0
    %4318 = vmatpush1.bf16.msra.mxu0 %v4127
    %4319 = vmatprep.subr.bf16.mxu0 0
    %4320 = vmatpush1.bf16.msra.mxu0 %v4128
    %4321 = vmatprep.subr.bf16.mxu0 0
    %4322 = vmatpush1.bf16.msra.mxu0 %v4129
    %4323 = vmatprep.mubr.bf16.mxu0 %v3836
    %4324 = vmatmul.mubr.bf16.gmra.mrb[0].mxu0 %v3835
    %v4325 = vpop.f32.mrb[0].mxu0
    %v4326 = vadd.f32 %v4229, %v4325
    %v4327 = vpop.f32.mrb[0].mxu0
    %v4328 = vpop.f32.mrb[0].mxu0
    %v4329 = vadd.f32 %v4232, %v4328
    %v4330 = vpop.f32.mrb[0].mxu0
    %4331 = vmatprep.mubr.bf16.mxu0 %v3841
    %4332 = vmatmul.mubr.bf16.gmra.mrb[0].mxu0 %v3840
    %v4333 = vpop.f32.mrb[0].mxu0
    %v4334 = vadd.f32 %v4237, %v4333
    %v4335 = vpop.f32.mrb[0].mxu0
    %v4336 = vpop.f32.mrb[0].mxu0
    %v4337 = vadd.f32 %v4240, %v4336
    %v4338 = vpop.f32.mrb[0].mxu0
    %4339 = vmatprep.mubr.bf16.mxu0 %v3846
    %4340 = vmatmul.mubr.bf16.gmra.mrb[0].mxu0 %v3845
    %v4341 = vpop.f32.mrb[0].mxu0
    %v4342 = vadd.f32 %v4245, %v4341
    %v4343 = vpop.f32.mrb[0].mxu0
    %v4344 = vpop.f32.mrb[0].mxu0
    %v4345 = vadd.f32 %v4248, %v4344
    %v4346 = vpop.f32.mrb[0].mxu0
    %4347 = vmatprep.mubr.bf16.mxu0 %v3851
    %4348 = vmatmul.mubr.bf16.gmra.mrb[0].mxu0 %v3850
    %v4349 = vpop.f32.mrb[0].mxu0
    %v4350 = vadd.f32 %v4253, %v4349
    %v4351 = vpop.f32.mrb[0].mxu0
    %v4352 = vpop.f32.mrb[0].mxu0
    %v4353 = vadd.f32 %v4256, %v4352
    %v4354 = vpop.f32.mrb[0].mxu0
    %4355 = vmatprep.mubr.bf16.mxu0 %v3856
    %4356 = vmatmul.mubr.bf16.gmra.mrb[0].mxu0 %v3855
    %v4357 = vpop.f32.mrb[0].mxu0
    %v4358 = vadd.f32 %v4261, %v4357
    %v4359 = vpop.f32.mrb[0].mxu0
    %v4360 = vpop.f32.mrb[0].mxu0
    %v4361 = vadd.f32 %v4264, %v4360
    %v4362 = vpop.f32.mrb[0].mxu0
    %4363 = vmatprep.mubr.bf16.mxu0 %v3861
    %4364 = vmatmul.mubr.bf16.gmra.mrb[0].mxu0 %v3860
    %v4365 = vpop.f32.mrb[0].mxu0
    %v4366 = vadd.f32 %v4269, %v4365
    %v4367 = vpop.f32.mrb[0].mxu0
    %v4368 = vpop.f32.mrb[0].mxu0
    %v4369 = vadd.f32 %v4272, %v4368
    %v4370 = vpop.f32.mrb[0].mxu0
    %4371 = vmatprep.mubr.bf16.mxu0 %v3866
    %4372 = vmatmul.mubr.bf16.gmra.mrb[0].mxu0 %v3865
    %v4373 = vpop.f32.mrb[0].mxu0
    %v4374 = vadd.f32 %v4277, %v4373
    %v4375 = vpop.f32.mrb[0].mxu0
    %v4376 = vpop.f32.mrb[0].mxu0
    %v4377 = vadd.f32 %v4280, %v4376
    %v4378 = vpop.f32.mrb[0].mxu0
    %4379 = vmatprep.mubr.bf16.mxu0 %v3871
    %4380 = vmatmul.mubr.bf16.gmra.mrb[0].mxu0 %v3870
    %v4381 = vpop.f32.mrb[0].mxu0
    %v4382 = vadd.f32 %v4285, %v4381
    %v4383 = vpop.f32.mrb[0].mxu0
    %v4384 = vpop.f32.mrb[0].mxu0
    %v4385 = vadd.f32 %v4288, %v4384
    %v4386 = vpop.f32.mrb[0].mxu0
    %4387 = vdwg.mxu0
    %4388 = vmatprep.subr.bf16.mxu0 0
    %4389 = vmatpush1.bf16.msra.mxu0 %v4130
    %4390 = vmatprep.subr.bf16.mxu0 0
    %4391 = vmatpush1.bf16.msra.mxu0 %v4131
    %4392 = vmatprep.subr.bf16.mxu0 0
    %4393 = vmatpush1.bf16.msra.mxu0 %v4132
    %4394 = vmatprep.subr.bf16.mxu0 0
    %4395 = vmatpush1.bf16.msra.mxu0 %v4133
    %4396 = vmatprep.subr.bf16.mxu0 0
    %4397 = vmatpush1.bf16.msra.mxu0 0
    %4398 = vmatprep.subr.bf16.mxu0 0
    %4399 = vmatpush1.bf16.msra.mxu0 0
    %4400 = vmatprep.subr.bf16.mxu0 0
    %4401 = vmatpush1.bf16.msra.mxu0 0
    %4402 = vmatprep.subr.bf16.mxu0 0
    %4403 = vmatpush1.bf16.msra.mxu0 0
    %4404 = vmatprep.subr.bf16.mxu0 0
    %4405 = vmatpush1.bf16.msra.mxu0 0
    %4406 = vmatprep.subr.bf16.mxu0 0
    %4407 = vmatpush1.bf16.msra.mxu0 0
    %4408 = vmatprep.subr.bf16.mxu0 0
    %4409 = vmatpush1.bf16.msra.mxu0 0
    %4410 = vmatprep.subr.bf16.mxu0 0
    %4411 = vmatpush1.bf16.msra.mxu0 0
    %4412 = vmatprep.subr.bf16.mxu0 0
    %4413 = vmatpush1.bf16.msra.mxu0 0
    %4414 = vmatprep.subr.bf16.mxu0 0
    %4415 = vmatpush1.bf16.msra.mxu0 0
    %4416 = vmatprep.subr.bf16.mxu0 0
    %4417 = vmatpush1.bf16.msra.mxu0 0
    %4418 = vmatprep.subr.bf16.mxu0 0
    %4419 = vmatpush1.bf16.msra.mxu0 0
    %4420 = vmatprep.mubr.bf16.mxu0 0
    %4421 = vmatmul.mubr.bf16.gmra.mrb[0].mxu0 %v4171
    %v4422 = vpop.f32.mrb[0].mxu0
    %v4423 = vadd.f32 %v4326, %v4422
    %v4424 = vpop.f32.mrb[0].mxu0
    %v4425 = vpop.f32.mrb[0].mxu0
    %v4426 = vadd.f32 %v4329, %v4425
    %v4427 = vpop.f32.mrb[0].mxu0
    %4428 = vmatprep.mubr.bf16.mxu0 0
    %4429 = vmatmul.mubr.bf16.gmra.mrb[0].mxu0 %v4174
    %v4430 = vpop.f32.mrb[0].mxu0
    %v4431 = vadd.f32 %v4334, %v4430
    %v4432 = vpop.f32.mrb[0].mxu0
    %v4433 = vpop.f32.mrb[0].mxu0
    %v4434 = vadd.f32 %v4337, %v4433
    %v4435 = vpop.f32.mrb[0].mxu0
    %4436 = vmatprep.mubr.bf16.mxu0 0
    %4437 = vmatmul.mubr.bf16.gmra.mrb[0].mxu0 %v4177
    %v4438 = vpop.f32.mrb[0].mxu0
    %v4439 = vadd.f32 %v4342, %v4438
    %v4440 = vpop.f32.mrb[0].mxu0
    %v4441 = vpop.f32.mrb[0].mxu0
    %v4442 = vadd.f32 %v4345, %v4441
    %v4443 = vpop.f32.mrb[0].mxu0
    %4444 = vmatprep.mubr.bf16.mxu0 0
    %4445 = vmatmul.mubr.bf16.gmra.mrb[0].mxu0 %v4180
    %v4446 = vpop.f32.mrb[0].mxu0
    %v4447 = vadd.f32 %v4350, %v4446
    %v4448 = vpop.f32.mrb[0].mxu0
    %v4449 = vpop.f32.mrb[0].mxu0
    %v4450 = vadd.f32 %v4353, %v4449
    %v4451 = vpop.f32.mrb[0].mxu0
    %4452 = vmatprep.mubr.bf16.mxu0 0
    %4453 = vmatmul.mubr.bf16.gmra.mrb[0].mxu0 %v4183
    %v4454 = vpop.f32.mrb[0].mxu0
    %v4455 = vadd.f32 %v4358, %v4454
    %v4456 = vpop.f32.mrb[0].mxu0
    %v4457 = vpop.f32.mrb[0].mxu0
    %v4458 = vadd.f32 %v4361, %v4457
    %v4459 = vpop.f32.mrb[0].mxu0
    %4460 = vmatprep.mubr.bf16.mxu0 0
    %4461 = vmatmul.mubr.bf16.gmra.mrb[0].mxu0 %v4186
    %v4462 = vpop.f32.mrb[0].mxu0
    %v4463 = vadd.f32 %v4366, %v4462
    %v4464 = vpop.f32.mrb[0].mxu0
    %v4465 = vpop.f32.mrb[0].mxu0
    %v4466 = vadd.f32 %v4369, %v4465
    %v4467 = vpop.f32.mrb[0].mxu0
    %4468 = vmatprep.mubr.bf16.mxu0 0
    %4469 = vmatmul.mubr.bf16.gmra.mrb[0].mxu0 %v4189
    %v4470 = vpop.f32.mrb[0].mxu0
    %v4471 = vadd.f32 %v4374, %v4470
    %v4472 = vpop.f32.mrb[0].mxu0
    %v4473 = vpop.f32.mrb[0].mxu0
    %v4474 = vadd.f32 %v4377, %v4473
    %v4475 = vpop.f32.mrb[0].mxu0
    %4476 = vmatprep.mubr.bf16.mxu0 0
    %4477 = vmatmul.mubr.bf16.gmra.mrb[0].mxu0 %v4192
    %v4478 = vpop.f32.mrb[0].mxu0
    %v4479 = vadd.f32 %v4382, %v4478
    %v4480 = vpop.f32.mrb[0].mxu0
    %v4481 = vpop.f32.mrb[0].mxu0
    %v4482 = vadd.f32 %v4385, %v4481
    %v4483 = vpop.f32.mrb[0].mxu0
    %4484 = vdwg.mxu0
    %v4485 = vadd.f32 %v2285, %v4423
    %v4486 = vadd.f32 %v2286, %v4426
    %v4487 = vadd.f32 %v2287, %v4431
    %v4488 = vadd.f32 %v2288, %v4434
    %v4489 = vadd.f32 %v2289, %v4439
    %v4490 = vadd.f32 %v2290, %v4442
    %v4491 = vadd.f32 %v2291, %v4447
    %v4492 = vadd.f32 %v2292, %v4450
    %v4493 = vadd.f32 %v2293, %v4455
    %v4494 = vadd.f32 %v2294, %v4458
    %v4495 = vadd.f32 %v2295, %v4463
    %v4496 = vadd.f32 %v2296, %v4466
    %v4497 = vadd.f32 %v2297, %v4471
    %v4498 = vadd.f32 %v2298, %v4474
    %v4499 = vadd.f32 %v2299, %v4479
    %v4500 = vadd.f32 %v2300, %v4482
    %v4501 = vmax.f32 %v4485, 0.0
    %v4502 = vmax.f32 %v4486, 0.0
    %v4503 = vmax.f32 %v4487, 0.0
    %v4504 = vmax.f32 %v4488, 0.0
    %v4505 = vmax.f32 %v4489, 0.0
    %v4506 = vmax.f32 %v4490, 0.0
    %v4507 = vmax.f32 %v4491, 0.0
    %v4508 = vmax.f32 %v4492, 0.0
    %v4509 = vmax.f32 %v4493, 0.0
    %v4510 = vmax.f32 %v4494, 0.0
    %v4511 = vmax.f32 %v4495, 0.0
    %v4512 = vmax.f32 %v4496, 0.0
    %v4513 = vmax.f32 %v4497, 0.0
    %v4514 = vmax.f32 %v4498, 0.0
    %v4515 = vmax.f32 %v4499, 0.0
    %v4516 = vmax.f32 %v4500, 0.0
    %v4533 = vrot.slane %v4502, 7
    %vm4534 = vcmask 1041409
    %v4535 = vsel %vm4534, %v4533, %v4501
    %v4536 = vrot.slane %v4503, 6
    %vm4537 = vcmask 1042434
    %v4538 = vsel %vm4537, %v4536, %v4535
    %v4539 = vrot.slane %v4504, 5
    %vm4540 = vcmask 1043459
    %v4541 = vsel %vm4540, %v4539, %v4538
    %v4542 = vrot.slane %v4505, 4
    %vm4543 = vcmask 1044484
    %v4544 = vsel %vm4543, %v4542, %v4541
    %v4545 = vrot.slane %v4506, 3
    %vm4546 = vcmask 1045509
    %v4547 = vsel %vm4546, %v4545, %v4544
    %v4548 = vrot.slane %v4507, 2
    %vm4549 = vcmask 1046534
    %v4550 = vsel %vm4549, %v4548, %v4547
    %v4551 = vrot.slane %v4508, 1
    %vm4552 = vcmask 1047559
    %v4553 = vsel %vm4552, %v4551, %v4550
    %v4554 = vrot.slane %v4510, 7
    %v4555 = vsel %vm4534, %v4554, %v4509
    %v4556 = vrot.slane %v4511, 6
    %v4557 = vsel %vm4537, %v4556, %v4555
    %v4558 = vrot.slane %v4512, 5
    %v4559 = vsel %vm4540, %v4558, %v4557
    %v4560 = vrot.slane %v4513, 4
    %v4561 = vsel %vm4543, %v4560, %v4559
    %v4562 = vrot.slane %v4514, 3
    %v4563 = vsel %vm4546, %v4562, %v4561
    %v4564 = vrot.slane %v4515, 2
    %v4565 = vsel %vm4549, %v4564, %v4563
    %v4566 = vrot.slane %v4516, 1
    %v4567 = vsel %vm4552, %v4566, %v4565
    %v4570 = vrot.slane %v4501, 1
    %v4571 = vsel %vm4534, %v4502, %v4570
    %v4572 = vrot.slane %v4503, 7
    %v4573 = vsel %vm4537, %v4572, %v4571
    %v4574 = vrot.slane %v4504, 6
    %v4575 = vsel %vm4540, %v4574, %v4573
    %v4576 = vrot.slane %v4505, 5
    %v4577 = vsel %vm4543, %v4576, %v4575
    %v4578 = vrot.slane %v4506, 4
    %v4579 = vsel %vm4546, %v4578, %v4577
    %v4580 = vrot.slane %v4507, 3
    %v4581 = vsel %vm4549, %v4580, %v4579
    %v4582 = vrot.slane %v4508, 2
    %v4583 = vsel %vm4552, %v4582, %v4581
    %v4584 = vrot.slane %v4509, 1
    %v4585 = vsel %vm4534, %v4510, %v4584
    %v4586 = vrot.slane %v4511, 7
    %v4587 = vsel %vm4537, %v4586, %v4585
    %v4588 = vrot.slane %v4512, 6
    %v4589 = vsel %vm4540, %v4588, %v4587
    %v4590 = vrot.slane %v4513, 5
    %v4591 = vsel %vm4543, %v4590, %v4589
    %v4592 = vrot.slane %v4514, 4
    %v4593 = vsel %vm4546, %v4592, %v4591
    %v4594 = vrot.slane %v4515, 3
    %v4595 = vsel %vm4549, %v4594, %v4593
    %v4596 = vrot.slane %v4516, 2
    %v4597 = vsel %vm4552, %v4596, %v4595
    %4598 = vrot.lane.b32.xlu0 %v4583, 64
    %v4599 = vpop.permute.xlu0 %4598
    %4600 = vrot.lane.b32.xlu0 %v4597, 64
    %v4601 = vpop.permute.xlu0 %4600
    %v4604 = vrot.slane %v4501, 2
    %v4605 = vrot.slane %v4502, 1
    %v4606 = vsel %vm4534, %v4605, %v4604
    %v4607 = vsel %vm4537, %v4503, %v4606
    %v4608 = vrot.slane %v4504, 7
    %v4609 = vsel %vm4540, %v4608, %v4607
    %v4610 = vrot.slane %v4505, 6
    %v4611 = vsel %vm4543, %v4610, %v4609
    %v4612 = vrot.slane %v4506, 5
    %v4613 = vsel %vm4546, %v4612, %v4611
    %v4614 = vrot.slane %v4507, 4
    %v4615 = vsel %vm4549, %v4614, %v4613
    %v4616 = vrot.slane %v4508, 3
    %v4617 = vsel %vm4552, %v4616, %v4615
    %v4618 = vrot.slane %v4509, 2
    %v4619 = vrot.slane %v4510, 1
    %v4620 = vsel %vm4534, %v4619, %v4618
    %v4621 = vsel %vm4537, %v4511, %v4620
    %v4622 = vrot.slane %v4512, 7
    %v4623 = vsel %vm4540, %v4622, %v4621
    %v4624 = vrot.slane %v4513, 6
    %v4625 = vsel %vm4543, %v4624, %v4623
    %v4626 = vrot.slane %v4514, 5
    %v4627 = vsel %vm4546, %v4626, %v4625
    %v4628 = vrot.slane %v4515, 4
    %v4629 = vsel %vm4549, %v4628, %v4627
    %v4630 = vrot.slane %v4516, 3
    %v4631 = vsel %vm4552, %v4630, %v4629
    %v4634 = vrot.slane %v4501, 3
    %v4635 = vrot.slane %v4502, 2
    %v4636 = vsel %vm4534, %v4635, %v4634
    %v4637 = vrot.slane %v4503, 1
    %v4638 = vsel %vm4537, %v4637, %v4636
    %v4639 = vsel %vm4540, %v4504, %v4638
    %v4640 = vrot.slane %v4505, 7
    %v4641 = vsel %vm4543, %v4640, %v4639
    %v4642 = vrot.slane %v4506, 6
    %v4643 = vsel %vm4546, %v4642, %v4641
    %v4644 = vrot.slane %v4507, 5
    %v4645 = vsel %vm4549, %v4644, %v4643
    %v4646 = vrot.slane %v4508, 4
    %v4647 = vsel %vm4552, %v4646, %v4645
    %v4648 = vrot.slane %v4509, 3
    %v4649 = vrot.slane %v4510, 2
    %v4650 = vsel %vm4534, %v4649, %v4648
    %v4651 = vrot.slane %v4511, 1
    %v4652 = vsel %vm4537, %v4651, %v4650
    %v4653 = vsel %vm4540, %v4512, %v4652
    %v4654 = vrot.slane %v4513, 7
    %v4655 = vsel %vm4543, %v4654, %v4653
    %v4656 = vrot.slane %v4514, 6
    %v4657 = vsel %vm4546, %v4656, %v4655
    %v4658 = vrot.slane %v4515, 5
    %v4659 = vsel %vm4549, %v4658, %v4657
    %v4660 = vrot.slane %v4516, 4
    %v4661 = vsel %vm4552, %v4660, %v4659
    %4662 = vrot.lane.b32.xlu0 %v4647, 64
    %v4663 = vpop.permute.xlu0 %4662
    %4664 = vrot.lane.b32.xlu0 %v4661, 64
    %v4665 = vpop.permute.xlu0 %4664
    %v4668 = vrot.slane %v4501, 4
    %v4669 = vrot.slane %v4502, 3
    %v4670 = vsel %vm4534, %v4669, %v4668
    %v4671 = vrot.slane %v4503, 2
    %v4672 = vsel %vm4537, %v4671, %v4670
    %v4673 = vrot.slane %v4504, 1
    %v4674 = vsel %vm4540, %v4673, %v4672
    %v4675 = vsel %vm4543, %v4505, %v4674
    %v4676 = vrot.slane %v4506, 7
    %v4677 = vsel %vm4546, %v4676, %v4675
    %v4678 = vrot.slane %v4507, 6
    %v4679 = vsel %vm4549, %v4678, %v4677
    %v4680 = vrot.slane %v4508, 5
    %v4681 = vsel %vm4552, %v4680, %v4679
    %v4682 = vrot.slane %v4509, 4
    %v4683 = vrot.slane %v4510, 3
    %v4684 = vsel %vm4534, %v4683, %v4682
    %v4685 = vrot.slane %v4511, 2
    %v4686 = vsel %vm4537, %v4685, %v4684
    %v4687 = vrot.slane %v4512, 1
    %v4688 = vsel %vm4540, %v4687, %v4686
    %v4689 = vsel %vm4543, %v4513, %v4688
    %v4690 = vrot.slane %v4514, 7
    %v4691 = vsel %vm4546, %v4690, %v4689
    %v4692 = vrot.slane %v4515, 6
    %v4693 = vsel %vm4549, %v4692, %v4691
    %v4694 = vrot.slane %v4516, 5
    %v4695 = vsel %vm4552, %v4694, %v4693
    %v4698 = vrot.slane %v4501, 5
    %v4699 = vrot.slane %v4502, 4
    %v4700 = vsel %vm4534, %v4699, %v4698
    %v4701 = vrot.slane %v4503, 3
    %v4702 = vsel %vm4537, %v4701, %v4700
    %v4703 = vrot.slane %v4504, 2
    %v4704 = vsel %vm4540, %v4703, %v4702
    %v4705 = vrot.slane %v4505, 1
    %v4706 = vsel %vm4543, %v4705, %v4704
    %v4707 = vsel %vm4546, %v4506, %v4706
    %v4708 = vrot.slane %v4507, 7
    %v4709 = vsel %vm4549, %v4708, %v4707
    %v4710 = vrot.slane %v4508, 6
    %v4711 = vsel %vm4552, %v4710, %v4709
    %v4712 = vrot.slane %v4509, 5
    %v4713 = vrot.slane %v4510, 4
    %v4714 = vsel %vm4534, %v4713, %v4712
    %v4715 = vrot.slane %v4511, 3
    %v4716 = vsel %vm4537, %v4715, %v4714
    %v4717 = vrot.slane %v4512, 2
    %v4718 = vsel %vm4540, %v4717, %v4716
    %v4719 = vrot.slane %v4513, 1
    %v4720 = vsel %vm4543, %v4719, %v4718
    %v4721 = vsel %vm4546, %v4514, %v4720
    %v4722 = vrot.slane %v4515, 7
    %v4723 = vsel %vm4549, %v4722, %v4721
    %v4724 = vrot.slane %v4516, 6
    %v4725 = vsel %vm4552, %v4724, %v4723
    %4726 = vrot.lane.b32.xlu0 %v4711, 64
    %v4727 = vpop.permute.xlu0 %4726
    %4728 = vrot.lane.b32.xlu0 %v4725, 64
    %v4729 = vpop.permute.xlu0 %4728
    %v4732 = vrot.slane %v4501, 6
    %v4733 = vrot.slane %v4502, 5
    %v4734 = vsel %vm4534, %v4733, %v4732
    %v4735 = vrot.slane %v4503, 4
    %v4736 = vsel %vm4537, %v4735, %v4734
    %v4737 = vrot.slane %v4504, 3
    %v4738 = vsel %vm4540, %v4737, %v4736
    %v4739 = vrot.slane %v4505, 2
    %v4740 = vsel %vm4543, %v4739, %v4738
    %v4741 = vrot.slane %v4506, 1
    %v4742 = vsel %vm4546, %v4741, %v4740
    %v4743 = vsel %vm4549, %v4507, %v4742
    %v4744 = vrot.slane %v4508, 7
    %v4745 = vsel %vm4552, %v4744, %v4743
    %v4746 = vrot.slane %v4509, 6
    %v4747 = vrot.slane %v4510, 5
    %v4748 = vsel %vm4534, %v4747, %v4746
    %v4749 = vrot.slane %v4511, 4
    %v4750 = vsel %vm4537, %v4749, %v4748
    %v4751 = vrot.slane %v4512, 3
    %v4752 = vsel %vm4540, %v4751, %v4750
    %v4753 = vrot.slane %v4513, 2
    %v4754 = vsel %vm4543, %v4753, %v4752
    %v4755 = vrot.slane %v4514, 1
    %v4756 = vsel %vm4546, %v4755, %v4754
    %v4757 = vsel %vm4549, %v4515, %v4756
    %v4758 = vrot.slane %v4516, 7
    %v4759 = vsel %vm4552, %v4758, %v4757
    %v4762 = vrot.slane %v4501, 7
    %v4763 = vrot.slane %v4502, 6
    %v4764 = vsel %vm4534, %v4763, %v4762
    %v4765 = vrot.slane %v4503, 5
    %v4766 = vsel %vm4537, %v4765, %v4764
    %v4767 = vrot.slane %v4504, 4
    %v4768 = vsel %vm4540, %v4767, %v4766
    %v4769 = vrot.slane %v4505, 3
    %v4770 = vsel %vm4543, %v4769, %v4768
    %v4771 = vrot.slane %v4506, 2
    %v4772 = vsel %vm4546, %v4771, %v4770
    %v4773 = vrot.slane %v4507, 1
    %v4774 = vsel %vm4549, %v4773, %v4772
    %v4775 = vsel %vm4552, %v4508, %v4774
    %v4776 = vrot.slane %v4509, 7
    %v4777 = vrot.slane %v4510, 6
    %v4778 = vsel %vm4534, %v4777, %v4776
    %v4779 = vrot.slane %v4511, 5
    %v4780 = vsel %vm4537, %v4779, %v4778
    %v4781 = vrot.slane %v4512, 4
    %v4782 = vsel %vm4540, %v4781, %v4780
    %v4783 = vrot.slane %v4513, 3
    %v4784 = vsel %vm4543, %v4783, %v4782
    %v4785 = vrot.slane %v4514, 2
    %v4786 = vsel %vm4546, %v4785, %v4784
    %v4787 = vrot.slane %v4515, 1
    %v4788 = vsel %vm4549, %v4787, %v4786
    %v4789 = vsel %vm4552, %v4516, %v4788
    %4790 = vrot.lane.b32.xlu0 %v4775, 64
    %v4791 = vpop.permute.xlu0 %4790
    %4792 = vrot.lane.b32.xlu0 %v4789, 64
    %v4793 = vpop.permute.xlu0 %4792
    %v4796 = vsel %vm16, %v4553, %v4599
    %v4797 = vsel %vm16, %v4567, %v4601
    %v4798 = vsel %vm16, %v4617, %v4663
    %v4799 = vsel %vm16, %v4631, %v4665
    %v4800 = vsel %vm16, %v4681, %v4727
    %v4801 = vsel %vm16, %v4695, %v4729
    %v4802 = vsel %vm16, %v4745, %v4791
    %v4803 = vsel %vm16, %v4759, %v4793
    %4804 = vst [vmem:[#allocation4] sm:$0xff] %v4796
    %4805 = vst [vmem:[#allocation4 + $0x8] sm:$0xff] %v4798
    %4806 = vst [vmem:[#allocation4 + $0x10] sm:$0xff] %v4800
    %4807 = vst [vmem:[#allocation4 + $0x18] sm:$0xff] %v4802
    %4808 = vst [vmem:[#allocation4 + $0x20] sm:$0xff] %v4797
    %4809 = vst [vmem:[#allocation4 + $0x28] sm:$0xff] %v4799
    %4810 = vst [vmem:[#allocation4 + $0x30] sm:$0xff] %v4801
    %4811 = vst [vmem:[#allocation4 + $0x38] sm:$0xff] %v4803
    // Predicated region
    $region14: #{tpu_custom_call.1} parent=1 // pred_check
      _
    $region15: #{tpu_custom_call.1} parent=1 // pred_check_branch
      %4813 = sbr.rel (0) target = $region17
    $region16: #{tpu_custom_call.1} parent=1 // pred_region
      %s4815 = ssub.s32 1024, 1024
      %4816 = vsyncadd [#allocation5], %s4815
      %s4817 = sshll.u32 [#allocation4], 4
      %s4818 = int_to_ptr.vmem [resolvable:$true] %s4817
      %4823 = dma.vmem_to_hbm [thread:$0]  %s4818, 1024, %s3, [#allocation5], 512, 512, 32
    $region17: #{tpu_custom_call.1} parent=1 // pred_fallthru
      _
    // Predicated region
    $region18: #{tpu_custom_call.1} parent=1 // pred_check
      _
    $region19: #{tpu_custom_call.1} parent=1 // pred_check_branch
      %4825 = sbr.rel (0) target = $region21
    $region20: #{tpu_custom_call.1} parent=1 // pred_region
      %4826 = dma.done [#allocation5], 1024
    $region21: #{tpu_custom_call.1} parent=1 // pred_fallthru
      _
    %4827 = vsyncpa [#allocation5], 1

</llo_original>
